<compile_context>
chip_gen: v7x
topology: tpu7x:2x2x1
jax: 0.10.0
libtpu: 0.0.40
codegen_flags: <defaults>
</compile_context>

<pallas_src>
import functools

import jax
import jax.numpy as jnp
import numpy as np
from jax import lax
from jax.experimental import pallas as pl
from jax.experimental.pallas import tpu as pltpu


_STRIP = 128                      # lanes per inner strip of the bilateral stage
H_STREAM_DTYPE = jnp.bfloat16     # HBM/DMA dtype of the gathered patch tensor h
MLP_MATMUL_DTYPE = jnp.bfloat16   # MXU input dtype for MLP layers 2/3 (f32 acc)
_HI = lax.Precision.HIGHEST       # reference-only matmul precision


# -----------------------------------------------------------------------------
# In-kernel helpers
# -----------------------------------------------------------------------------
def _fast_recip(x):
    """EUP approximate reciprocal + one Newton step on the VPU (~f32 accurate)."""
    r = pl.reciprocal(x, approx=True)
    return r * (2.0 - x * r)


def _mlp_transposed(p0, p1, p2, w1, b1, w2, b2, w3, b3):
    """Per-pixel 1x1-conv MLP evaluated pixel-last (pixels on lanes).

    p0/p1/p2 : [1, tp] pose-map rows (shared by both heads)
    w1 [d1,3]/biases in f32; w2 [d2,d1], w3 [dout,d2] in MLP_MATMUL_DTYPE.
    Returns [dout, tp] f32.
    """
    # Layer 1 has K=3: three broadcast-FMAs on the VPU (MXU depth would be ~98% wasted).
    acc = w1[:, 0:1] * p0
    acc = acc + w1[:, 1:2] * p1
    acc = acc + w1[:, 2:3] * p2
    h1 = jnp.maximum(acc + b1, 0.0)                                    # [d1, tp] f32
    # Layers 2/3: MXU-native bf16 x bf16 with f32 accumulation.
    h2 = jnp.dot(w2, h1.astype(w2.dtype),
                 preferred_element_type=jnp.float32) + b2              # [d2, tp] f32
    h2 = jnp.maximum(h2, 0.0)
    return jnp.dot(w3, h2.astype(w3.dtype),
                   preferred_element_type=jnp.float32) + b3            # [dout, tp] f32


# -----------------------------------------------------------------------------
# Fused kernel: MLPs (dw & pw prediction) + bilateral weighting + pointwise mix.
# Layout: pixels on lanes (last dim), channels on sublanes -> dense vregs.
#   dw_scr : [K2*C, tp]   (k-major rows:  row k*C + c  == dw[c, k, pixel])
#   pw_scr : [Cout*C, tp] (co-major rows: row co*C + c == pw[c, co, pixel])
#   h      : [bs, K2, C, tp]  (bf16 stream)
# -----------------------------------------------------------------------------
def _fused_kernel(p_ref, h_ref, sig_ref,
                  w1d_ref, b1d_ref, w2d_ref, b2d_ref, w3d_ref, b3d_ref,
                  w1p_ref, b1p_ref, w2p_ref, b2p_ref, w3p_ref, b3p_ref,
                  o_ref, dw_scr, pw_scr, *, bs, C, K2, Cout):
    tp = p_ref.shape[-1]
    n_strips = tp // _STRIP

    # --- Stage 1: kernel-predicting MLPs (MXU), staged into VMEM scratch -----
    pT = p_ref[...]                                                    # [3, tp]
    p0, p1, p2 = pT[0:1, :], pT[1:2, :], pT[2:3, :]                    # shared rows
    dw_scr[...] = _mlp_transposed(p0, p1, p2,
                                  w1d_ref[...], b1d_ref[...], w2d_ref[...],
                                  b2d_ref[...], w3d_ref[...], b3d_ref[...])
    pw_scr[...] = _mlp_transposed(p0, p1, p2,
                                  w1p_ref[...], b1p_ref[...], w2p_ref[...],
                                  b2p_ref[...], w3p_ref[...], b3p_ref[...])

    # Hoisted invariant broadcast (JAX does not CSE broadcast_in_dim).
    sig_b = jnp.broadcast_to(sig_ref[...], (C, _STRIP))                # [C, strip]

    # --- Stage 2: f32 softmax / bilateral / pointwise, strip-mined over lanes
    def strip_body(s, carry):
        off = pl.multiple_of(s * _STRIP, _STRIP)
        lanes = pl.ds(off, _STRIP)

        # softmax over the K2 kernel positions of dw (shared across the batch)
        dws = [dw_scr[k * C:(k + 1) * C, lanes] for k in range(K2)]    # [C, strip]
        dmax = dws[0]
        for k in range(1, K2):
            dmax = jnp.maximum(dmax, dws[k])
        dexp = [jnp.exp(d - dmax) for d in dws]
        dsum = dexp[0]
        for k in range(1, K2):
            dsum = dsum + dexp[k]
        dinv = _fast_recip(dsum)                                       # [C, strip]

        for b in range(bs):
            hs = [h_ref[b, k, :, lanes].astype(jnp.float32) for k in range(K2)]

            # mean = sum_k h_k * softmax_k(dw)
            mean = hs[0] * dexp[0]
            for k in range(1, K2):
                mean = mean + hs[k] * dexp[k]
            mean = mean * dinv

            # bilateral logits + softmax over K2
            bws = []
            for k in range(K2):
                d = hs[k] - mean
                bws.append(dws[k] + sig_b * (d * d))
            bmax = bws[0]
            for k in range(1, K2):
                bmax = jnp.maximum(bmax, bws[k])
            bexp = [jnp.exp(bw - bmax) for bw in bws]
            bsum = bexp[0]
            for k in range(1, K2):
                bsum = bsum + bexp[k]
            binv = _fast_recip(bsum)

            # x2 = sum_k h_k * softmax_k(bw)
            x2 = hs[0] * bexp[0]
            for k in range(1, K2):
                x2 = x2 + hs[k] * bexp[k]
            x2 = x2 * binv                                             # [C, strip]

            # pointwise contraction over C, stored row-by-row (no concatenate)
            for co in range(Cout):
                pwc = pw_scr[co * C:(co + 1) * C, lanes]               # [C, strip]
                o_ref[b, co:co + 1, lanes] = jnp.sum(x2 * pwc, axis=0,
                                                     keepdims=True)
        return carry

    lax.fori_loop(0, n_strips, strip_body, None, unroll=True)


# -----------------------------------------------------------------------------
# pallas_call wrapper
# -----------------------------------------------------------------------------
def _choose_tile(P, per_pixel_bytes, fixed_bytes, *, cap=1024, min_steps=4,
                 vmem_budget=24 << 20):
    """Largest lane-dense pixel tile that (a) divides P, (b) fits a conservative
    VMEM budget (safe on v7x: 64 MiB physical / 32 MiB default scoped), and
    (c) leaves >= min_steps grid steps so both v7x TensorCores get >= 2
    double-buffered steps under dimension_semantics=("parallel",)."""
    assert P % 128 == 0
    n = P // 128
    tiles = [128 * d for d in range(1, n + 1)
             if n % d == 0 and 128 * d <= cap
             and fixed_bytes + per_pixel_bytes * 128 * d <= vmem_budget]
    if not tiles:
        return 128
    for want in (min_steps, 2, 1):
        ok = [t for t in tiles if P // t >= want]
        if ok:
            return max(ok)
    return tiles[0]


def bi_upsampler_pallas(pT, h, sig, dw_w, pw_w, *, bs, C, K2, Cout):
    # TODO(synk): non-multiple-of-8 in_channels needs a relayout-free scratch
    # row layout; the dw/pw row-block slices assume f32 sublane alignment.
    assert C % 8 == 0, "in_channels must be a multiple of 8 (f32 sublane tile)"
    P = pT.shape[1]
    # Lane alignment only: pad at most 127 pixels (the old version padded h up
    # to a full tile, re-materializing the largest tensor in HBM).
    P128 = ((P + 127) // 128) * 128
    if P128 != P:
        pT = jnp.pad(pT, ((0, 0), (0, P128 - P)))
        h = jnp.pad(h, ((0, 0), (0, 0), (0, 0), (0, P128 - P)))

    w1d, b1d, w2d, b2d, w3d, b3d = dw_w
    w1p, b1p, w2p, b2p, w3p, b3p = pw_w
    d1, d2 = w1d.shape[0], w2d.shape[0]
    weights = (w1d, b1d, w2d, b2d, w3d, b3d, w1p, b1p, w2p, b2p, w3p, b3p)

    # Per-grid-step VMEM estimate: double-buffered streams + scratch + MLP temps.
    h_bytes = np.dtype(h.dtype).itemsize
    per_pixel = (2 * (3 * 4 + bs * K2 * C * h_bytes + bs * Cout * 4)   # pT, h, out
                 + (K2 * C + Cout * C) * 4                             # dw/pw scratch
                 + (d1 + d2) * 6)                                      # MLP h1/h2 temps
    fixed = 2 * sum(int(np.prod(w.shape)) * np.dtype(w.dtype).itemsize
                    for w in weights) + C * 4
    tp = _choose_tile(P128, per_pixel, fixed)
    need = fixed + per_pixel * tp
    vmem_limit = int(min(max(4 * need, 32 << 20), 48 << 20))

    const2 = lambda i: (0, 0)          # weights: DMA'd once, stay VMEM-resident
    kern = functools.partial(_fused_kernel, bs=bs, C=C, K2=K2, Cout=Cout)

    out = pl.pallas_call(
        kern,
        out_shape=jax.ShapeDtypeStruct((bs, Cout, P128), jnp.float32),
        grid_spec=pltpu.PrefetchScalarGridSpec(
            num_scalar_prefetch=0,
            grid=(P128 // tp,),
            in_specs=[
                pl.BlockSpec((3, tp), lambda i: (0, i)),
                # h is the only large streamed input (bf16).  If the DMA is
                # still exposed in xprof, raise pipeline_mode=pl.Buffered(3).
                pl.BlockSpec((bs, K2, C, tp), lambda i: (0, 0, 0, i)),
                pl.BlockSpec((C, 1), const2),
                # dwconv weights (transposed; W3/b3 rows permuted k-major)
                pl.BlockSpec((d1, 3), const2), pl.BlockSpec((d1, 1), const2),
                pl.BlockSpec((d2, d1), const2), pl.BlockSpec((d2, 1), const2),
                pl.BlockSpec((K2 * C, d2), const2), pl.BlockSpec((K2 * C, 1), const2),
                # pwconv weights (transposed; W3/b3 rows permuted co-major)
                pl.BlockSpec((d1, 3), const2), pl.BlockSpec((d1, 1), const2),
                pl.BlockSpec((d2, d1), const2), pl.BlockSpec((d2, 1), const2),
                pl.BlockSpec((Cout * C, d2), const2), pl.BlockSpec((Cout * C, 1), const2),
            ],
            out_specs=pl.BlockSpec((bs, Cout, tp), lambda i: (0, 0, i)),
            scratch_shapes=[
                pltpu.VMEM((K2 * C, tp), jnp.float32),     # predicted dw (pixel-last)
                pltpu.VMEM((Cout * C, tp), jnp.float32),   # predicted pw (pixel-last)
            ],
        ),
        compiler_params=pltpu.CompilerParams(
            dimension_semantics=("parallel",),
            vmem_limit_bytes=vmem_limit,
        ),
    )(pT, h, sig, *weights)
    return out[:, :, :P]


# -----------------------------------------------------------------------------
# Glue: weight transposition/permutation/casting + unfold + gather (data movement)
# -----------------------------------------------------------------------------
def _prep_mlp_params(W1, b1, W2, b2, W3, b3, perm):
    """Pixel-last (transposed) weights; head rows permuted; layers 2/3 cast to
    the MXU matmul dtype (layer 1 and all biases stay f32)."""
    return (jnp.asarray(W1, jnp.float32).T,
            jnp.asarray(b1, jnp.float32).reshape(-1, 1),
            jnp.asarray(W2, jnp.float32).T.astype(MLP_MATMUL_DTYPE),
            jnp.asarray(b2, jnp.float32).reshape(-1, 1),
            jnp.asarray(W3, jnp.float32)[:, perm].T.astype(MLP_MATMUL_DTYPE),
            jnp.asarray(b3, jnp.float32)[0, perm].reshape(-1, 1))


@functools.partial(jax.jit,
                   static_argnames=("in_channels", "out_channels", "kernel_size"))
def bi_upsampler_forward(x, poseMap, interMapY, interMapX, params,
                         in_channels, out_channels, kernel_size):
    bs, _, hi, wi = x.shape
    _, _, ho, wo = poseMap.shape
    C, Cout, ks = in_channels, out_channels, kernel_size
    K2 = ks * ks
    P = ho * wo

    # pose map -> pixel-last [3, P]
    pT = poseMap[0].reshape(3, P).astype(jnp.float32)

    # dw head: new row r = k*C + c  <- original feature c*K2 + k   (k-major rows)
    perm_dw = np.array([(r % C) * K2 + (r // C) for r in range(C * K2)], dtype=np.int32)
    # pw head: new row r = co*C + c <- original feature c*Cout + co (co-major rows)
    perm_pw = np.array([(r % C) * Cout + (r // C) for r in range(C * Cout)], dtype=np.int32)
    dw_w = _prep_mlp_params(*params["dw"], perm_dw)
    pw_w = _prep_mlp_params(*params["pw"], perm_pw)

    # unfold (k-major stacking) + arbitrary spatial gather -> bf16 stream.
    # TODO(synk): move this gather into the kernel (HBM-resident x via pl.ANY +
    # manual row-window DMA + pltpu.roll) to kill the ~K2*ratio^2 HBM blowup.
    pad = ks // 2
    xp = jnp.pad(x, ((0, 0), (0, 0), (pad, pad), (pad, pad)))
    patches = [xp[:, :, ky:ky + hi, kx:kx + wi]
               for ky in range(ks) for kx in range(ks)]
    h = jnp.stack(patches, axis=1)                                     # [bs, K2, C, hi, wi]
    h = h[:, :, :, interMapY, interMapX]                               # [bs, K2, C, ho, wo]
    h = h.reshape(bs, K2, C, P).astype(H_STREAM_DTYPE)

    sig = params["sigmar"].reshape(C, 1).astype(jnp.float32)

    out = bi_upsampler_pallas(pT, h, sig, dw_w, pw_w, bs=bs, C=C, K2=K2, Cout=Cout)
    return out.reshape(bs, Cout, ho, wo)


# -----------------------------------------------------------------------------
# Pure-JAX reference (mirrors the PyTorch forward) for verification.
# mixed_precision=True applies the same bf16 rounding points as the kernel
# (MLP layer-2/3 weights + their input activations, and the streamed h tensor),
# keeping everything else in f32 — this isolates the kernel-math check from the
# intentional bf16 precision budget.
# -----------------------------------------------------------------------------
def reference_forward(x, poseMap, interMapY, interMapX, params,
                      in_channels, out_channels, kernel_size, *,
                      mixed_precision=False):
    if mixed_precision:
        qm = lambda a: a.astype(MLP_MATMUL_DTYPE).astype(jnp.float32)
        qh = lambda a: a.astype(H_STREAM_DTYPE).astype(jnp.float32)
    else:
        qm = qh = lambda a: a

    bs, _, hi, wi = x.shape
    _, _, ho, wo = poseMap.shape
    C, Cout, K2 = in_channels, out_channels, kernel_size ** 2
    pad = kernel_size // 2
    p_flat = jnp.transpose(poseMap[0], (1, 2, 0)).reshape(ho * wo, 3)

    def mlp(p, W1, b1, W2, b2, W3, b3):
        h1 = jnp.maximum(jnp.dot(p, W1, precision=_HI) + b1, 0.0)
        h2 = jnp.maximum(jnp.dot(qm(h1), qm(W2), precision=_HI) + b2, 0.0)
        return jnp.dot(qm(h2), qm(W3), precision=_HI) + b3

    dw = mlp(p_flat, *params["dw"]).T.reshape(1, C, K2, ho, wo)
    pw = mlp(p_flat, *params["pw"]).T.reshape(C, Cout, ho, wo)

    xp = jnp.pad(x, ((0, 0), (0, 0), (pad, pad), (pad, pad)))
    patches = [xp[:, :, ky:ky + hi, kx:kx + wi]
               for ky in range(kernel_size) for kx in range(kernel_size)]
    h = jnp.stack(patches, axis=2)                                     # [bs,C,K2,hi,wi]
    h = h[:, :, :, interMapY, interMapX]                               # [bs,C,K2,ho,wo]
    h = qh(h)

    sm_dw = jax.nn.softmax(dw, axis=2)
    mean = jnp.sum(h * sm_dw, axis=2, keepdims=True)
    sig = params["sigmar"].reshape(1, C, 1, 1, 1)
    bw = dw + sig * (h - mean) ** 2
    x2 = jnp.sum(h * jax.nn.softmax(bw, axis=2), axis=2)               # [bs,C,ho,wo]
    return jnp.einsum("abde,bcde->acde", x2, pw, precision=_HI)


# -----------------------------------------------------------------------------
if __name__ == "__main__":
    # small, forward-consistent shapes (2x nearest-neighbour style upsampling)
    in_channels, out_channels, kernel_size = 8, 3, 3
    bs, hi, wi = 2, 16, 16
    ho, wo = 32, 32                    # P = 1024 -> tp = 256, 4 "parallel" grid steps
    K2 = kernel_size ** 2

    key = jax.random.PRNGKey(0)
    keys = jax.random.split(key, 16)

    def winit(k, shape, scale=0.1):
        return (scale * jax.random.normal(k, shape)).astype(jnp.float32)

    # 1x1-conv stacks 3->64->256->Dout stored as matmul weights [Cin, Cout]
    params = {
        "dw": (winit(keys[0], (3, 64)), winit(keys[1], (1, 64)),
               winit(keys[2], (64, 256)), winit(keys[3], (1, 256)),
               winit(keys[4], (256, in_channels * K2)),
               winit(keys[5], (1, in_channels * K2))),
        "pw": (winit(keys[6], (3, 64)), winit(keys[7], (1, 64)),
               winit(keys[8], (64, 256)), winit(keys[9], (1, 256)),
               winit(keys[10], (256, in_channels * out_channels)),
               winit(keys[11], (1, in_channels * out_channels))),
        # nn.Parameter of shape (1, C, 1, 1, 1); synthetic non-zero init so the
        # bilateral branch is exercised.
        "sigmar": winit(keys[12], (in_channels,), scale=0.25),
    }

    x = jax.random.normal(keys[13], (bs, in_channels, hi, wi), dtype=jnp.float32)
    poseMap = jax.random.normal(keys[14], (1, 3, ho, wo), dtype=jnp.float32)
    # nearest-neighbour style 2x upsampling index maps into the hi x wi grid
    yy = (jnp.arange(ho) * hi) // ho
    xx = (jnp.arange(wo) * wi) // wo
    interMapY = jnp.broadcast_to(yy[:, None], (ho, wo)).astype(jnp.int32)
    interMapX = jnp.broadcast_to(xx[None, :], (ho, wo)).astype(jnp.int32)

    out = bi_upsampler_forward(x, poseMap, interMapY, interMapX, params,
                               in_channels=in_channels,
                               out_channels=out_channels,
                               kernel_size=kernel_size)
    out = jax.block_until_ready(out)
    assert out.shape == (bs, out_channels, ho, wo)

    # Tight check: reference with the SAME bf16 rounding points as the kernel ->
    # validates the fused softmax / bilateral / contraction math itself.
    ref_mp = reference_forward(x, poseMap, interMapY, interMapX, params,
                               in_channels, out_channels, kernel_size,
                               mixed_precision=True)
    ref_mp = jax.block_until_ready(ref_mp)
    np.testing.assert_allclose(np.asarray(out), np.asarray(ref_mp),
                               rtol=2e-3, atol=2e-3)

    # Loose check: pure-f32 PyTorch-equivalent forward; the gap is the
    # intentional bf16 MXU / bf16-h-streaming precision budget.
    ref_f32 = reference_forward(x, poseMap, interMapY, interMapX, params,
                                in_channels, out_channels, kernel_size)
    ref_f32 = jax.block_until_ready(ref_f32)
    np.testing.assert_allclose(np.asarray(out), np.asarray(ref_f32),
                               rtol=5e-2, atol=5e-2)

    print("KERNEL_OK")
</pallas_src>

<mosaic_0001>
module attributes {stable_mosaic.version = 11 : i64} {
  func.func @_fused_kernel(%arg0: i32, %arg1: memref<3x256xf32, #tpu.memory_space<vmem>>, %arg2: memref<2x9x8x256xbf16, #tpu.memory_space<vmem>>, %arg3: memref<8x1xf32, #tpu.memory_space<vmem>>, %arg4: memref<64x3xf32, #tpu.memory_space<vmem>>, %arg5: memref<64x1xf32, #tpu.memory_space<vmem>>, %arg6: memref<256x64xbf16, #tpu.memory_space<vmem>>, %arg7: memref<256x1xf32, #tpu.memory_space<vmem>>, %arg8: memref<72x256xbf16, #tpu.memory_space<vmem>>, %arg9: memref<72x1xf32, #tpu.memory_space<vmem>>, %arg10: memref<64x3xf32, #tpu.memory_space<vmem>>, %arg11: memref<64x1xf32, #tpu.memory_space<vmem>>, %arg12: memref<256x64xbf16, #tpu.memory_space<vmem>>, %arg13: memref<256x1xf32, #tpu.memory_space<vmem>>, %arg14: memref<24x256xbf16, #tpu.memory_space<vmem>>, %arg15: memref<24x1xf32, #tpu.memory_space<vmem>>, %arg16: memref<2x3x256xf32, #tpu.memory_space<vmem>>, %arg17: memref<72x256xf32, #tpu.memory_space<vmem>>, %arg18: memref<24x256xf32, #tpu.memory_space<vmem>>) attributes {dimension_semantics = [#tpu.dimension_semantics<parallel>], iteration_bounds = array<i64: 4>, scalar_prefetch = 0 : i64, scratch_operands = 2 : i64, tpu.core_type = #tpu.core_type<tc>, window_params = [{transform_indices = @transform_0, window_bounds = array<i64: 3, 256>}, {transform_indices = @transform_1, window_bounds = array<i64: 2, 9, 8, 256>}, {pipeline_mode = #tpu.pipeline_mode<synchronous>, transform_indices = @transform_2, window_bounds = array<i64: 8, 1>}, {pipeline_mode = #tpu.pipeline_mode<synchronous>, transform_indices = @transform_3, window_bounds = array<i64: 64, 3>}, {pipeline_mode = #tpu.pipeline_mode<synchronous>, transform_indices = @transform_4, window_bounds = array<i64: 64, 1>}, {pipeline_mode = #tpu.pipeline_mode<synchronous>, transform_indices = @transform_5, window_bounds = array<i64: 256, 64>}, {pipeline_mode = #tpu.pipeline_mode<synchronous>, transform_indices = @transform_6, window_bounds = array<i64: 256, 1>}, {pipeline_mode = #tpu.pipeline_mode<synchronous>, transform_indices = @transform_7, window_bounds = array<i64: 72, 256>}, {pipeline_mode = #tpu.pipeline_mode<synchronous>, transform_indices = @transform_8, window_bounds = array<i64: 72, 1>}, {pipeline_mode = #tpu.pipeline_mode<synchronous>, transform_indices = @transform_9, window_bounds = array<i64: 64, 3>}, {pipeline_mode = #tpu.pipeline_mode<synchronous>, transform_indices = @transform_10, window_bounds = array<i64: 64, 1>}, {pipeline_mode = #tpu.pipeline_mode<synchronous>, transform_indices = @transform_11, window_bounds = array<i64: 256, 64>}, {pipeline_mode = #tpu.pipeline_mode<synchronous>, transform_indices = @transform_12, window_bounds = array<i64: 256, 1>}, {pipeline_mode = #tpu.pipeline_mode<synchronous>, transform_indices = @transform_13, window_bounds = array<i64: 24, 256>}, {pipeline_mode = #tpu.pipeline_mode<synchronous>, transform_indices = @transform_14, window_bounds = array<i64: 24, 1>}, {transform_indices = @transform_15, window_bounds = array<i64: 2, 3, 256>}]} {
    %c0 = arith.constant 0 : index
    %c0_0 = arith.constant 0 : index
    %0 = vector.load %arg1[%c0, %c0_0] : memref<3x256xf32, #tpu.memory_space<vmem>>, vector<3x256xf32>
    %1 = vector.extract_strided_slice %0 {offsets = [0, 0], sizes = [1, 256], strides = [1, 1]} : vector<3x256xf32> to vector<1x256xf32>
    %2 = vector.extract_strided_slice %0 {offsets = [1, 0], sizes = [1, 256], strides = [1, 1]} : vector<3x256xf32> to vector<1x256xf32>
    %3 = vector.extract_strided_slice %0 {offsets = [2, 0], sizes = [1, 256], strides = [1, 1]} : vector<3x256xf32> to vector<1x256xf32>
    %c0_1 = arith.constant 0 : index
    %c0_2 = arith.constant 0 : index
    %4 = vector.load %arg4[%c0_1, %c0_2] : memref<64x3xf32, #tpu.memory_space<vmem>>, vector<64x3xf32>
    %c0_3 = arith.constant 0 : index
    %c0_4 = arith.constant 0 : index
    %5 = vector.load %arg5[%c0_3, %c0_4] : memref<64x1xf32, #tpu.memory_space<vmem>>, vector<64x1xf32>
    %c0_5 = arith.constant 0 : index
    %c0_6 = arith.constant 0 : index
    %6 = vector.load %arg6[%c0_5, %c0_6] : memref<256x64xbf16, #tpu.memory_space<vmem>>, vector<256x64xbf16>
    %c0_7 = arith.constant 0 : index
    %c0_8 = arith.constant 0 : index
    %7 = vector.load %arg7[%c0_7, %c0_8] : memref<256x1xf32, #tpu.memory_space<vmem>>, vector<256x1xf32>
    %c0_9 = arith.constant 0 : index
    %c0_10 = arith.constant 0 : index
    %8 = vector.load %arg8[%c0_9, %c0_10] : memref<72x256xbf16, #tpu.memory_space<vmem>>, vector<72x256xbf16>
    %c0_11 = arith.constant 0 : index
    %c0_12 = arith.constant 0 : index
    %9 = vector.load %arg9[%c0_11, %c0_12] : memref<72x1xf32, #tpu.memory_space<vmem>>, vector<72x1xf32>
    %10 = vector.extract_strided_slice %4 {offsets = [0, 0], sizes = [64, 1], strides = [1, 1]} : vector<64x3xf32> to vector<64x1xf32>
    %11 = vector.broadcast %10 : vector<64x1xf32> to vector<64x256xf32>
    %12 = vector.broadcast %1 : vector<1x256xf32> to vector<64x256xf32>
    %13 = arith.mulf %11, %12 : vector<64x256xf32>
    %14 = vector.extract_strided_slice %4 {offsets = [0, 1], sizes = [64, 1], strides = [1, 1]} : vector<64x3xf32> to vector<64x1xf32>
    %15 = vector.broadcast %14 : vector<64x1xf32> to vector<64x256xf32>
    %16 = vector.broadcast %2 : vector<1x256xf32> to vector<64x256xf32>
    %17 = arith.mulf %15, %16 : vector<64x256xf32>
    %18 = arith.addf %13, %17 : vector<64x256xf32>
    %19 = vector.extract_strided_slice %4 {offsets = [0, 2], sizes = [64, 1], strides = [1, 1]} : vector<64x3xf32> to vector<64x1xf32>
    %20 = vector.broadcast %19 : vector<64x1xf32> to vector<64x256xf32>
    %21 = vector.broadcast %3 : vector<1x256xf32> to vector<64x256xf32>
    %22 = arith.mulf %20, %21 : vector<64x256xf32>
    %23 = arith.addf %18, %22 : vector<64x256xf32>
    %24 = vector.broadcast %5 : vector<64x1xf32> to vector<64x256xf32>
    %25 = arith.addf %23, %24 : vector<64x256xf32>
    %cst = arith.constant 0.000000e+00 : f32
    %26 = vector.broadcast %cst : f32 to vector<64x256xf32>
    %27 = arith.maximumf %25, %26 : vector<64x256xf32>
    %28 = arith.truncf %27 : vector<64x256xf32> to vector<64x256xbf16>
    %cst_13 = arith.constant dense<0.000000e+00> : vector<256x256xf32>
    %29 = tpu.matmul %6, %28, %cst_13 {dimension_numbers = #tpu.dot_dimension_numbers<[1], [0], [0], [1], [0, 0, 1, 1], [], []>} : vector<256x64xbf16>, vector<64x256xbf16>, vector<256x256xf32> -> vector<256x256xf32>
    %30 = vector.broadcast %7 : vector<256x1xf32> to vector<256x256xf32>
    %31 = arith.addf %29, %30 : vector<256x256xf32>
    %cst_14 = arith.constant 0.000000e+00 : f32
    %32 = vector.broadcast %cst_14 : f32 to vector<256x256xf32>
    %33 = arith.maximumf %31, %32 : vector<256x256xf32>
    %34 = arith.truncf %33 : vector<256x256xf32> to vector<256x256xbf16>
    %cst_15 = arith.constant dense<0.000000e+00> : vector<72x256xf32>
    %35 = tpu.matmul %8, %34, %cst_15 {dimension_numbers = #tpu.dot_dimension_numbers<[1], [0], [0], [1], [0, 0, 1, 1], [], []>} : vector<72x256xbf16>, vector<256x256xbf16>, vector<72x256xf32> -> vector<72x256xf32>
    %36 = vector.broadcast %9 : vector<72x1xf32> to vector<72x256xf32>
    %37 = arith.addf %35, %36 : vector<72x256xf32>
    %c0_16 = arith.constant 0 : index
    %c0_17 = arith.constant 0 : index
    %38 = vector.load %arg17[%c0_16, %c0_17] : memref<72x256xf32, #tpu.memory_space<vmem>>, vector<72x256xf32>
    tpu.vector_store %arg17[%c0_16, %c0_17], %37 {strides = array<i32>} : memref<72x256xf32, #tpu.memory_space<vmem>>, vector<72x256xf32>,
    %c0_18 = arith.constant 0 : index
    %c0_19 = arith.constant 0 : index
    %39 = vector.load %arg10[%c0_18, %c0_19] : memref<64x3xf32, #tpu.memory_space<vmem>>, vector<64x3xf32>
    %c0_20 = arith.constant 0 : index
    %c0_21 = arith.constant 0 : index
    %40 = vector.load %arg11[%c0_20, %c0_21] : memref<64x1xf32, #tpu.memory_space<vmem>>, vector<64x1xf32>
    %c0_22 = arith.constant 0 : index
    %c0_23 = arith.constant 0 : index
    %41 = vector.load %arg12[%c0_22, %c0_23] : memref<256x64xbf16, #tpu.memory_space<vmem>>, vector<256x64xbf16>
    %c0_24 = arith.constant 0 : index
    %c0_25 = arith.constant 0 : index
    %42 = vector.load %arg13[%c0_24, %c0_25] : memref<256x1xf32, #tpu.memory_space<vmem>>, vector<256x1xf32>
    %c0_26 = arith.constant 0 : index
    %c0_27 = arith.constant 0 : index
    %43 = vector.load %arg14[%c0_26, %c0_27] : memref<24x256xbf16, #tpu.memory_space<vmem>>, vector<24x256xbf16>
    %c0_28 = arith.constant 0 : index
    %c0_29 = arith.constant 0 : index
    %44 = vector.load %arg15[%c0_28, %c0_29] : memref<24x1xf32, #tpu.memory_space<vmem>>, vector<24x1xf32>
    %45 = vector.extract_strided_slice %39 {offsets = [0, 0], sizes = [64, 1], strides = [1, 1]} : vector<64x3xf32> to vector<64x1xf32>
    %46 = vector.broadcast %45 : vector<64x1xf32> to vector<64x256xf32>
    %47 = vector.broadcast %1 : vector<1x256xf32> to vector<64x256xf32>
    %48 = arith.mulf %46, %47 : vector<64x256xf32>
    %49 = vector.extract_strided_slice %39 {offsets = [0, 1], sizes = [64, 1], strides = [1, 1]} : vector<64x3xf32> to vector<64x1xf32>
    %50 = vector.broadcast %49 : vector<64x1xf32> to vector<64x256xf32>
    %51 = vector.broadcast %2 : vector<1x256xf32> to vector<64x256xf32>
    %52 = arith.mulf %50, %51 : vector<64x256xf32>
    %53 = arith.addf %48, %52 : vector<64x256xf32>
    %54 = vector.extract_strided_slice %39 {offsets = [0, 2], sizes = [64, 1], strides = [1, 1]} : vector<64x3xf32> to vector<64x1xf32>
    %55 = vector.broadcast %54 : vector<64x1xf32> to vector<64x256xf32>
    %56 = vector.broadcast %3 : vector<1x256xf32> to vector<64x256xf32>
    %57 = arith.mulf %55, %56 : vector<64x256xf32>
    %58 = arith.addf %53, %57 : vector<64x256xf32>
    %59 = vector.broadcast %40 : vector<64x1xf32> to vector<64x256xf32>
    %60 = arith.addf %58, %59 : vector<64x256xf32>
    %cst_30 = arith.constant 0.000000e+00 : f32
    %61 = vector.broadcast %cst_30 : f32 to vector<64x256xf32>
    %62 = arith.maximumf %60, %61 : vector<64x256xf32>
    %63 = arith.truncf %62 : vector<64x256xf32> to vector<64x256xbf16>
    %cst_31 = arith.constant dense<0.000000e+00> : vector<256x256xf32>
    %64 = tpu.matmul %41, %63, %cst_31 {dimension_numbers = #tpu.dot_dimension_numbers<[1], [0], [0], [1], [0, 0, 1, 1], [], []>} : vector<256x64xbf16>, vector<64x256xbf16>, vector<256x256xf32> -> vector<256x256xf32>
    %65 = vector.broadcast %42 : vector<256x1xf32> to vector<256x256xf32>
    %66 = arith.addf %64, %65 : vector<256x256xf32>
    %cst_32 = arith.constant 0.000000e+00 : f32
    %67 = vector.broadcast %cst_32 : f32 to vector<256x256xf32>
    %68 = arith.maximumf %66, %67 : vector<256x256xf32>
    %69 = arith.truncf %68 : vector<256x256xf32> to vector<256x256xbf16>
    %cst_33 = arith.constant dense<0.000000e+00> : vector<24x256xf32>
    %70 = tpu.matmul %43, %69, %cst_33 {dimension_numbers = #tpu.dot_dimension_numbers<[1], [0], [0], [1], [0, 0, 1, 1], [], []>} : vector<24x256xbf16>, vector<256x256xbf16>, vector<24x256xf32> -> vector<24x256xf32>
    %71 = vector.broadcast %44 : vector<24x1xf32> to vector<24x256xf32>
    %72 = arith.addf %70, %71 : vector<24x256xf32>
    %c0_34 = arith.constant 0 : index
    %c0_35 = arith.constant 0 : index
    %73 = vector.load %arg18[%c0_34, %c0_35] : memref<24x256xf32, #tpu.memory_space<vmem>>, vector<24x256xf32>
    tpu.vector_store %arg18[%c0_34, %c0_35], %72 {strides = array<i32>} : memref<24x256xf32, #tpu.memory_space<vmem>>, vector<24x256xf32>,
    %c0_36 = arith.constant 0 : index
    %c0_37 = arith.constant 0 : index
    %74 = vector.load %arg3[%c0_36, %c0_37] : memref<8x1xf32, #tpu.memory_space<vmem>>, vector<8x1xf32>
    %75 = vector.shape_cast %74 : vector<8x1xf32> to vector<8x1xf32>
    %76 = vector.broadcast %75 : vector<8x1xf32> to vector<8x128xf32>
    %c0_i32 = arith.constant 0 : i32
    %c128_i32 = arith.constant 128 : i32
    %77 = arith.muli %c0_i32, %c128_i32 : i32
    %78 = tpu.assume_multiple %77, 128 : i32
    %c0_38 = arith.constant 0 : index
    %79 = arith.index_cast %78 : i32 to index
    %80 = vector.load %arg17[%c0_38, %79] : memref<72x256xf32, #tpu.memory_space<vmem>>, vector<8x128xf32>
    %c8 = arith.constant 8 : index
    %81 = arith.index_cast %78 : i32 to index
    %82 = vector.load %arg17[%c8, %81] : memref<72x256xf32, #tpu.memory_space<vmem>>, vector<8x128xf32>
    %c16 = arith.constant 16 : index
    %83 = arith.index_cast %78 : i32 to index
    %84 = vector.load %arg17[%c16, %83] : memref<72x256xf32, #tpu.memory_space<vmem>>, vector<8x128xf32>
    %c24 = arith.constant 24 : index
    %85 = arith.index_cast %78 : i32 to index
    %86 = vector.load %arg17[%c24, %85] : memref<72x256xf32, #tpu.memory_space<vmem>>, vector<8x128xf32>
    %c32 = arith.constant 32 : index
    %87 = arith.index_cast %78 : i32 to index
    %88 = vector.load %arg17[%c32, %87] : memref<72x256xf32, #tpu.memory_space<vmem>>, vector<8x128xf32>
    %c40 = arith.constant 40 : index
    %89 = arith.index_cast %78 : i32 to index
    %90 = vector.load %arg17[%c40, %89] : memref<72x256xf32, #tpu.memory_space<vmem>>, vector<8x128xf32>
    %c48 = arith.constant 48 : index
    %91 = arith.index_cast %78 : i32 to index
    %92 = vector.load %arg17[%c48, %91] : memref<72x256xf32, #tpu.memory_space<vmem>>, vector<8x128xf32>
    %c56 = arith.constant 56 : index
    %93 = arith.index_cast %78 : i32 to index
    %94 = vector.load %arg17[%c56, %93] : memref<72x256xf32, #tpu.memory_space<vmem>>, vector<8x128xf32>
    %c64 = arith.constant 64 : index
    %95 = arith.index_cast %78 : i32 to index
    %96 = vector.load %arg17[%c64, %95] : memref<72x256xf32, #tpu.memory_space<vmem>>, vector<8x128xf32>
    %97 = arith.maximumf %80, %82 : vector<8x128xf32>
    %98 = arith.maximumf %97, %84 : vector<8x128xf32>
    %99 = arith.maximumf %98, %86 : vector<8x128xf32>
    %100 = arith.maximumf %99, %88 : vector<8x128xf32>
    %101 = arith.maximumf %100, %90 : vector<8x128xf32>
    %102 = arith.maximumf %101, %92 : vector<8x128xf32>
    %103 = arith.maximumf %102, %94 : vector<8x128xf32>
    %104 = arith.maximumf %103, %96 : vector<8x128xf32>
    %105 = arith.subf %80, %104 : vector<8x128xf32>
    %106 = math.exp %105 : vector<8x128xf32>
    %107 = arith.subf %82, %104 : vector<8x128xf32>
    %108 = math.exp %107 : vector<8x128xf32>
    %109 = arith.subf %84, %104 : vector<8x128xf32>
    %110 = math.exp %109 : vector<8x128xf32>
    %111 = arith.subf %86, %104 : vector<8x128xf32>
    %112 = math.exp %111 : vector<8x128xf32>
    %113 = arith.subf %88, %104 : vector<8x128xf32>
    %114 = math.exp %113 : vector<8x128xf32>
    %115 = arith.subf %90, %104 : vector<8x128xf32>
    %116 = math.exp %115 : vector<8x128xf32>
    %117 = arith.subf %92, %104 : vector<8x128xf32>
    %118 = math.exp %117 : vector<8x128xf32>
    %119 = arith.subf %94, %104 : vector<8x128xf32>
    %120 = math.exp %119 : vector<8x128xf32>
    %121 = arith.subf %96, %104 : vector<8x128xf32>
    %122 = math.exp %121 : vector<8x128xf32>
    %123 = arith.addf %106, %108 : vector<8x128xf32>
    %124 = arith.addf %123, %110 : vector<8x128xf32>
    %125 = arith.addf %124, %112 : vector<8x128xf32>
    %126 = arith.addf %125, %114 : vector<8x128xf32>
    %127 = arith.addf %126, %116 : vector<8x128xf32>
    %128 = arith.addf %127, %118 : vector<8x128xf32>
    %129 = arith.addf %128, %120 : vector<8x128xf32>
    %130 = arith.addf %129, %122 : vector<8x128xf32>
    %131 = tpu.reciprocal %130 {approx = true} : vector<8x128xf32> -> vector<8x128xf32>
    %132 = arith.mulf %130, %131 : vector<8x128xf32>
    %cst_39 = arith.constant 2.000000e+00 : f32
    %133 = vector.broadcast %cst_39 : f32 to vector<8x128xf32>
    %134 = arith.subf %133, %132 : vector<8x128xf32>
    %135 = arith.mulf %131, %134 : vector<8x128xf32>
    %c0_40 = arith.constant 0 : index
    %c0_41 = arith.constant 0 : index
    %c0_42 = arith.constant 0 : index
    %136 = arith.index_cast %78 : i32 to index
    %137 = vector.load %arg2[%c0_40, %c0_41, %c0_42, %136] : memref<2x9x8x256xbf16, #tpu.memory_space<vmem>>, vector<1x1x8x128xbf16>
    %138 = vector.shape_cast %137 : vector<1x1x8x128xbf16> to vector<8x128xbf16>
    %139 = arith.extf %138 : vector<8x128xbf16> to vector<8x128xf32>
    %c0_43 = arith.constant 0 : index
    %c1 = arith.constant 1 : index
    %c0_44 = arith.constant 0 : index
    %140 = arith.index_cast %78 : i32 to index
    %141 = vector.load %arg2[%c0_43, %c1, %c0_44, %140] : memref<2x9x8x256xbf16, #tpu.memory_space<vmem>>, vector<1x1x8x128xbf16>
    %142 = vector.shape_cast %141 : vector<1x1x8x128xbf16> to vector<8x128xbf16>
    %143 = arith.extf %142 : vector<8x128xbf16> to vector<8x128xf32>
    %c0_45 = arith.constant 0 : index
    %c2 = arith.constant 2 : index
    %c0_46 = arith.constant 0 : index
    %144 = arith.index_cast %78 : i32 to index
    %145 = vector.load %arg2[%c0_45, %c2, %c0_46, %144] : memref<2x9x8x256xbf16, #tpu.memory_space<vmem>>, vector<1x1x8x128xbf16>
    %146 = vector.shape_cast %145 : vector<1x1x8x128xbf16> to vector<8x128xbf16>
    %147 = arith.extf %146 : vector<8x128xbf16> to vector<8x128xf32>
    %c0_47 = arith.constant 0 : index
    %c3 = arith.constant 3 : index
    %c0_48 = arith.constant 0 : index
    %148 = arith.index_cast %78 : i32 to index
    %149 = vector.load %arg2[%c0_47, %c3, %c0_48, %148] : memref<2x9x8x256xbf16, #tpu.memory_space<vmem>>, vector<1x1x8x128xbf16>
    %150 = vector.shape_cast %149 : vector<1x1x8x128xbf16> to vector<8x128xbf16>
    %151 = arith.extf %150 : vector<8x128xbf16> to vector<8x128xf32>
    %c0_49 = arith.constant 0 : index
    %c4 = arith.constant 4 : index
    %c0_50 = arith.constant 0 : index
    %152 = arith.index_cast %78 : i32 to index
    %153 = vector.load %arg2[%c0_49, %c4, %c0_50, %152] : memref<2x9x8x256xbf16, #tpu.memory_space<vmem>>, vector<1x1x8x128xbf16>
    %154 = vector.shape_cast %153 : vector<1x1x8x128xbf16> to vector<8x128xbf16>
    %155 = arith.extf %154 : vector<8x128xbf16> to vector<8x128xf32>
    %c0_51 = arith.constant 0 : index
    %c5 = arith.constant 5 : index
    %c0_52 = arith.constant 0 : index
    %156 = arith.index_cast %78 : i32 to index
    %157 = vector.load %arg2[%c0_51, %c5, %c0_52, %156] : memref<2x9x8x256xbf16, #tpu.memory_space<vmem>>, vector<1x1x8x128xbf16>
    %158 = vector.shape_cast %157 : vector<1x1x8x128xbf16> to vector<8x128xbf16>
    %159 = arith.extf %158 : vector<8x128xbf16> to vector<8x128xf32>
    %c0_53 = arith.constant 0 : index
    %c6 = arith.constant 6 : index
    %c0_54 = arith.constant 0 : index
    %160 = arith.index_cast %78 : i32 to index
    %161 = vector.load %arg2[%c0_53, %c6, %c0_54, %160] : memref<2x9x8x256xbf16, #tpu.memory_space<vmem>>, vector<1x1x8x128xbf16>
    %162 = vector.shape_cast %161 : vector<1x1x8x128xbf16> to vector<8x128xbf16>
    %163 = arith.extf %162 : vector<8x128xbf16> to vector<8x128xf32>
    %c0_55 = arith.constant 0 : index
    %c7 = arith.constant 7 : index
    %c0_56 = arith.constant 0 : index
    %164 = arith.index_cast %78 : i32 to index
    %165 = vector.load %arg2[%c0_55, %c7, %c0_56, %164] : memref<2x9x8x256xbf16, #tpu.memory_space<vmem>>, vector<1x1x8x128xbf16>
    %166 = vector.shape_cast %165 : vector<1x1x8x128xbf16> to vector<8x128xbf16>
    %167 = arith.extf %166 : vector<8x128xbf16> to vector<8x128xf32>
    %c0_57 = arith.constant 0 : index
    %c8_58 = arith.constant 8 : index
    %c0_59 = arith.constant 0 : index
    %168 = arith.index_cast %78 : i32 to index
    %169 = vector.load %arg2[%c0_57, %c8_58, %c0_59, %168] : memref<2x9x8x256xbf16, #tpu.memory_space<vmem>>, vector<1x1x8x128xbf16>
    %170 = vector.shape_cast %169 : vector<1x1x8x128xbf16> to vector<8x128xbf16>
    %171 = arith.extf %170 : vector<8x128xbf16> to vector<8x128xf32>
    %172 = arith.mulf %139, %106 : vector<8x128xf32>
    %173 = arith.mulf %143, %108 : vector<8x128xf32>
    %174 = arith.addf %172, %173 : vector<8x128xf32>
    %175 = arith.mulf %147, %110 : vector<8x128xf32>
    %176 = arith.addf %174, %175 : vector<8x128xf32>
    %177 = arith.mulf %151, %112 : vector<8x128xf32>
    %178 = arith.addf %176, %177 : vector<8x128xf32>
    %179 = arith.mulf %155, %114 : vector<8x128xf32>
    %180 = arith.addf %178, %179 : vector<8x128xf32>
    %181 = arith.mulf %159, %116 : vector<8x128xf32>
    %182 = arith.addf %180, %181 : vector<8x128xf32>
    %183 = arith.mulf %163, %118 : vector<8x128xf32>
    %184 = arith.addf %182, %183 : vector<8x128xf32>
    %185 = arith.mulf %167, %120 : vector<8x128xf32>
    %186 = arith.addf %184, %185 : vector<8x128xf32>
    %187 = arith.mulf %171, %122 : vector<8x128xf32>
    %188 = arith.addf %186, %187 : vector<8x128xf32>
    %189 = arith.mulf %188, %135 : vector<8x128xf32>
    %190 = arith.subf %139, %189 : vector<8x128xf32>
    %191 = arith.mulf %190, %190 : vector<8x128xf32>
    %192 = arith.mulf %76, %191 : vector<8x128xf32>
    %193 = arith.addf %80, %192 : vector<8x128xf32>
    %194 = arith.subf %143, %189 : vector<8x128xf32>
    %195 = arith.mulf %194, %194 : vector<8x128xf32>
    %196 = arith.mulf %76, %195 : vector<8x128xf32>
    %197 = arith.addf %82, %196 : vector<8x128xf32>
    %198 = arith.subf %147, %189 : vector<8x128xf32>
    %199 = arith.mulf %198, %198 : vector<8x128xf32>
    %200 = arith.mulf %76, %199 : vector<8x128xf32>
    %201 = arith.addf %84, %200 : vector<8x128xf32>
    %202 = arith.subf %151, %189 : vector<8x128xf32>
    %203 = arith.mulf %202, %202 : vector<8x128xf32>
    %204 = arith.mulf %76, %203 : vector<8x128xf32>
    %205 = arith.addf %86, %204 : vector<8x128xf32>
    %206 = arith.subf %155, %189 : vector<8x128xf32>
    %207 = arith.mulf %206, %206 : vector<8x128xf32>
    %208 = arith.mulf %76, %207 : vector<8x128xf32>
    %209 = arith.addf %88, %208 : vector<8x128xf32>
    %210 = arith.subf %159, %189 : vector<8x128xf32>
    %211 = arith.mulf %210, %210 : vector<8x128xf32>
    %212 = arith.mulf %76, %211 : vector<8x128xf32>
    %213 = arith.addf %90, %212 : vector<8x128xf32>
    %214 = arith.subf %163, %189 : vector<8x128xf32>
    %215 = arith.mulf %214, %214 : vector<8x128xf32>
    %216 = arith.mulf %76, %215 : vector<8x128xf32>
    %217 = arith.addf %92, %216 : vector<8x128xf32>
    %218 = arith.subf %167, %189 : vector<8x128xf32>
    %219 = arith.mulf %218, %218 : vector<8x128xf32>
    %220 = arith.mulf %76, %219 : vector<8x128xf32>
    %221 = arith.addf %94, %220 : vector<8x128xf32>
    %222 = arith.subf %171, %189 : vector<8x128xf32>
    %223 = arith.mulf %222, %222 : vector<8x128xf32>
    %224 = arith.mulf %76, %223 : vector<8x128xf32>
    %225 = arith.addf %96, %224 : vector<8x128xf32>
    %226 = arith.maximumf %193, %197 : vector<8x128xf32>
    %227 = arith.maximumf %226, %201 : vector<8x128xf32>
    %228 = arith.maximumf %227, %205 : vector<8x128xf32>
    %229 = arith.maximumf %228, %209 : vector<8x128xf32>
    %230 = arith.maximumf %229, %213 : vector<8x128xf32>
    %231 = arith.maximumf %230, %217 : vector<8x128xf32>
    %232 = arith.maximumf %231, %221 : vector<8x128xf32>
    %233 = arith.maximumf %232, %225 : vector<8x128xf32>
    %234 = arith.subf %193, %233 : vector<8x128xf32>
    %235 = math.exp %234 : vector<8x128xf32>
    %236 = arith.subf %197, %233 : vector<8x128xf32>
    %237 = math.exp %236 : vector<8x128xf32>
    %238 = arith.subf %201, %233 : vector<8x128xf32>
    %239 = math.exp %238 : vector<8x128xf32>
    %240 = arith.subf %205, %233 : vector<8x128xf32>
    %241 = math.exp %240 : vector<8x128xf32>
    %242 = arith.subf %209, %233 : vector<8x128xf32>
    %243 = math.exp %242 : vector<8x128xf32>
    %244 = arith.subf %213, %233 : vector<8x128xf32>
    %245 = math.exp %244 : vector<8x128xf32>
    %246 = arith.subf %217, %233 : vector<8x128xf32>
    %247 = math.exp %246 : vector<8x128xf32>
    %248 = arith.subf %221, %233 : vector<8x128xf32>
    %249 = math.exp %248 : vector<8x128xf32>
    %250 = arith.subf %225, %233 : vector<8x128xf32>
    %251 = math.exp %250 : vector<8x128xf32>
    %252 = arith.addf %235, %237 : vector<8x128xf32>
    %253 = arith.addf %252, %239 : vector<8x128xf32>
    %254 = arith.addf %253, %241 : vector<8x128xf32>
    %255 = arith.addf %254, %243 : vector<8x128xf32>
    %256 = arith.addf %255, %245 : vector<8x128xf32>
    %257 = arith.addf %256, %247 : vector<8x128xf32>
    %258 = arith.addf %257, %249 : vector<8x128xf32>
    %259 = arith.addf %258, %251 : vector<8x128xf32>
    %260 = tpu.reciprocal %259 {approx = true} : vector<8x128xf32> -> vector<8x128xf32>
    %261 = arith.mulf %259, %260 : vector<8x128xf32>
    %cst_60 = arith.constant 2.000000e+00 : f32
    %262 = vector.broadcast %cst_60 : f32 to vector<8x128xf32>
    %263 = arith.subf %262, %261 : vector<8x128xf32>
    %264 = arith.mulf %260, %263 : vector<8x128xf32>
    %265 = arith.mulf %139, %235 : vector<8x128xf32>
    %266 = arith.mulf %143, %237 : vector<8x128xf32>
    %267 = arith.addf %265, %266 : vector<8x128xf32>
    %268 = arith.mulf %147, %239 : vector<8x128xf32>
    %269 = arith.addf %267, %268 : vector<8x128xf32>
    %270 = arith.mulf %151, %241 : vector<8x128xf32>
    %271 = arith.addf %269, %270 : vector<8x128xf32>
    %272 = arith.mulf %155, %243 : vector<8x128xf32>
    %273 = arith.addf %271, %272 : vector<8x128xf32>
    %274 = arith.mulf %159, %245 : vector<8x128xf32>
    %275 = arith.addf %273, %274 : vector<8x128xf32>
    %276 = arith.mulf %163, %247 : vector<8x128xf32>
    %277 = arith.addf %275, %276 : vector<8x128xf32>
    %278 = arith.mulf %167, %249 : vector<8x128xf32>
    %279 = arith.addf %277, %278 : vector<8x128xf32>
    %280 = arith.mulf %171, %251 : vector<8x128xf32>
    %281 = arith.addf %279, %280 : vector<8x128xf32>
    %282 = arith.mulf %281, %264 : vector<8x128xf32>
    %c0_61 = arith.constant 0 : index
    %283 = arith.index_cast %78 : i32 to index
    %284 = vector.load %arg18[%c0_61, %283] : memref<24x256xf32, #tpu.memory_space<vmem>>, vector<8x128xf32>
    %285 = arith.mulf %282, %284 : vector<8x128xf32>
    %cst_62 = arith.constant dense<0.000000e+00> : vector<128xf32>
    %286 = vector.multi_reduction <add>, %285, %cst_62 [0] : vector<8x128xf32> to vector<128xf32>
    %287 = vector.shape_cast %286 : vector<128xf32> to vector<1x128xf32>
    %c0_63 = arith.constant 0 : index
    %c0_64 = arith.constant 0 : index
    %288 = arith.index_cast %78 : i32 to index
    %289 = vector.load %arg16[%c0_63, %c0_64, %288] : memref<2x3x256xf32, #tpu.memory_space<vmem>>, vector<1x1x128xf32>
    %290 = vector.shape_cast %289 : vector<1x1x128xf32> to vector<1x128xf32>
    %291 = vector.shape_cast %287 : vector<1x128xf32> to vector<1x1x128xf32>
    tpu.vector_store %arg16[%c0_63, %c0_64, %288], %291 {strides = array<i32>} : memref<2x3x256xf32, #tpu.memory_space<vmem>>, vector<1x1x128xf32>,
    %c8_65 = arith.constant 8 : index
    %292 = arith.index_cast %78 : i32 to index
    %293 = vector.load %arg18[%c8_65, %292] : memref<24x256xf32, #tpu.memory_space<vmem>>, vector<8x128xf32>
    %294 = arith.mulf %282, %293 : vector<8x128xf32>
    %cst_66 = arith.constant dense<0.000000e+00> : vector<128xf32>
    %295 = vector.multi_reduction <add>, %294, %cst_66 [0] : vector<8x128xf32> to vector<128xf32>
    %296 = vector.shape_cast %295 : vector<128xf32> to vector<1x128xf32>
    %c0_67 = arith.constant 0 : index
    %c1_68 = arith.constant 1 : index
    %297 = arith.index_cast %78 : i32 to index
    %298 = vector.load %arg16[%c0_67, %c1_68, %297] : memref<2x3x256xf32, #tpu.memory_space<vmem>>, vector<1x1x128xf32>
    %299 = vector.shape_cast %298 : vector<1x1x128xf32> to vector<1x128xf32>
    %300 = vector.shape_cast %296 : vector<1x128xf32> to vector<1x1x128xf32>
    tpu.vector_store %arg16[%c0_67, %c1_68, %297], %300 {strides = array<i32>} : memref<2x3x256xf32, #tpu.memory_space<vmem>>, vector<1x1x128xf32>,
    %c16_69 = arith.constant 16 : index
    %301 = arith.index_cast %78 : i32 to index
    %302 = vector.load %arg18[%c16_69, %301] : memref<24x256xf32, #tpu.memory_space<vmem>>, vector<8x128xf32>
    %303 = arith.mulf %282, %302 : vector<8x128xf32>
    %cst_70 = arith.constant dense<0.000000e+00> : vector<128xf32>
    %304 = vector.multi_reduction <add>, %303, %cst_70 [0] : vector<8x128xf32> to vector<128xf32>
    %305 = vector.shape_cast %304 : vector<128xf32> to vector<1x128xf32>
    %c0_71 = arith.constant 0 : index
    %c2_72 = arith.constant 2 : index
    %306 = arith.index_cast %78 : i32 to index
    %307 = vector.load %arg16[%c0_71, %c2_72, %306] : memref<2x3x256xf32, #tpu.memory_space<vmem>>, vector<1x1x128xf32>
    %308 = vector.shape_cast %307 : vector<1x1x128xf32> to vector<1x128xf32>
    %309 = vector.shape_cast %305 : vector<1x128xf32> to vector<1x1x128xf32>
    tpu.vector_store %arg16[%c0_71, %c2_72, %306], %309 {strides = array<i32>} : memref<2x3x256xf32, #tpu.memory_space<vmem>>, vector<1x1x128xf32>,
    %c1_73 = arith.constant 1 : index
    %c0_74 = arith.constant 0 : index
    %c0_75 = arith.constant 0 : index
    %310 = arith.index_cast %78 : i32 to index
    %311 = vector.load %arg2[%c1_73, %c0_74, %c0_75, %310] : memref<2x9x8x256xbf16, #tpu.memory_space<vmem>>, vector<1x1x8x128xbf16>
    %312 = vector.shape_cast %311 : vector<1x1x8x128xbf16> to vector<8x128xbf16>
    %313 = arith.extf %312 : vector<8x128xbf16> to vector<8x128xf32>
    %c1_76 = arith.constant 1 : index
    %c1_77 = arith.constant 1 : index
    %c0_78 = arith.constant 0 : index
    %314 = arith.index_cast %78 : i32 to index
    %315 = vector.load %arg2[%c1_76, %c1_77, %c0_78, %314] : memref<2x9x8x256xbf16, #tpu.memory_space<vmem>>, vector<1x1x8x128xbf16>
    %316 = vector.shape_cast %315 : vector<1x1x8x128xbf16> to vector<8x128xbf16>
    %317 = arith.extf %316 : vector<8x128xbf16> to vector<8x128xf32>
    %c1_79 = arith.constant 1 : index
    %c2_80 = arith.constant 2 : index
    %c0_81 = arith.constant 0 : index
    %318 = arith.index_cast %78 : i32 to index
    %319 = vector.load %arg2[%c1_79, %c2_80, %c0_81, %318] : memref<2x9x8x256xbf16, #tpu.memory_space<vmem>>, vector<1x1x8x128xbf16>
    %320 = vector.shape_cast %319 : vector<1x1x8x128xbf16> to vector<8x128xbf16>
    %321 = arith.extf %320 : vector<8x128xbf16> to vector<8x128xf32>
    %c1_82 = arith.constant 1 : index
    %c3_83 = arith.constant 3 : index
    %c0_84 = arith.constant 0 : index
    %322 = arith.index_cast %78 : i32 to index
    %323 = vector.load %arg2[%c1_82, %c3_83, %c0_84, %322] : memref<2x9x8x256xbf16, #tpu.memory_space<vmem>>, vector<1x1x8x128xbf16>
    %324 = vector.shape_cast %323 : vector<1x1x8x128xbf16> to vector<8x128xbf16>
    %325 = arith.extf %324 : vector<8x128xbf16> to vector<8x128xf32>
    %c1_85 = arith.constant 1 : index
    %c4_86 = arith.constant 4 : index
    %c0_87 = arith.constant 0 : index
    %326 = arith.index_cast %78 : i32 to index
    %327 = vector.load %arg2[%c1_85, %c4_86, %c0_87, %326] : memref<2x9x8x256xbf16, #tpu.memory_space<vmem>>, vector<1x1x8x128xbf16>
    %328 = vector.shape_cast %327 : vector<1x1x8x128xbf16> to vector<8x128xbf16>
    %329 = arith.extf %328 : vector<8x128xbf16> to vector<8x128xf32>
    %c1_88 = arith.constant 1 : index
    %c5_89 = arith.constant 5 : index
    %c0_90 = arith.constant 0 : index
    %330 = arith.index_cast %78 : i32 to index
    %331 = vector.load %arg2[%c1_88, %c5_89, %c0_90, %330] : memref<2x9x8x256xbf16, #tpu.memory_space<vmem>>, vector<1x1x8x128xbf16>
    %332 = vector.shape_cast %331 : vector<1x1x8x128xbf16> to vector<8x128xbf16>
    %333 = arith.extf %332 : vector<8x128xbf16> to vector<8x128xf32>
    %c1_91 = arith.constant 1 : index
    %c6_92 = arith.constant 6 : index
    %c0_93 = arith.constant 0 : index
    %334 = arith.index_cast %78 : i32 to index
    %335 = vector.load %arg2[%c1_91, %c6_92, %c0_93, %334] : memref<2x9x8x256xbf16, #tpu.memory_space<vmem>>, vector<1x1x8x128xbf16>
    %336 = vector.shape_cast %335 : vector<1x1x8x128xbf16> to vector<8x128xbf16>
    %337 = arith.extf %336 : vector<8x128xbf16> to vector<8x128xf32>
    %c1_94 = arith.constant 1 : index
    %c7_95 = arith.constant 7 : index
    %c0_96 = arith.constant 0 : index
    %338 = arith.index_cast %78 : i32 to index
    %339 = vector.load %arg2[%c1_94, %c7_95, %c0_96, %338] : memref<2x9x8x256xbf16, #tpu.memory_space<vmem>>, vector<1x1x8x128xbf16>
    %340 = vector.shape_cast %339 : vector<1x1x8x128xbf16> to vector<8x128xbf16>
    %341 = arith.extf %340 : vector<8x128xbf16> to vector<8x128xf32>
    %c1_97 = arith.constant 1 : index
    %c8_98 = arith.constant 8 : index
    %c0_99 = arith.constant 0 : index
    %342 = arith.index_cast %78 : i32 to index
    %343 = vector.load %arg2[%c1_97, %c8_98, %c0_99, %342] : memref<2x9x8x256xbf16, #tpu.memory_space<vmem>>, vector<1x1x8x128xbf16>
    %344 = vector.shape_cast %343 : vector<1x1x8x128xbf16> to vector<8x128xbf16>
    %345 = arith.extf %344 : vector<8x128xbf16> to vector<8x128xf32>
    %346 = arith.mulf %313, %106 : vector<8x128xf32>
    %347 = arith.mulf %317, %108 : vector<8x128xf32>
    %348 = arith.addf %346, %347 : vector<8x128xf32>
    %349 = arith.mulf %321, %110 : vector<8x128xf32>
    %350 = arith.addf %348, %349 : vector<8x128xf32>
    %351 = arith.mulf %325, %112 : vector<8x128xf32>
    %352 = arith.addf %350, %351 : vector<8x128xf32>
    %353 = arith.mulf %329, %114 : vector<8x128xf32>
    %354 = arith.addf %352, %353 : vector<8x128xf32>
    %355 = arith.mulf %333, %116 : vector<8x128xf32>
    %356 = arith.addf %354, %355 : vector<8x128xf32>
    %357 = arith.mulf %337, %118 : vector<8x128xf32>
    %358 = arith.addf %356, %357 : vector<8x128xf32>
    %359 = arith.mulf %341, %120 : vector<8x128xf32>
    %360 = arith.addf %358, %359 : vector<8x128xf32>
    %361 = arith.mulf %345, %122 : vector<8x128xf32>
    %362 = arith.addf %360, %361 : vector<8x128xf32>
    %363 = arith.mulf %362, %135 : vector<8x128xf32>
    %364 = arith.subf %313, %363 : vector<8x128xf32>
    %365 = arith.mulf %364, %364 : vector<8x128xf32>
    %366 = arith.mulf %76, %365 : vector<8x128xf32>
    %367 = arith.addf %80, %366 : vector<8x128xf32>
    %368 = arith.subf %317, %363 : vector<8x128xf32>
    %369 = arith.mulf %368, %368 : vector<8x128xf32>
    %370 = arith.mulf %76, %369 : vector<8x128xf32>
    %371 = arith.addf %82, %370 : vector<8x128xf32>
    %372 = arith.subf %321, %363 : vector<8x128xf32>
    %373 = arith.mulf %372, %372 : vector<8x128xf32>
    %374 = arith.mulf %76, %373 : vector<8x128xf32>
    %375 = arith.addf %84, %374 : vector<8x128xf32>
    %376 = arith.subf %325, %363 : vector<8x128xf32>
    %377 = arith.mulf %376, %376 : vector<8x128xf32>
    %378 = arith.mulf %76, %377 : vector<8x128xf32>
    %379 = arith.addf %86, %378 : vector<8x128xf32>
    %380 = arith.subf %329, %363 : vector<8x128xf32>
    %381 = arith.mulf %380, %380 : vector<8x128xf32>
    %382 = arith.mulf %76, %381 : vector<8x128xf32>
    %383 = arith.addf %88, %382 : vector<8x128xf32>
    %384 = arith.subf %333, %363 : vector<8x128xf32>
    %385 = arith.mulf %384, %384 : vector<8x128xf32>
    %386 = arith.mulf %76, %385 : vector<8x128xf32>
    %387 = arith.addf %90, %386 : vector<8x128xf32>
    %388 = arith.subf %337, %363 : vector<8x128xf32>
    %389 = arith.mulf %388, %388 : vector<8x128xf32>
    %390 = arith.mulf %76, %389 : vector<8x128xf32>
    %391 = arith.addf %92, %390 : vector<8x128xf32>
    %392 = arith.subf %341, %363 : vector<8x128xf32>
    %393 = arith.mulf %392, %392 : vector<8x128xf32>
    %394 = arith.mulf %76, %393 : vector<8x128xf32>
    %395 = arith.addf %94, %394 : vector<8x128xf32>
    %396 = arith.subf %345, %363 : vector<8x128xf32>
    %397 = arith.mulf %396, %396 : vector<8x128xf32>
    %398 = arith.mulf %76, %397 : vector<8x128xf32>
    %399 = arith.addf %96, %398 : vector<8x128xf32>
    %400 = arith.maximumf %367, %371 : vector<8x128xf32>
    %401 = arith.maximumf %400, %375 : vector<8x128xf32>
    %402 = arith.maximumf %401, %379 : vector<8x128xf32>
    %403 = arith.maximumf %402, %383 : vector<8x128xf32>
    %404 = arith.maximumf %403, %387 : vector<8x128xf32>
    %405 = arith.maximumf %404, %391 : vector<8x128xf32>
    %406 = arith.maximumf %405, %395 : vector<8x128xf32>
    %407 = arith.maximumf %406, %399 : vector<8x128xf32>
    %408 = arith.subf %367, %407 : vector<8x128xf32>
    %409 = math.exp %408 : vector<8x128xf32>
    %410 = arith.subf %371, %407 : vector<8x128xf32>
    %411 = math.exp %410 : vector<8x128xf32>
    %412 = arith.subf %375, %407 : vector<8x128xf32>
    %413 = math.exp %412 : vector<8x128xf32>
    %414 = arith.subf %379, %407 : vector<8x128xf32>
    %415 = math.exp %414 : vector<8x128xf32>
    %416 = arith.subf %383, %407 : vector<8x128xf32>
    %417 = math.exp %416 : vector<8x128xf32>
    %418 = arith.subf %387, %407 : vector<8x128xf32>
    %419 = math.exp %418 : vector<8x128xf32>
    %420 = arith.subf %391, %407 : vector<8x128xf32>
    %421 = math.exp %420 : vector<8x128xf32>
    %422 = arith.subf %395, %407 : vector<8x128xf32>
    %423 = math.exp %422 : vector<8x128xf32>
    %424 = arith.subf %399, %407 : vector<8x128xf32>
    %425 = math.exp %424 : vector<8x128xf32>
    %426 = arith.addf %409, %411 : vector<8x128xf32>
    %427 = arith.addf %426, %413 : vector<8x128xf32>
    %428 = arith.addf %427, %415 : vector<8x128xf32>
    %429 = arith.addf %428, %417 : vector<8x128xf32>
    %430 = arith.addf %429, %419 : vector<8x128xf32>
    %431 = arith.addf %430, %421 : vector<8x128xf32>
    %432 = arith.addf %431, %423 : vector<8x128xf32>
    %433 = arith.addf %432, %425 : vector<8x128xf32>
    %434 = tpu.reciprocal %433 {approx = true} : vector<8x128xf32> -> vector<8x128xf32>
    %435 = arith.mulf %433, %434 : vector<8x128xf32>
    %cst_100 = arith.constant 2.000000e+00 : f32
    %436 = vector.broadcast %cst_100 : f32 to vector<8x128xf32>
    %437 = arith.subf %436, %435 : vector<8x128xf32>
    %438 = arith.mulf %434, %437 : vector<8x128xf32>
    %439 = arith.mulf %313, %409 : vector<8x128xf32>
    %440 = arith.mulf %317, %411 : vector<8x128xf32>
    %441 = arith.addf %439, %440 : vector<8x128xf32>
    %442 = arith.mulf %321, %413 : vector<8x128xf32>
    %443 = arith.addf %441, %442 : vector<8x128xf32>
    %444 = arith.mulf %325, %415 : vector<8x128xf32>
    %445 = arith.addf %443, %444 : vector<8x128xf32>
    %446 = arith.mulf %329, %417 : vector<8x128xf32>
    %447 = arith.addf %445, %446 : vector<8x128xf32>
    %448 = arith.mulf %333, %419 : vector<8x128xf32>
    %449 = arith.addf %447, %448 : vector<8x128xf32>
    %450 = arith.mulf %337, %421 : vector<8x128xf32>
    %451 = arith.addf %449, %450 : vector<8x128xf32>
    %452 = arith.mulf %341, %423 : vector<8x128xf32>
    %453 = arith.addf %451, %452 : vector<8x128xf32>
    %454 = arith.mulf %345, %425 : vector<8x128xf32>
    %455 = arith.addf %453, %454 : vector<8x128xf32>
    %456 = arith.mulf %455, %438 : vector<8x128xf32>
    %c0_101 = arith.constant 0 : index
    %457 = arith.index_cast %78 : i32 to index
    %458 = vector.load %arg18[%c0_101, %457] : memref<24x256xf32, #tpu.memory_space<vmem>>, vector<8x128xf32>
    %459 = arith.mulf %456, %458 : vector<8x128xf32>
    %cst_102 = arith.constant dense<0.000000e+00> : vector<128xf32>
    %460 = vector.multi_reduction <add>, %459, %cst_102 [0] : vector<8x128xf32> to vector<128xf32>
    %461 = vector.shape_cast %460 : vector<128xf32> to vector<1x128xf32>
    %c1_103 = arith.constant 1 : index
    %c0_104 = arith.constant 0 : index
    %462 = arith.index_cast %78 : i32 to index
    %463 = vector.load %arg16[%c1_103, %c0_104, %462] : memref<2x3x256xf32, #tpu.memory_space<vmem>>, vector<1x1x128xf32>
    %464 = vector.shape_cast %463 : vector<1x1x128xf32> to vector<1x128xf32>
    %465 = vector.shape_cast %461 : vector<1x128xf32> to vector<1x1x128xf32>
    tpu.vector_store %arg16[%c1_103, %c0_104, %462], %465 {strides = array<i32>} : memref<2x3x256xf32, #tpu.memory_space<vmem>>, vector<1x1x128xf32>,
    %c8_105 = arith.constant 8 : index
    %466 = arith.index_cast %78 : i32 to index
    %467 = vector.load %arg18[%c8_105, %466] : memref<24x256xf32, #tpu.memory_space<vmem>>, vector<8x128xf32>
    %468 = arith.mulf %456, %467 : vector<8x128xf32>
    %cst_106 = arith.constant dense<0.000000e+00> : vector<128xf32>
    %469 = vector.multi_reduction <add>, %468, %cst_106 [0] : vector<8x128xf32> to vector<128xf32>
    %470 = vector.shape_cast %469 : vector<128xf32> to vector<1x128xf32>
    %c1_107 = arith.constant 1 : index
    %c1_108 = arith.constant 1 : index
    %471 = arith.index_cast %78 : i32 to index
    %472 = vector.load %arg16[%c1_107, %c1_108, %471] : memref<2x3x256xf32, #tpu.memory_space<vmem>>, vector<1x1x128xf32>
    %473 = vector.shape_cast %472 : vector<1x1x128xf32> to vector<1x128xf32>
    %474 = vector.shape_cast %470 : vector<1x128xf32> to vector<1x1x128xf32>
    tpu.vector_store %arg16[%c1_107, %c1_108, %471], %474 {strides = array<i32>} : memref<2x3x256xf32, #tpu.memory_space<vmem>>, vector<1x1x128xf32>,
    %c16_109 = arith.constant 16 : index
    %475 = arith.index_cast %78 : i32 to index
    %476 = vector.load %arg18[%c16_109, %475] : memref<24x256xf32, #tpu.memory_space<vmem>>, vector<8x128xf32>
    %477 = arith.mulf %456, %476 : vector<8x128xf32>
    %cst_110 = arith.constant dense<0.000000e+00> : vector<128xf32>
    %478 = vector.multi_reduction <add>, %477, %cst_110 [0] : vector<8x128xf32> to vector<128xf32>
    %479 = vector.shape_cast %478 : vector<128xf32> to vector<1x128xf32>
    %c1_111 = arith.constant 1 : index
    %c2_112 = arith.constant 2 : index
    %480 = arith.index_cast %78 : i32 to index
    %481 = vector.load %arg16[%c1_111, %c2_112, %480] : memref<2x3x256xf32, #tpu.memory_space<vmem>>, vector<1x1x128xf32>
    %482 = vector.shape_cast %481 : vector<1x1x128xf32> to vector<1x128xf32>
    %483 = vector.shape_cast %479 : vector<1x128xf32> to vector<1x1x128xf32>
    tpu.vector_store %arg16[%c1_111, %c2_112, %480], %483 {strides = array<i32>} : memref<2x3x256xf32, #tpu.memory_space<vmem>>, vector<1x1x128xf32>,
    %c1_i32 = arith.constant 1 : i32
    %c128_i32_113 = arith.constant 128 : i32
    %484 = arith.muli %c1_i32, %c128_i32_113 : i32
    %485 = tpu.assume_multiple %484, 128 : i32
    %c0_114 = arith.constant 0 : index
    %486 = arith.index_cast %485 : i32 to index
    %487 = vector.load %arg17[%c0_114, %486] : memref<72x256xf32, #tpu.memory_space<vmem>>, vector<8x128xf32>
    %c8_115 = arith.constant 8 : index
    %488 = arith.index_cast %485 : i32 to index
    %489 = vector.load %arg17[%c8_115, %488] : memref<72x256xf32, #tpu.memory_space<vmem>>, vector<8x128xf32>
    %c16_116 = arith.constant 16 : index
    %490 = arith.index_cast %485 : i32 to index
    %491 = vector.load %arg17[%c16_116, %490] : memref<72x256xf32, #tpu.memory_space<vmem>>, vector<8x128xf32>
    %c24_117 = arith.constant 24 : index
    %492 = arith.index_cast %485 : i32 to index
    %493 = vector.load %arg17[%c24_117, %492] : memref<72x256xf32, #tpu.memory_space<vmem>>, vector<8x128xf32>
    %c32_118 = arith.constant 32 : index
    %494 = arith.index_cast %485 : i32 to index
    %495 = vector.load %arg17[%c32_118, %494] : memref<72x256xf32, #tpu.memory_space<vmem>>, vector<8x128xf32>
    %c40_119 = arith.constant 40 : index
    %496 = arith.index_cast %485 : i32 to index
    %497 = vector.load %arg17[%c40_119, %496] : memref<72x256xf32, #tpu.memory_space<vmem>>, vector<8x128xf32>
    %c48_120 = arith.constant 48 : index
    %498 = arith.index_cast %485 : i32 to index
    %499 = vector.load %arg17[%c48_120, %498] : memref<72x256xf32, #tpu.memory_space<vmem>>, vector<8x128xf32>
    %c56_121 = arith.constant 56 : index
    %500 = arith.index_cast %485 : i32 to index
    %501 = vector.load %arg17[%c56_121, %500] : memref<72x256xf32, #tpu.memory_space<vmem>>, vector<8x128xf32>
    %c64_122 = arith.constant 64 : index
    %502 = arith.index_cast %485 : i32 to index
    %503 = vector.load %arg17[%c64_122, %502] : memref<72x256xf32, #tpu.memory_space<vmem>>, vector<8x128xf32>
    %504 = arith.maximumf %487, %489 : vector<8x128xf32>
    %505 = arith.maximumf %504, %491 : vector<8x128xf32>
    %506 = arith.maximumf %505, %493 : vector<8x128xf32>
    %507 = arith.maximumf %506, %495 : vector<8x128xf32>
    %508 = arith.maximumf %507, %497 : vector<8x128xf32>
    %509 = arith.maximumf %508, %499 : vector<8x128xf32>
    %510 = arith.maximumf %509, %501 : vector<8x128xf32>
    %511 = arith.maximumf %510, %503 : vector<8x128xf32>
    %512 = arith.subf %487, %511 : vector<8x128xf32>
    %513 = math.exp %512 : vector<8x128xf32>
    %514 = arith.subf %489, %511 : vector<8x128xf32>
    %515 = math.exp %514 : vector<8x128xf32>
    %516 = arith.subf %491, %511 : vector<8x128xf32>
    %517 = math.exp %516 : vector<8x128xf32>
    %518 = arith.subf %493, %511 : vector<8x128xf32>
    %519 = math.exp %518 : vector<8x128xf32>
    %520 = arith.subf %495, %511 : vector<8x128xf32>
    %521 = math.exp %520 : vector<8x128xf32>
    %522 = arith.subf %497, %511 : vector<8x128xf32>
    %523 = math.exp %522 : vector<8x128xf32>
    %524 = arith.subf %499, %511 : vector<8x128xf32>
    %525 = math.exp %524 : vector<8x128xf32>
    %526 = arith.subf %501, %511 : vector<8x128xf32>
    %527 = math.exp %526 : vector<8x128xf32>
    %528 = arith.subf %503, %511 : vector<8x128xf32>
    %529 = math.exp %528 : vector<8x128xf32>
    %530 = arith.addf %513, %515 : vector<8x128xf32>
    %531 = arith.addf %530, %517 : vector<8x128xf32>
    %532 = arith.addf %531, %519 : vector<8x128xf32>
    %533 = arith.addf %532, %521 : vector<8x128xf32>
    %534 = arith.addf %533, %523 : vector<8x128xf32>
    %535 = arith.addf %534, %525 : vector<8x128xf32>
    %536 = arith.addf %535, %527 : vector<8x128xf32>
    %537 = arith.addf %536, %529 : vector<8x128xf32>
    %538 = tpu.reciprocal %537 {approx = true} : vector<8x128xf32> -> vector<8x128xf32>
    %539 = arith.mulf %537, %538 : vector<8x128xf32>
    %cst_123 = arith.constant 2.000000e+00 : f32
    %540 = vector.broadcast %cst_123 : f32 to vector<8x128xf32>
    %541 = arith.subf %540, %539 : vector<8x128xf32>
    %542 = arith.mulf %538, %541 : vector<8x128xf32>
    %c0_124 = arith.constant 0 : index
    %c0_125 = arith.constant 0 : index
    %c0_126 = arith.constant 0 : index
    %543 = arith.index_cast %485 : i32 to index
    %544 = vector.load %arg2[%c0_124, %c0_125, %c0_126, %543] : memref<2x9x8x256xbf16, #tpu.memory_space<vmem>>, vector<1x1x8x128xbf16>
    %545 = vector.shape_cast %544 : vector<1x1x8x128xbf16> to vector<8x128xbf16>
    %546 = arith.extf %545 : vector<8x128xbf16> to vector<8x128xf32>
    %c0_127 = arith.constant 0 : index
    %c1_128 = arith.constant 1 : index
    %c0_129 = arith.constant 0 : index
    %547 = arith.index_cast %485 : i32 to index
    %548 = vector.load %arg2[%c0_127, %c1_128, %c0_129, %547] : memref<2x9x8x256xbf16, #tpu.memory_space<vmem>>, vector<1x1x8x128xbf16>
    %549 = vector.shape_cast %548 : vector<1x1x8x128xbf16> to vector<8x128xbf16>
    %550 = arith.extf %549 : vector<8x128xbf16> to vector<8x128xf32>
    %c0_130 = arith.constant 0 : index
    %c2_131 = arith.constant 2 : index
    %c0_132 = arith.constant 0 : index
    %551 = arith.index_cast %485 : i32 to index
    %552 = vector.load %arg2[%c0_130, %c2_131, %c0_132, %551] : memref<2x9x8x256xbf16, #tpu.memory_space<vmem>>, vector<1x1x8x128xbf16>
    %553 = vector.shape_cast %552 : vector<1x1x8x128xbf16> to vector<8x128xbf16>
    %554 = arith.extf %553 : vector<8x128xbf16> to vector<8x128xf32>
    %c0_133 = arith.constant 0 : index
    %c3_134 = arith.constant 3 : index
    %c0_135 = arith.constant 0 : index
    %555 = arith.index_cast %485 : i32 to index
    %556 = vector.load %arg2[%c0_133, %c3_134, %c0_135, %555] : memref<2x9x8x256xbf16, #tpu.memory_space<vmem>>, vector<1x1x8x128xbf16>
    %557 = vector.shape_cast %556 : vector<1x1x8x128xbf16> to vector<8x128xbf16>
    %558 = arith.extf %557 : vector<8x128xbf16> to vector<8x128xf32>
    %c0_136 = arith.constant 0 : index
    %c4_137 = arith.constant 4 : index
    %c0_138 = arith.constant 0 : index
    %559 = arith.index_cast %485 : i32 to index
    %560 = vector.load %arg2[%c0_136, %c4_137, %c0_138, %559] : memref<2x9x8x256xbf16, #tpu.memory_space<vmem>>, vector<1x1x8x128xbf16>
    %561 = vector.shape_cast %560 : vector<1x1x8x128xbf16> to vector<8x128xbf16>
    %562 = arith.extf %561 : vector<8x128xbf16> to vector<8x128xf32>
    %c0_139 = arith.constant 0 : index
    %c5_140 = arith.constant 5 : index
    %c0_141 = arith.constant 0 : index
    %563 = arith.index_cast %485 : i32 to index
    %564 = vector.load %arg2[%c0_139, %c5_140, %c0_141, %563] : memref<2x9x8x256xbf16, #tpu.memory_space<vmem>>, vector<1x1x8x128xbf16>
    %565 = vector.shape_cast %564 : vector<1x1x8x128xbf16> to vector<8x128xbf16>
    %566 = arith.extf %565 : vector<8x128xbf16> to vector<8x128xf32>
    %c0_142 = arith.constant 0 : index
    %c6_143 = arith.constant 6 : index
    %c0_144 = arith.constant 0 : index
    %567 = arith.index_cast %485 : i32 to index
    %568 = vector.load %arg2[%c0_142, %c6_143, %c0_144, %567] : memref<2x9x8x256xbf16, #tpu.memory_space<vmem>>, vector<1x1x8x128xbf16>
    %569 = vector.shape_cast %568 : vector<1x1x8x128xbf16> to vector<8x128xbf16>
    %570 = arith.extf %569 : vector<8x128xbf16> to vector<8x128xf32>
    %c0_145 = arith.constant 0 : index
    %c7_146 = arith.constant 7 : index
    %c0_147 = arith.constant 0 : index
    %571 = arith.index_cast %485 : i32 to index
    %572 = vector.load %arg2[%c0_145, %c7_146, %c0_147, %571] : memref<2x9x8x256xbf16, #tpu.memory_space<vmem>>, vector<1x1x8x128xbf16>
    %573 = vector.shape_cast %572 : vector<1x1x8x128xbf16> to vector<8x128xbf16>
    %574 = arith.extf %573 : vector<8x128xbf16> to vector<8x128xf32>
    %c0_148 = arith.constant 0 : index
    %c8_149 = arith.constant 8 : index
    %c0_150 = arith.constant 0 : index
    %575 = arith.index_cast %485 : i32 to index
    %576 = vector.load %arg2[%c0_148, %c8_149, %c0_150, %575] : memref<2x9x8x256xbf16, #tpu.memory_space<vmem>>, vector<1x1x8x128xbf16>
    %577 = vector.shape_cast %576 : vector<1x1x8x128xbf16> to vector<8x128xbf16>
    %578 = arith.extf %577 : vector<8x128xbf16> to vector<8x128xf32>
    %579 = arith.mulf %546, %513 : vector<8x128xf32>
    %580 = arith.mulf %550, %515 : vector<8x128xf32>
    %581 = arith.addf %579, %580 : vector<8x128xf32>
    %582 = arith.mulf %554, %517 : vector<8x128xf32>
    %583 = arith.addf %581, %582 : vector<8x128xf32>
    %584 = arith.mulf %558, %519 : vector<8x128xf32>
    %585 = arith.addf %583, %584 : vector<8x128xf32>
    %586 = arith.mulf %562, %521 : vector<8x128xf32>
    %587 = arith.addf %585, %586 : vector<8x128xf32>
    %588 = arith.mulf %566, %523 : vector<8x128xf32>
    %589 = arith.addf %587, %588 : vector<8x128xf32>
    %590 = arith.mulf %570, %525 : vector<8x128xf32>
    %591 = arith.addf %589, %590 : vector<8x128xf32>
    %592 = arith.mulf %574, %527 : vector<8x128xf32>
    %593 = arith.addf %591, %592 : vector<8x128xf32>
    %594 = arith.mulf %578, %529 : vector<8x128xf32>
    %595 = arith.addf %593, %594 : vector<8x128xf32>
    %596 = arith.mulf %595, %542 : vector<8x128xf32>
    %597 = arith.subf %546, %596 : vector<8x128xf32>
    %598 = arith.mulf %597, %597 : vector<8x128xf32>
    %599 = arith.mulf %76, %598 : vector<8x128xf32>
    %600 = arith.addf %487, %599 : vector<8x128xf32>
    %601 = arith.subf %550, %596 : vector<8x128xf32>
    %602 = arith.mulf %601, %601 : vector<8x128xf32>
    %603 = arith.mulf %76, %602 : vector<8x128xf32>
    %604 = arith.addf %489, %603 : vector<8x128xf32>
    %605 = arith.subf %554, %596 : vector<8x128xf32>
    %606 = arith.mulf %605, %605 : vector<8x128xf32>
    %607 = arith.mulf %76, %606 : vector<8x128xf32>
    %608 = arith.addf %491, %607 : vector<8x128xf32>
    %609 = arith.subf %558, %596 : vector<8x128xf32>
    %610 = arith.mulf %609, %609 : vector<8x128xf32>
    %611 = arith.mulf %76, %610 : vector<8x128xf32>
    %612 = arith.addf %493, %611 : vector<8x128xf32>
    %613 = arith.subf %562, %596 : vector<8x128xf32>
    %614 = arith.mulf %613, %613 : vector<8x128xf32>
    %615 = arith.mulf %76, %614 : vector<8x128xf32>
    %616 = arith.addf %495, %615 : vector<8x128xf32>
    %617 = arith.subf %566, %596 : vector<8x128xf32>
    %618 = arith.mulf %617, %617 : vector<8x128xf32>
    %619 = arith.mulf %76, %618 : vector<8x128xf32>
    %620 = arith.addf %497, %619 : vector<8x128xf32>
    %621 = arith.subf %570, %596 : vector<8x128xf32>
    %622 = arith.mulf %621, %621 : vector<8x128xf32>
    %623 = arith.mulf %76, %622 : vector<8x128xf32>
    %624 = arith.addf %499, %623 : vector<8x128xf32>
    %625 = arith.subf %574, %596 : vector<8x128xf32>
    %626 = arith.mulf %625, %625 : vector<8x128xf32>
    %627 = arith.mulf %76, %626 : vector<8x128xf32>
    %628 = arith.addf %501, %627 : vector<8x128xf32>
    %629 = arith.subf %578, %596 : vector<8x128xf32>
    %630 = arith.mulf %629, %629 : vector<8x128xf32>
    %631 = arith.mulf %76, %630 : vector<8x128xf32>
    %632 = arith.addf %503, %631 : vector<8x128xf32>
    %633 = arith.maximumf %600, %604 : vector<8x128xf32>
    %634 = arith.maximumf %633, %608 : vector<8x128xf32>
    %635 = arith.maximumf %634, %612 : vector<8x128xf32>
    %636 = arith.maximumf %635, %616 : vector<8x128xf32>
    %637 = arith.maximumf %636, %620 : vector<8x128xf32>
    %638 = arith.maximumf %637, %624 : vector<8x128xf32>
    %639 = arith.maximumf %638, %628 : vector<8x128xf32>
    %640 = arith.maximumf %639, %632 : vector<8x128xf32>
    %641 = arith.subf %600, %640 : vector<8x128xf32>
    %642 = math.exp %641 : vector<8x128xf32>
    %643 = arith.subf %604, %640 : vector<8x128xf32>
    %644 = math.exp %643 : vector<8x128xf32>
    %645 = arith.subf %608, %640 : vector<8x128xf32>
    %646 = math.exp %645 : vector<8x128xf32>
    %647 = arith.subf %612, %640 : vector<8x128xf32>
    %648 = math.exp %647 : vector<8x128xf32>
    %649 = arith.subf %616, %640 : vector<8x128xf32>
    %650 = math.exp %649 : vector<8x128xf32>
    %651 = arith.subf %620, %640 : vector<8x128xf32>
    %652 = math.exp %651 : vector<8x128xf32>
    %653 = arith.subf %624, %640 : vector<8x128xf32>
    %654 = math.exp %653 : vector<8x128xf32>
    %655 = arith.subf %628, %640 : vector<8x128xf32>
    %656 = math.exp %655 : vector<8x128xf32>
    %657 = arith.subf %632, %640 : vector<8x128xf32>
    %658 = math.exp %657 : vector<8x128xf32>
    %659 = arith.addf %642, %644 : vector<8x128xf32>
    %660 = arith.addf %659, %646 : vector<8x128xf32>
    %661 = arith.addf %660, %648 : vector<8x128xf32>
    %662 = arith.addf %661, %650 : vector<8x128xf32>
    %663 = arith.addf %662, %652 : vector<8x128xf32>
    %664 = arith.addf %663, %654 : vector<8x128xf32>
    %665 = arith.addf %664, %656 : vector<8x128xf32>
    %666 = arith.addf %665, %658 : vector<8x128xf32>
    %667 = tpu.reciprocal %666 {approx = true} : vector<8x128xf32> -> vector<8x128xf32>
    %668 = arith.mulf %666, %667 : vector<8x128xf32>
    %cst_151 = arith.constant 2.000000e+00 : f32
    %669 = vector.broadcast %cst_151 : f32 to vector<8x128xf32>
    %670 = arith.subf %669, %668 : vector<8x128xf32>
    %671 = arith.mulf %667, %670 : vector<8x128xf32>
    %672 = arith.mulf %546, %642 : vector<8x128xf32>
    %673 = arith.mulf %550, %644 : vector<8x128xf32>
    %674 = arith.addf %672, %673 : vector<8x128xf32>
    %675 = arith.mulf %554, %646 : vector<8x128xf32>
    %676 = arith.addf %674, %675 : vector<8x128xf32>
    %677 = arith.mulf %558, %648 : vector<8x128xf32>
    %678 = arith.addf %676, %677 : vector<8x128xf32>
    %679 = arith.mulf %562, %650 : vector<8x128xf32>
    %680 = arith.addf %678, %679 : vector<8x128xf32>
    %681 = arith.mulf %566, %652 : vector<8x128xf32>
    %682 = arith.addf %680, %681 : vector<8x128xf32>
    %683 = arith.mulf %570, %654 : vector<8x128xf32>
    %684 = arith.addf %682, %683 : vector<8x128xf32>
    %685 = arith.mulf %574, %656 : vector<8x128xf32>
    %686 = arith.addf %684, %685 : vector<8x128xf32>
    %687 = arith.mulf %578, %658 : vector<8x128xf32>
    %688 = arith.addf %686, %687 : vector<8x128xf32>
    %689 = arith.mulf %688, %671 : vector<8x128xf32>
    %c0_152 = arith.constant 0 : index
    %690 = arith.index_cast %485 : i32 to index
    %691 = vector.load %arg18[%c0_152, %690] : memref<24x256xf32, #tpu.memory_space<vmem>>, vector<8x128xf32>
    %692 = arith.mulf %689, %691 : vector<8x128xf32>
    %cst_153 = arith.constant dense<0.000000e+00> : vector<128xf32>
    %693 = vector.multi_reduction <add>, %692, %cst_153 [0] : vector<8x128xf32> to vector<128xf32>
    %694 = vector.shape_cast %693 : vector<128xf32> to vector<1x128xf32>
    %c0_154 = arith.constant 0 : index
    %c0_155 = arith.constant 0 : index
    %695 = arith.index_cast %485 : i32 to index
    %696 = vector.load %arg16[%c0_154, %c0_155, %695] : memref<2x3x256xf32, #tpu.memory_space<vmem>>, vector<1x1x128xf32>
    %697 = vector.shape_cast %696 : vector<1x1x128xf32> to vector<1x128xf32>
    %698 = vector.shape_cast %694 : vector<1x128xf32> to vector<1x1x128xf32>
    tpu.vector_store %arg16[%c0_154, %c0_155, %695], %698 {strides = array<i32>} : memref<2x3x256xf32, #tpu.memory_space<vmem>>, vector<1x1x128xf32>,
    %c8_156 = arith.constant 8 : index
    %699 = arith.index_cast %485 : i32 to index
    %700 = vector.load %arg18[%c8_156, %699] : memref<24x256xf32, #tpu.memory_space<vmem>>, vector<8x128xf32>
    %701 = arith.mulf %689, %700 : vector<8x128xf32>
    %cst_157 = arith.constant dense<0.000000e+00> : vector<128xf32>
    %702 = vector.multi_reduction <add>, %701, %cst_157 [0] : vector<8x128xf32> to vector<128xf32>
    %703 = vector.shape_cast %702 : vector<128xf32> to vector<1x128xf32>
    %c0_158 = arith.constant 0 : index
    %c1_159 = arith.constant 1 : index
    %704 = arith.index_cast %485 : i32 to index
    %705 = vector.load %arg16[%c0_158, %c1_159, %704] : memref<2x3x256xf32, #tpu.memory_space<vmem>>, vector<1x1x128xf32>
    %706 = vector.shape_cast %705 : vector<1x1x128xf32> to vector<1x128xf32>
    %707 = vector.shape_cast %703 : vector<1x128xf32> to vector<1x1x128xf32>
    tpu.vector_store %arg16[%c0_158, %c1_159, %704], %707 {strides = array<i32>} : memref<2x3x256xf32, #tpu.memory_space<vmem>>, vector<1x1x128xf32>,
    %c16_160 = arith.constant 16 : index
    %708 = arith.index_cast %485 : i32 to index
    %709 = vector.load %arg18[%c16_160, %708] : memref<24x256xf32, #tpu.memory_space<vmem>>, vector<8x128xf32>
    %710 = arith.mulf %689, %709 : vector<8x128xf32>
    %cst_161 = arith.constant dense<0.000000e+00> : vector<128xf32>
    %711 = vector.multi_reduction <add>, %710, %cst_161 [0] : vector<8x128xf32> to vector<128xf32>
    %712 = vector.shape_cast %711 : vector<128xf32> to vector<1x128xf32>
    %c0_162 = arith.constant 0 : index
    %c2_163 = arith.constant 2 : index
    %713 = arith.index_cast %485 : i32 to index
    %714 = vector.load %arg16[%c0_162, %c2_163, %713] : memref<2x3x256xf32, #tpu.memory_space<vmem>>, vector<1x1x128xf32>
    %715 = vector.shape_cast %714 : vector<1x1x128xf32> to vector<1x128xf32>
    %716 = vector.shape_cast %712 : vector<1x128xf32> to vector<1x1x128xf32>
    tpu.vector_store %arg16[%c0_162, %c2_163, %713], %716 {strides = array<i32>} : memref<2x3x256xf32, #tpu.memory_space<vmem>>, vector<1x1x128xf32>,
    %c1_164 = arith.constant 1 : index
    %c0_165 = arith.constant 0 : index
    %c0_166 = arith.constant 0 : index
    %717 = arith.index_cast %485 : i32 to index
    %718 = vector.load %arg2[%c1_164, %c0_165, %c0_166, %717] : memref<2x9x8x256xbf16, #tpu.memory_space<vmem>>, vector<1x1x8x128xbf16>
    %719 = vector.shape_cast %718 : vector<1x1x8x128xbf16> to vector<8x128xbf16>
    %720 = arith.extf %719 : vector<8x128xbf16> to vector<8x128xf32>
    %c1_167 = arith.constant 1 : index
    %c1_168 = arith.constant 1 : index
    %c0_169 = arith.constant 0 : index
    %721 = arith.index_cast %485 : i32 to index
    %722 = vector.load %arg2[%c1_167, %c1_168, %c0_169, %721] : memref<2x9x8x256xbf16, #tpu.memory_space<vmem>>, vector<1x1x8x128xbf16>
    %723 = vector.shape_cast %722 : vector<1x1x8x128xbf16> to vector<8x128xbf16>
    %724 = arith.extf %723 : vector<8x128xbf16> to vector<8x128xf32>
    %c1_170 = arith.constant 1 : index
    %c2_171 = arith.constant 2 : index
    %c0_172 = arith.constant 0 : index
    %725 = arith.index_cast %485 : i32 to index
    %726 = vector.load %arg2[%c1_170, %c2_171, %c0_172, %725] : memref<2x9x8x256xbf16, #tpu.memory_space<vmem>>, vector<1x1x8x128xbf16>
    %727 = vector.shape_cast %726 : vector<1x1x8x128xbf16> to vector<8x128xbf16>
    %728 = arith.extf %727 : vector<8x128xbf16> to vector<8x128xf32>
    %c1_173 = arith.constant 1 : index
    %c3_174 = arith.constant 3 : index
    %c0_175 = arith.constant 0 : index
    %729 = arith.index_cast %485 : i32 to index
    %730 = vector.load %arg2[%c1_173, %c3_174, %c0_175, %729] : memref<2x9x8x256xbf16, #tpu.memory_space<vmem>>, vector<1x1x8x128xbf16>
    %731 = vector.shape_cast %730 : vector<1x1x8x128xbf16> to vector<8x128xbf16>
    %732 = arith.extf %731 : vector<8x128xbf16> to vector<8x128xf32>
    %c1_176 = arith.constant 1 : index
    %c4_177 = arith.constant 4 : index
    %c0_178 = arith.constant 0 : index
    %733 = arith.index_cast %485 : i32 to index
    %734 = vector.load %arg2[%c1_176, %c4_177, %c0_178, %733] : memref<2x9x8x256xbf16, #tpu.memory_space<vmem>>, vector<1x1x8x128xbf16>
    %735 = vector.shape_cast %734 : vector<1x1x8x128xbf16> to vector<8x128xbf16>
    %736 = arith.extf %735 : vector<8x128xbf16> to vector<8x128xf32>
    %c1_179 = arith.constant 1 : index
    %c5_180 = arith.constant 5 : index
    %c0_181 = arith.constant 0 : index
    %737 = arith.index_cast %485 : i32 to index
    %738 = vector.load %arg2[%c1_179, %c5_180, %c0_181, %737] : memref<2x9x8x256xbf16, #tpu.memory_space<vmem>>, vector<1x1x8x128xbf16>
    %739 = vector.shape_cast %738 : vector<1x1x8x128xbf16> to vector<8x128xbf16>
    %740 = arith.extf %739 : vector<8x128xbf16> to vector<8x128xf32>
    %c1_182 = arith.constant 1 : index
    %c6_183 = arith.constant 6 : index
    %c0_184 = arith.constant 0 : index
    %741 = arith.index_cast %485 : i32 to index
    %742 = vector.load %arg2[%c1_182, %c6_183, %c0_184, %741] : memref<2x9x8x256xbf16, #tpu.memory_space<vmem>>, vector<1x1x8x128xbf16>
    %743 = vector.shape_cast %742 : vector<1x1x8x128xbf16> to vector<8x128xbf16>
    %744 = arith.extf %743 : vector<8x128xbf16> to vector<8x128xf32>
    %c1_185 = arith.constant 1 : index
    %c7_186 = arith.constant 7 : index
    %c0_187 = arith.constant 0 : index
    %745 = arith.index_cast %485 : i32 to index
    %746 = vector.load %arg2[%c1_185, %c7_186, %c0_187, %745] : memref<2x9x8x256xbf16, #tpu.memory_space<vmem>>, vector<1x1x8x128xbf16>
    %747 = vector.shape_cast %746 : vector<1x1x8x128xbf16> to vector<8x128xbf16>
    %748 = arith.extf %747 : vector<8x128xbf16> to vector<8x128xf32>
    %c1_188 = arith.constant 1 : index
    %c8_189 = arith.constant 8 : index
    %c0_190 = arith.constant 0 : index
    %749 = arith.index_cast %485 : i32 to index
    %750 = vector.load %arg2[%c1_188, %c8_189, %c0_190, %749] : memref<2x9x8x256xbf16, #tpu.memory_space<vmem>>, vector<1x1x8x128xbf16>
    %751 = vector.shape_cast %750 : vector<1x1x8x128xbf16> to vector<8x128xbf16>
    %752 = arith.extf %751 : vector<8x128xbf16> to vector<8x128xf32>
    %753 = arith.mulf %720, %513 : vector<8x128xf32>
    %754 = arith.mulf %724, %515 : vector<8x128xf32>
    %755 = arith.addf %753, %754 : vector<8x128xf32>
    %756 = arith.mulf %728, %517 : vector<8x128xf32>
    %757 = arith.addf %755, %756 : vector<8x128xf32>
    %758 = arith.mulf %732, %519 : vector<8x128xf32>
    %759 = arith.addf %757, %758 : vector<8x128xf32>
    %760 = arith.mulf %736, %521 : vector<8x128xf32>
    %761 = arith.addf %759, %760 : vector<8x128xf32>
    %762 = arith.mulf %740, %523 : vector<8x128xf32>
    %763 = arith.addf %761, %762 : vector<8x128xf32>
    %764 = arith.mulf %744, %525 : vector<8x128xf32>
    %765 = arith.addf %763, %764 : vector<8x128xf32>
    %766 = arith.mulf %748, %527 : vector<8x128xf32>
    %767 = arith.addf %765, %766 : vector<8x128xf32>
    %768 = arith.mulf %752, %529 : vector<8x128xf32>
    %769 = arith.addf %767, %768 : vector<8x128xf32>
    %770 = arith.mulf %769, %542 : vector<8x128xf32>
    %771 = arith.subf %720, %770 : vector<8x128xf32>
    %772 = arith.mulf %771, %771 : vector<8x128xf32>
    %773 = arith.mulf %76, %772 : vector<8x128xf32>
    %774 = arith.addf %487, %773 : vector<8x128xf32>
    %775 = arith.subf %724, %770 : vector<8x128xf32>
    %776 = arith.mulf %775, %775 : vector<8x128xf32>
    %777 = arith.mulf %76, %776 : vector<8x128xf32>
    %778 = arith.addf %489, %777 : vector<8x128xf32>
    %779 = arith.subf %728, %770 : vector<8x128xf32>
    %780 = arith.mulf %779, %779 : vector<8x128xf32>
    %781 = arith.mulf %76, %780 : vector<8x128xf32>
    %782 = arith.addf %491, %781 : vector<8x128xf32>
    %783 = arith.subf %732, %770 : vector<8x128xf32>
    %784 = arith.mulf %783, %783 : vector<8x128xf32>
    %785 = arith.mulf %76, %784 : vector<8x128xf32>
    %786 = arith.addf %493, %785 : vector<8x128xf32>
    %787 = arith.subf %736, %770 : vector<8x128xf32>
    %788 = arith.mulf %787, %787 : vector<8x128xf32>
    %789 = arith.mulf %76, %788 : vector<8x128xf32>
    %790 = arith.addf %495, %789 : vector<8x128xf32>
    %791 = arith.subf %740, %770 : vector<8x128xf32>
    %792 = arith.mulf %791, %791 : vector<8x128xf32>
    %793 = arith.mulf %76, %792 : vector<8x128xf32>
    %794 = arith.addf %497, %793 : vector<8x128xf32>
    %795 = arith.subf %744, %770 : vector<8x128xf32>
    %796 = arith.mulf %795, %795 : vector<8x128xf32>
    %797 = arith.mulf %76, %796 : vector<8x128xf32>
    %798 = arith.addf %499, %797 : vector<8x128xf32>
    %799 = arith.subf %748, %770 : vector<8x128xf32>
    %800 = arith.mulf %799, %799 : vector<8x128xf32>
    %801 = arith.mulf %76, %800 : vector<8x128xf32>
    %802 = arith.addf %501, %801 : vector<8x128xf32>
    %803 = arith.subf %752, %770 : vector<8x128xf32>
    %804 = arith.mulf %803, %803 : vector<8x128xf32>
    %805 = arith.mulf %76, %804 : vector<8x128xf32>
    %806 = arith.addf %503, %805 : vector<8x128xf32>
    %807 = arith.maximumf %774, %778 : vector<8x128xf32>
    %808 = arith.maximumf %807, %782 : vector<8x128xf32>
    %809 = arith.maximumf %808, %786 : vector<8x128xf32>
    %810 = arith.maximumf %809, %790 : vector<8x128xf32>
    %811 = arith.maximumf %810, %794 : vector<8x128xf32>
    %812 = arith.maximumf %811, %798 : vector<8x128xf32>
    %813 = arith.maximumf %812, %802 : vector<8x128xf32>
    %814 = arith.maximumf %813, %806 : vector<8x128xf32>
    %815 = arith.subf %774, %814 : vector<8x128xf32>
    %816 = math.exp %815 : vector<8x128xf32>
    %817 = arith.subf %778, %814 : vector<8x128xf32>
    %818 = math.exp %817 : vector<8x128xf32>
    %819 = arith.subf %782, %814 : vector<8x128xf32>
    %820 = math.exp %819 : vector<8x128xf32>
    %821 = arith.subf %786, %814 : vector<8x128xf32>
    %822 = math.exp %821 : vector<8x128xf32>
    %823 = arith.subf %790, %814 : vector<8x128xf32>
    %824 = math.exp %823 : vector<8x128xf32>
    %825 = arith.subf %794, %814 : vector<8x128xf32>
    %826 = math.exp %825 : vector<8x128xf32>
    %827 = arith.subf %798, %814 : vector<8x128xf32>
    %828 = math.exp %827 : vector<8x128xf32>
    %829 = arith.subf %802, %814 : vector<8x128xf32>
    %830 = math.exp %829 : vector<8x128xf32>
    %831 = arith.subf %806, %814 : vector<8x128xf32>
    %832 = math.exp %831 : vector<8x128xf32>
    %833 = arith.addf %816, %818 : vector<8x128xf32>
    %834 = arith.addf %833, %820 : vector<8x128xf32>
    %835 = arith.addf %834, %822 : vector<8x128xf32>
    %836 = arith.addf %835, %824 : vector<8x128xf32>
    %837 = arith.addf %836, %826 : vector<8x128xf32>
    %838 = arith.addf %837, %828 : vector<8x128xf32>
    %839 = arith.addf %838, %830 : vector<8x128xf32>
    %840 = arith.addf %839, %832 : vector<8x128xf32>
    %841 = tpu.reciprocal %840 {approx = true} : vector<8x128xf32> -> vector<8x128xf32>
    %842 = arith.mulf %840, %841 : vector<8x128xf32>
    %cst_191 = arith.constant 2.000000e+00 : f32
    %843 = vector.broadcast %cst_191 : f32 to vector<8x128xf32>
    %844 = arith.subf %843, %842 : vector<8x128xf32>
    %845 = arith.mulf %841, %844 : vector<8x128xf32>
    %846 = arith.mulf %720, %816 : vector<8x128xf32>
    %847 = arith.mulf %724, %818 : vector<8x128xf32>
    %848 = arith.addf %846, %847 : vector<8x128xf32>
    %849 = arith.mulf %728, %820 : vector<8x128xf32>
    %850 = arith.addf %848, %849 : vector<8x128xf32>
    %851 = arith.mulf %732, %822 : vector<8x128xf32>
    %852 = arith.addf %850, %851 : vector<8x128xf32>
    %853 = arith.mulf %736, %824 : vector<8x128xf32>
    %854 = arith.addf %852, %853 : vector<8x128xf32>
    %855 = arith.mulf %740, %826 : vector<8x128xf32>
    %856 = arith.addf %854, %855 : vector<8x128xf32>
    %857 = arith.mulf %744, %828 : vector<8x128xf32>
    %858 = arith.addf %856, %857 : vector<8x128xf32>
    %859 = arith.mulf %748, %830 : vector<8x128xf32>
    %860 = arith.addf %858, %859 : vector<8x128xf32>
    %861 = arith.mulf %752, %832 : vector<8x128xf32>
    %862 = arith.addf %860, %861 : vector<8x128xf32>
    %863 = arith.mulf %862, %845 : vector<8x128xf32>
    %c0_192 = arith.constant 0 : index
    %864 = arith.index_cast %485 : i32 to index
    %865 = vector.load %arg18[%c0_192, %864] : memref<24x256xf32, #tpu.memory_space<vmem>>, vector<8x128xf32>
    %866 = arith.mulf %863, %865 : vector<8x128xf32>
    %cst_193 = arith.constant dense<0.000000e+00> : vector<128xf32>
    %867 = vector.multi_reduction <add>, %866, %cst_193 [0] : vector<8x128xf32> to vector<128xf32>
    %868 = vector.shape_cast %867 : vector<128xf32> to vector<1x128xf32>
    %c1_194 = arith.constant 1 : index
    %c0_195 = arith.constant 0 : index
    %869 = arith.index_cast %485 : i32 to index
    %870 = vector.load %arg16[%c1_194, %c0_195, %869] : memref<2x3x256xf32, #tpu.memory_space<vmem>>, vector<1x1x128xf32>
    %871 = vector.shape_cast %870 : vector<1x1x128xf32> to vector<1x128xf32>
    %872 = vector.shape_cast %868 : vector<1x128xf32> to vector<1x1x128xf32>
    tpu.vector_store %arg16[%c1_194, %c0_195, %869], %872 {strides = array<i32>} : memref<2x3x256xf32, #tpu.memory_space<vmem>>, vector<1x1x128xf32>,
    %c8_196 = arith.constant 8 : index
    %873 = arith.index_cast %485 : i32 to index
    %874 = vector.load %arg18[%c8_196, %873] : memref<24x256xf32, #tpu.memory_space<vmem>>, vector<8x128xf32>
    %875 = arith.mulf %863, %874 : vector<8x128xf32>
    %cst_197 = arith.constant dense<0.000000e+00> : vector<128xf32>
    %876 = vector.multi_reduction <add>, %875, %cst_197 [0] : vector<8x128xf32> to vector<128xf32>
    %877 = vector.shape_cast %876 : vector<128xf32> to vector<1x128xf32>
    %c1_198 = arith.constant 1 : index
    %c1_199 = arith.constant 1 : index
    %878 = arith.index_cast %485 : i32 to index
    %879 = vector.load %arg16[%c1_198, %c1_199, %878] : memref<2x3x256xf32, #tpu.memory_space<vmem>>, vector<1x1x128xf32>
    %880 = vector.shape_cast %879 : vector<1x1x128xf32> to vector<1x128xf32>
    %881 = vector.shape_cast %877 : vector<1x128xf32> to vector<1x1x128xf32>
    tpu.vector_store %arg16[%c1_198, %c1_199, %878], %881 {strides = array<i32>} : memref<2x3x256xf32, #tpu.memory_space<vmem>>, vector<1x1x128xf32>,
    %c16_200 = arith.constant 16 : index
    %882 = arith.index_cast %485 : i32 to index
    %883 = vector.load %arg18[%c16_200, %882] : memref<24x256xf32, #tpu.memory_space<vmem>>, vector<8x128xf32>
    %884 = arith.mulf %863, %883 : vector<8x128xf32>
    %cst_201 = arith.constant dense<0.000000e+00> : vector<128xf32>
    %885 = vector.multi_reduction <add>, %884, %cst_201 [0] : vector<8x128xf32> to vector<128xf32>
    %886 = vector.shape_cast %885 : vector<128xf32> to vector<1x128xf32>
    %c1_202 = arith.constant 1 : index
    %c2_203 = arith.constant 2 : index
    %887 = arith.index_cast %485 : i32 to index
    %888 = vector.load %arg16[%c1_202, %c2_203, %887] : memref<2x3x256xf32, #tpu.memory_space<vmem>>, vector<1x1x128xf32>
    %889 = vector.shape_cast %888 : vector<1x1x128xf32> to vector<1x128xf32>
    %890 = vector.shape_cast %886 : vector<1x128xf32> to vector<1x1x128xf32>
    tpu.vector_store %arg16[%c1_202, %c2_203, %887], %890 {strides = array<i32>} : memref<2x3x256xf32, #tpu.memory_space<vmem>>, vector<1x1x128xf32>,
    %c2_i32 = arith.constant 2 : i32
    return
  }
  func.func @transform_0(%arg0: i32) -> (i32, i32) {
    %c0_i32 = arith.constant 0 : i32
    %c0_i32_0 = arith.constant 0 : i32
    return %c0_i32, %arg0 : i32, i32
  }
  func.func @transform_1(%arg0: i32) -> (i32, i32, i32, i32) {
    %c0_i32 = arith.constant 0 : i32
    %c0_i32_0 = arith.constant 0 : i32
    %c0_i32_1 = arith.constant 0 : i32
    %c0_i32_2 = arith.constant 0 : i32
    return %c0_i32, %c0_i32_0, %c0_i32_1, %arg0 : i32, i32, i32, i32
  }
  func.func @transform_2(%arg0: i32) -> (i32, i32) {
    %c0_i32 = arith.constant 0 : i32
    %c0_i32_0 = arith.constant 0 : i32
    %c0_i32_1 = arith.constant 0 : i32
    return %c0_i32, %c0_i32_0 : i32, i32
  }
  func.func @transform_3(%arg0: i32) -> (i32, i32) {
    %c0_i32 = arith.constant 0 : i32
    %c0_i32_0 = arith.constant 0 : i32
    %c0_i32_1 = arith.constant 0 : i32
    return %c0_i32, %c0_i32_0 : i32, i32
  }
  func.func @transform_4(%arg0: i32) -> (i32, i32) {
    %c0_i32 = arith.constant 0 : i32
    %c0_i32_0 = arith.constant 0 : i32
    %c0_i32_1 = arith.constant 0 : i32
    return %c0_i32, %c0_i32_0 : i32, i32
  }
  func.func @transform_5(%arg0: i32) -> (i32, i32) {
    %c0_i32 = arith.constant 0 : i32
    %c0_i32_0 = arith.constant 0 : i32
    %c0_i32_1 = arith.constant 0 : i32
    return %c0_i32, %c0_i32_0 : i32, i32
  }
  func.func @transform_6(%arg0: i32) -> (i32, i32) {
    %c0_i32 = arith.constant 0 : i32
    %c0_i32_0 = arith.constant 0 : i32
    %c0_i32_1 = arith.constant 0 : i32
    return %c0_i32, %c0_i32_0 : i32, i32
  }
  func.func @transform_7(%arg0: i32) -> (i32, i32) {
    %c0_i32 = arith.constant 0 : i32
    %c0_i32_0 = arith.constant 0 : i32
    %c0_i32_1 = arith.constant 0 : i32
    return %c0_i32, %c0_i32_0 : i32, i32
  }
  func.func @transform_8(%arg0: i32) -> (i32, i32) {
    %c0_i32 = arith.constant 0 : i32
    %c0_i32_0 = arith.constant 0 : i32
    %c0_i32_1 = arith.constant 0 : i32
    return %c0_i32, %c0_i32_0 : i32, i32
  }
  func.func @transform_9(%arg0: i32) -> (i32, i32) {
    %c0_i32 = arith.constant 0 : i32
    %c0_i32_0 = arith.constant 0 : i32
    %c0_i32_1 = arith.constant 0 : i32
    return %c0_i32, %c0_i32_0 : i32, i32
  }
  func.func @transform_10(%arg0: i32) -> (i32, i32) {
    %c0_i32 = arith.constant 0 : i32
    %c0_i32_0 = arith.constant 0 : i32
    %c0_i32_1 = arith.constant 0 : i32
    return %c0_i32, %c0_i32_0 : i32, i32
  }
  func.func @transform_11(%arg0: i32) -> (i32, i32) {
    %c0_i32 = arith.constant 0 : i32
    %c0_i32_0 = arith.constant 0 : i32
    %c0_i32_1 = arith.constant 0 : i32
    return %c0_i32, %c0_i32_0 : i32, i32
  }
  func.func @transform_12(%arg0: i32) -> (i32, i32) {
    %c0_i32 = arith.constant 0 : i32
    %c0_i32_0 = arith.constant 0 : i32
    %c0_i32_1 = arith.constant 0 : i32
    return %c0_i32, %c0_i32_0 : i32, i32
  }
  func.func @transform_13(%arg0: i32) -> (i32, i32) {
    %c0_i32 = arith.constant 0 : i32
    %c0_i32_0 = arith.constant 0 : i32
    %c0_i32_1 = arith.constant 0 : i32
    return %c0_i32, %c0_i32_0 : i32, i32
  }
  func.func @transform_14(%arg0: i32) -> (i32, i32) {
    %c0_i32 = arith.constant 0 : i32
    %c0_i32_0 = arith.constant 0 : i32
    %c0_i32_1 = arith.constant 0 : i32
    return %c0_i32, %c0_i32_0 : i32, i32
  }
  func.func @transform_15(%arg0: i32) -> (i32, i32, i32) {
    %c0_i32 = arith.constant 0 : i32
    %c0_i32_0 = arith.constant 0 : i32
    %c0_i32_1 = arith.constant 0 : i32
    return %c0_i32, %c0_i32_0, %arg0 : i32, i32, i32
  }
}

</mosaic_0001>

<llo_original>
// kernel: squeeze.1
$region0: #{squeeze.1}
  %s0 = inlined_call_operand.vmem [shape: f32[1,3,32,32], index: 0, kind: input, shape index: {}]
  %s1 = inlined_call_operand.vmem [shape: f32[3,1024], index: 1, kind: output, shape index: {}]
  $region1: #{squeeze.1} parent=0
    #allocation0 [shape = 'u8[32768]{0}', space=vmem, size = 0x8000, scoped, tag = 'scoped mem for output reshape']
    %v2 = vld [vmem:[%s0] ss:$4 sm:$0xff]
    %vm3 = vcmask 261120
    %4 = vst.msk [vmem:[#allocation0] ss:$8 sm:$0xf] %vm3, %v2
    %5 = vst.msk [vmem:[#allocation0] ss:$8 sm:$0xf0] %vm3, %v2
    %s6 = scalar_lea.vmem %s0, 32
    %v7 = vld [vmem:[%s6] ss:$4 sm:$0xff]
    %vm8 = vcmask 261120
    %s9 = scalar_lea.vmem [#allocation0], 1
    %10 = vst.msk [vmem:[%s9] ss:$8 sm:$0xf] %vm8, %v7
    %s11 = scalar_lea.vmem [#allocation0], 1
    %12 = vst.msk [vmem:[%s11] ss:$8 sm:$0xf0] %vm8, %v7
    %s13 = scalar_lea.vmem %s0, 64
    %v14 = vld [vmem:[%s13] ss:$4 sm:$0xff]
    %vm15 = vcmask 261120
    %s16 = scalar_lea.vmem [#allocation0], 2
    %17 = vst.msk [vmem:[%s16] ss:$8 sm:$0xf] %vm15, %v14
    %s18 = scalar_lea.vmem [#allocation0], 2
    %19 = vst.msk [vmem:[%s18] ss:$8 sm:$0xf0] %vm15, %v14
    %s20 = scalar_lea.vmem %s0, 3
    %v21 = vld [vmem:[%s20] sm:$0x1]
    %s22 = scalar_lea.vmem %s0, 34
    %v23 = vld [vmem:[%s22] sm:$0x2]
    %vm24 = vcmask 1041409
    %v25 = vsel %vm24, %v23, %v21
    %s26 = scalar_lea.vmem %s0, 187
    %s27 = smov 12
    %v28 = vld [vmem:[%s26] ss:$-60 sm:%s27]
    %vm29 = vcmask 1043458
    %v30 = vsel %vm29, %v28, %v25
    %s31 = scalar_lea.vmem %s0, 35
    %v32 = vld [vmem:[%s31] sm:$0x10]
    %vm33 = vcmask 1044484
    %v34 = vsel %vm33, %v32, %v30
    %s35 = scalar_lea.vmem %s0, 371
    %s36 = smov 96
    %v37 = vld [vmem:[%s35] ss:$-60 sm:%s36]
    %vm38 = vcmask 1046533
    %v39 = vsel %vm38, %v37, %v34
    %s40 = scalar_lea.vmem %s0, 36
    %v41 = vld [vmem:[%s40] sm:$0x80]
    %vm42 = vcmask 1047559
    %v43 = vsel %vm42, %v41, %v39
    %44 = vrot.lane.b32.xlu0 %v43, 96
    %v45 = vpop.permute.xlu0 %44
    %vm46 = vcmask 1048320
    %47 = vst.msk [vmem:[#allocation0] sm:$0x7] %vm46, %v45
    %s48 = scalar_lea.vmem [#allocation0], 5
    %49 = vst.msk [vmem:[%s48] sm:$0x38] %vm46, %v45
    %s50 = scalar_lea.vmem [#allocation0], 10
    %51 = vst.msk [vmem:[%s50] sm:$0xc0] %vm46, %v45
    %s52 = scalar_lea.vmem %s0, 19
    %v53 = vld [vmem:[%s52] sm:$0x1]
    %s54 = scalar_lea.vmem %s0, 50
    %v55 = vld [vmem:[%s54] sm:$0x2]
    %vm56 = vcmask 1041409
    %v57 = vsel %vm56, %v55, %v53
    %s58 = scalar_lea.vmem %s0, 203
    %s59 = smov 12
    %v60 = vld [vmem:[%s58] ss:$-60 sm:%s59]
    %vm61 = vcmask 1043458
    %v62 = vsel %vm61, %v60, %v57
    %s63 = scalar_lea.vmem %s0, 51
    %v64 = vld [vmem:[%s63] sm:$0x10]
    %vm65 = vcmask 1044484
    %v66 = vsel %vm65, %v64, %v62
    %s67 = scalar_lea.vmem %s0, 387
    %s68 = smov 96
    %v69 = vld [vmem:[%s67] ss:$-60 sm:%s68]
    %vm70 = vcmask 1046533
    %v71 = vsel %vm70, %v69, %v66
    %s72 = scalar_lea.vmem %s0, 52
    %v73 = vld [vmem:[%s72] sm:$0x80]
    %vm74 = vcmask 1047559
    %v75 = vsel %vm74, %v73, %v71
    %76 = vrot.lane.b32.xlu0 %v75, 96
    %v77 = vpop.permute.xlu0 %76
    %vm78 = vcmask 1048320
    %s79 = scalar_lea.vmem [#allocation0], 32
    %80 = vst.msk [vmem:[%s79] sm:$0x7] %vm78, %v77
    %s81 = scalar_lea.vmem [#allocation0], 37
    %82 = vst.msk [vmem:[%s81] sm:$0x38] %vm78, %v77
    %s83 = scalar_lea.vmem [#allocation0], 42
    %84 = vst.msk [vmem:[%s83] sm:$0xc0] %vm78, %v77
    %s85 = scalar_lea.vmem %s0, 75
    %s86 = smov 3
    %v87 = vld [vmem:[%s85] ss:$-60 sm:%s86]
    %s88 = scalar_lea.vmem %s0, 45
    %v89 = vld [vmem:[%s88] sm:$0x4]
    %vm90 = vcmask 1042434
    %v91 = vsel %vm90, %v89, %v87
    %s92 = scalar_lea.vmem %s0, 43
    %s93 = smov 24
    %v94 = vld [vmem:[%s92] ss:$12 sm:%s93]
    %vm95 = vcmask 1044483
    %v96 = vsel %vm95, %v94, %v91
    %s97 = scalar_lea.vmem %s0, 26
    %v98 = vld [vmem:[%s97] sm:$0x20]
    %vm99 = vcmask 1045509
    %v100 = vsel %vm99, %v98, %v96
    %s101 = scalar_lea.vmem %s0, 57
    %v102 = vld [vmem:[%s101] sm:$0x40]
    %vm103 = vcmask 1046534
    %v104 = vsel %vm103, %v102, %v100
    %s105 = scalar_lea.vmem %s0, 88
    %v106 = vld [vmem:[%s105] sm:$0x80]
    %vm107 = vcmask 1047559
    %v108 = vsel %vm107, %v106, %v104
    %109 = vrot.lane.b32.xlu0 %v108, 96
    %v110 = vpop.permute.xlu0 %109
    %vm111 = vcmask 1048320
    %s112 = scalar_lea.vmem [#allocation0], 18
    %113 = vst.msk [vmem:[%s112] ss:$6 sm:$0x3] %vm111, %v110
    %s114 = scalar_lea.vmem [#allocation0], 23
    %115 = vst.msk [vmem:[%s114] sm:$0xc] %vm111, %v110
    %s116 = scalar_lea.vmem [#allocation0], 26
    %117 = vst.msk [vmem:[%s116] ss:$6 sm:$0x30] %vm111, %v110
    %s118 = scalar_lea.vmem [#allocation0], 51
    %119 = vst.msk [vmem:[%s118] sm:$0xc0] %vm111, %v110
    %s120 = scalar_lea.vmem %s0, 2
    %v121 = vld [vmem:[%s120] sm:$0x1]
    %s122 = scalar_lea.vmem %s0, 33
    %v123 = vld [vmem:[%s122] sm:$0x2]
    %vm124 = vcmask 1041409
    %v125 = vsel %vm124, %v123, %v121
    %s126 = scalar_lea.vmem %s0, 186
    %s127 = smov 12
    %v128 = vld [vmem:[%s126] ss:$-60 sm:%s127]
    %vm129 = vcmask 1043458
    %v130 = vsel %vm129, %v128, %v125
    %s131 = scalar_lea.vmem %s0, 34
    %v132 = vld [vmem:[%s131] sm:$0x10]
    %vm133 = vcmask 1044484
    %v134 = vsel %vm133, %v132, %v130
    %s135 = scalar_lea.vmem %s0, 370
    %s136 = smov 96
    %v137 = vld [vmem:[%s135] ss:$-60 sm:%s136]
    %vm138 = vcmask 1046533
    %v139 = vsel %vm138, %v137, %v134
    %s140 = scalar_lea.vmem %s0, 35
    %v141 = vld [vmem:[%s140] sm:$0x80]
    %vm142 = vcmask 1047559
    %v143 = vsel %vm142, %v141, %v139
    %144 = vrot.lane.b32.xlu0 %v143, 64
    %v145 = vpop.permute.xlu0 %144
    %vm146 = vcmask 785920
    %147 = vst.msk [vmem:[#allocation0] sm:$0x7] %vm146, %v145
    %s148 = scalar_lea.vmem [#allocation0], 5
    %149 = vst.msk [vmem:[%s148] sm:$0x38] %vm146, %v145
    %s150 = scalar_lea.vmem [#allocation0], 10
    %151 = vst.msk [vmem:[%s150] sm:$0xc0] %vm146, %v145
    %s152 = scalar_lea.vmem %s0, 18
    %v153 = vld [vmem:[%s152] sm:$0x1]
    %s154 = scalar_lea.vmem %s0, 49
    %v155 = vld [vmem:[%s154] sm:$0x2]
    %vm156 = vcmask 1041409
    %v157 = vsel %vm156, %v155, %v153
    %s158 = scalar_lea.vmem %s0, 202
    %s159 = smov 12
    %v160 = vld [vmem:[%s158] ss:$-60 sm:%s159]
    %vm161 = vcmask 1043458
    %v162 = vsel %vm161, %v160, %v157
    %s163 = scalar_lea.vmem %s0, 50
    %v164 = vld [vmem:[%s163] sm:$0x10]
    %vm165 = vcmask 1044484
    %v166 = vsel %vm165, %v164, %v162
    %s167 = scalar_lea.vmem %s0, 386
    %s168 = smov 96
    %v169 = vld [vmem:[%s167] ss:$-60 sm:%s168]
    %vm170 = vcmask 1046533
    %v171 = vsel %vm170, %v169, %v166
    %s172 = scalar_lea.vmem %s0, 51
    %v173 = vld [vmem:[%s172] sm:$0x80]
    %vm174 = vcmask 1047559
    %v175 = vsel %vm174, %v173, %v171
    %176 = vrot.lane.b32.xlu0 %v175, 64
    %v177 = vpop.permute.xlu0 %176
    %vm178 = vcmask 785920
    %s179 = scalar_lea.vmem [#allocation0], 32
    %180 = vst.msk [vmem:[%s179] sm:$0x7] %vm178, %v177
    %s181 = scalar_lea.vmem [#allocation0], 37
    %182 = vst.msk [vmem:[%s181] sm:$0x38] %vm178, %v177
    %s183 = scalar_lea.vmem [#allocation0], 42
    %184 = vst.msk [vmem:[%s183] sm:$0xc0] %vm178, %v177
    %s185 = scalar_lea.vmem %s0, 74
    %s186 = smov 3
    %v187 = vld [vmem:[%s185] ss:$-60 sm:%s186]
    %s188 = scalar_lea.vmem %s0, 44
    %v189 = vld [vmem:[%s188] sm:$0x4]
    %vm190 = vcmask 1042434
    %v191 = vsel %vm190, %v189, %v187
    %s192 = scalar_lea.vmem %s0, 42
    %s193 = smov 24
    %v194 = vld [vmem:[%s192] ss:$12 sm:%s193]
    %vm195 = vcmask 1044483
    %v196 = vsel %vm195, %v194, %v191
    %s197 = scalar_lea.vmem %s0, 25
    %v198 = vld [vmem:[%s197] sm:$0x20]
    %vm199 = vcmask 1045509
    %v200 = vsel %vm199, %v198, %v196
    %s201 = scalar_lea.vmem %s0, 56
    %v202 = vld [vmem:[%s201] sm:$0x40]
    %vm203 = vcmask 1046534
    %v204 = vsel %vm203, %v202, %v200
    %s205 = scalar_lea.vmem %s0, 87
    %v206 = vld [vmem:[%s205] sm:$0x80]
    %vm207 = vcmask 1047559
    %v208 = vsel %vm207, %v206, %v204
    %209 = vrot.lane.b32.xlu0 %v208, 64
    %v210 = vpop.permute.xlu0 %209
    %vm211 = vcmask 785920
    %s212 = scalar_lea.vmem [#allocation0], 18
    %213 = vst.msk [vmem:[%s212] ss:$6 sm:$0x3] %vm211, %v210
    %s214 = scalar_lea.vmem [#allocation0], 23
    %215 = vst.msk [vmem:[%s214] sm:$0xc] %vm211, %v210
    %s216 = scalar_lea.vmem [#allocation0], 26
    %217 = vst.msk [vmem:[%s216] ss:$6 sm:$0x30] %vm211, %v210
    %s218 = scalar_lea.vmem [#allocation0], 51
    %219 = vst.msk [vmem:[%s218] sm:$0xc0] %vm211, %v210
    %s220 = scalar_lea.vmem %s0, 1
    %v221 = vld [vmem:[%s220] sm:$0x1]
    %s222 = scalar_lea.vmem %s0, 32
    %v223 = vld [vmem:[%s222] sm:$0x2]
    %vm224 = vcmask 1041409
    %v225 = vsel %vm224, %v223, %v221
    %s226 = scalar_lea.vmem %s0, 185
    %s227 = smov 12
    %v228 = vld [vmem:[%s226] ss:$-60 sm:%s227]
    %vm229 = vcmask 1043458
    %v230 = vsel %vm229, %v228, %v225
    %s231 = scalar_lea.vmem %s0, 33
    %v232 = vld [vmem:[%s231] sm:$0x10]
    %vm233 = vcmask 1044484
    %v234 = vsel %vm233, %v232, %v230
    %s235 = scalar_lea.vmem %s0, 369
    %s236 = smov 96
    %v237 = vld [vmem:[%s235] ss:$-60 sm:%s236]
    %vm238 = vcmask 1046533
    %v239 = vsel %vm238, %v237, %v234
    %s240 = scalar_lea.vmem %s0, 34
    %v241 = vld [vmem:[%s240] sm:$0x80]
    %vm242 = vcmask 1047559
    %v243 = vsel %vm242, %v241, %v239
    %244 = vrot.lane.b32.xlu0 %v243, 32
    %v245 = vpop.permute.xlu0 %244
    %vm246 = vcmask 523520
    %247 = vst.msk [vmem:[#allocation0] sm:$0x7] %vm246, %v245
    %s248 = scalar_lea.vmem [#allocation0], 5
    %249 = vst.msk [vmem:[%s248] sm:$0x38] %vm246, %v245
    %s250 = scalar_lea.vmem [#allocation0], 10
    %251 = vst.msk [vmem:[%s250] sm:$0xc0] %vm246, %v245
    %s252 = scalar_lea.vmem %s0, 17
    %v253 = vld [vmem:[%s252] sm:$0x1]
    %s254 = scalar_lea.vmem %s0, 48
    %v255 = vld [vmem:[%s254] sm:$0x2]
    %vm256 = vcmask 1041409
    %v257 = vsel %vm256, %v255, %v253
    %s258 = scalar_lea.vmem %s0, 201
    %s259 = smov 12
    %v260 = vld [vmem:[%s258] ss:$-60 sm:%s259]
    %vm261 = vcmask 1043458
    %v262 = vsel %vm261, %v260, %v257
    %s263 = scalar_lea.vmem %s0, 49
    %v264 = vld [vmem:[%s263] sm:$0x10]
    %vm265 = vcmask 1044484
    %v266 = vsel %vm265, %v264, %v262
    %s267 = scalar_lea.vmem %s0, 385
    %s268 = smov 96
    %v269 = vld [vmem:[%s267] ss:$-60 sm:%s268]
    %vm270 = vcmask 1046533
    %v271 = vsel %vm270, %v269, %v266
    %s272 = scalar_lea.vmem %s0, 50
    %v273 = vld [vmem:[%s272] sm:$0x80]
    %vm274 = vcmask 1047559
    %v275 = vsel %vm274, %v273, %v271
    %276 = vrot.lane.b32.xlu0 %v275, 32
    %v277 = vpop.permute.xlu0 %276
    %vm278 = vcmask 523520
    %s279 = scalar_lea.vmem [#allocation0], 32
    %280 = vst.msk [vmem:[%s279] sm:$0x7] %vm278, %v277
    %s281 = scalar_lea.vmem [#allocation0], 37
    %282 = vst.msk [vmem:[%s281] sm:$0x38] %vm278, %v277
    %s283 = scalar_lea.vmem [#allocation0], 42
    %284 = vst.msk [vmem:[%s283] sm:$0xc0] %vm278, %v277
    %s285 = scalar_lea.vmem %s0, 73
    %s286 = smov 3
    %v287 = vld [vmem:[%s285] ss:$-60 sm:%s286]
    %s288 = scalar_lea.vmem %s0, 43
    %v289 = vld [vmem:[%s288] sm:$0x4]
    %vm290 = vcmask 1042434
    %v291 = vsel %vm290, %v289, %v287
    %s292 = scalar_lea.vmem %s0, 41
    %s293 = smov 24
    %v294 = vld [vmem:[%s292] ss:$12 sm:%s293]
    %vm295 = vcmask 1044483
    %v296 = vsel %vm295, %v294, %v291
    %s297 = scalar_lea.vmem %s0, 24
    %v298 = vld [vmem:[%s297] sm:$0x20]
    %vm299 = vcmask 1045509
    %v300 = vsel %vm299, %v298, %v296
    %s301 = scalar_lea.vmem %s0, 55
    %v302 = vld [vmem:[%s301] sm:$0x40]
    %vm303 = vcmask 1046534
    %v304 = vsel %vm303, %v302, %v300
    %s305 = scalar_lea.vmem %s0, 86
    %v306 = vld [vmem:[%s305] sm:$0x80]
    %vm307 = vcmask 1047559
    %v308 = vsel %vm307, %v306, %v304
    %309 = vrot.lane.b32.xlu0 %v308, 32
    %v310 = vpop.permute.xlu0 %309
    %vm311 = vcmask 523520
    %s312 = scalar_lea.vmem [#allocation0], 18
    %313 = vst.msk [vmem:[%s312] ss:$6 sm:$0x3] %vm311, %v310
    %s314 = scalar_lea.vmem [#allocation0], 23
    %315 = vst.msk [vmem:[%s314] sm:$0xc] %vm311, %v310
    %s316 = scalar_lea.vmem [#allocation0], 26
    %317 = vst.msk [vmem:[%s316] ss:$6 sm:$0x30] %vm311, %v310
    %s318 = scalar_lea.vmem [#allocation0], 51
    %319 = vst.msk [vmem:[%s318] sm:$0xc0] %vm311, %v310
    %s321 = sshllo.u32 0, 4
    %v323 = vld [vmem:[#allocation0] sm:%s321]
    %s324 = sshllo.u32 0, 4
    %325 = vst [vmem:[%s1] sm:%s324] %v323
    %s326 = scalar_lea.vmem [#allocation0], 8
    %v327 = vld [vmem:[%s326] sm:%s321]
    %s328 = sshllo.u32 0, 4
    %s329 = scalar_lea.vmem %s1, 4
    %330 = vst [vmem:[%s329] sm:%s328] %v327
    %s331 = scalar_lea.vmem [#allocation0], 16
    %v332 = vld [vmem:[%s331] sm:%s321]
    %s333 = sshllo.u32 0, 4
    %s334 = smul.addr 4, 2
    %s335 = scalar_lea.vmem %s1, %s334
    %336 = vst [vmem:[%s335] sm:%s333] %v332
    %s337 = scalar_lea.vmem [#allocation0], 24
    %v338 = vld [vmem:[%s337] sm:%s321]
    %s339 = sshllo.u32 0, 4
    %s340 = smul.addr 4, 3
    %s341 = scalar_lea.vmem %s1, %s340
    %342 = vst [vmem:[%s341] sm:%s339] %v338
    %s343 = scalar_lea.vmem [#allocation0], 32
    %v344 = vld [vmem:[%s343] sm:%s321]
    %s345 = sshllo.u32 0, 4
    %s346 = smul.addr 4, 4
    %s347 = scalar_lea.vmem %s1, %s346
    %348 = vst [vmem:[%s347] sm:%s345] %v344
    %s349 = scalar_lea.vmem [#allocation0], 40
    %v350 = vld [vmem:[%s349] sm:%s321]
    %s351 = sshllo.u32 0, 4
    %s352 = smul.addr 4, 5
    %s353 = scalar_lea.vmem %s1, %s352
    %354 = vst [vmem:[%s353] sm:%s351] %v350
    %s355 = scalar_lea.vmem [#allocation0], 48
    %v356 = vld [vmem:[%s355] sm:%s321]
    %s357 = sshllo.u32 0, 4
    %s358 = smul.addr 4, 6
    %s359 = scalar_lea.vmem %s1, %s358
    %360 = vst [vmem:[%s359] sm:%s357] %v356
    %s361 = scalar_lea.vmem [#allocation0], 56
    %v362 = vld [vmem:[%s361] sm:%s321]
    %s363 = sshllo.u32 0, 4
    %s364 = smul.addr 4, 7
    %s365 = scalar_lea.vmem %s1, %s364
    %366 = vst [vmem:[%s365] sm:%s363] %v362

// kernel: bi_upsampler_forward.1
$region0: #{bi_upsampler_forward.1}
  #allocation0 [shape = 'u32[]', space=smem, size = 0x4, offset = 0x4, fixed_abs, tag = 'smem constant byte address 0x4 - core index']
  #allocation1 [shape = 'u32[144,128]{1,0:T(1,128)}', space=vmem, size = 0x12000, scoped, tag = 'internal scratch']
  #allocation2 [shape = 'f32[72,256]{1,0:T(8,128)}', space=vmem, size = 0x12000, scoped, tag = 'scratch operand']
  #allocation3 [shape = 'f32[24,256]{1,0:T(8,128)}', space=vmem, size = 0x6000, scoped, tag = 'scratch operand']
  %s0 = inlined_call_operand.vmem [shape: f32[3,1024], index: 0, kind: input, shape index: {}]
  %s1 = inlined_call_operand.vmem [shape: bf16[2,9,8,1024], index: 1, kind: input, shape index: {}]
  %s2 = inlined_call_operand.vmem [shape: f32[8,1], index: 2, kind: input, shape index: {}]
  %s3 = inlined_call_operand.vmem [shape: f32[64,3], index: 3, kind: input, shape index: {}]
  %s4 = inlined_call_operand.vmem [shape: f32[64,1], index: 4, kind: input, shape index: {}]
  %s5 = inlined_call_operand.vmem [shape: bf16[256,64], index: 5, kind: input, shape index: {}]
  %s6 = inlined_call_operand.vmem [shape: f32[256,1], index: 6, kind: input, shape index: {}]
  %s7 = inlined_call_operand.vmem [shape: bf16[72,256], index: 7, kind: input, shape index: {}]
  %s8 = inlined_call_operand.vmem [shape: f32[72,1], index: 8, kind: input, shape index: {}]
  %s9 = inlined_call_operand.vmem [shape: f32[64,3], index: 9, kind: input, shape index: {}]
  %s10 = inlined_call_operand.vmem [shape: f32[64,1], index: 10, kind: input, shape index: {}]
  %s11 = inlined_call_operand.vmem [shape: bf16[256,64], index: 11, kind: input, shape index: {}]
  %s12 = inlined_call_operand.vmem [shape: f32[256,1], index: 12, kind: input, shape index: {}]
  %s13 = inlined_call_operand.vmem [shape: bf16[24,256], index: 13, kind: input, shape index: {}]
  %s14 = inlined_call_operand.vmem [shape: f32[24,1], index: 14, kind: input, shape index: {}]
  %s15 = inlined_call_operand.vmem [shape: f32[2,3,1024], index: 15, kind: output, shape index: {}]
  %s16 = sld [smem:[#allocation0]]
  $region165: #{bi_upsampler_forward.1} parent=0
    _
  %s18 = ssub.s32 1, %s16
  %s19 = scalar_select 0, %s18, %s16
  $region1: #{bi_upsampler_forward.1} parent=0
    #allocation4 [shape = 'u8[147456]{0}', space=vmem, size = 0x24000, scoped, tag = 'input window, operand 1']
    #allocation5 [shape = 'u8[16384]{0}', space=vmem, size = 0x4000, scoped, tag = 'output window, operand 0']
    loop: start=0, step=1, limit=6
    $region2: #{bi_upsampler_forward.1} parent=1 // loop_pre_header
      _
    $region3: #{bi_upsampler_forward.1} parent=1 // loop_header
      %s21 = sphi 0, %s25
      %p22 = scmp.ge.s32.totalorder %s21, 6
      %s31 = sphi 0, %s33
      %s34 = sphi 0, %s31
      %s35 = sphi 0, %s34
      %s51 = sphi 0, %s35
      %s57 = sphi 0, %s59
      %s60 = sphi 0, %s57
      %s61 = sphi 0, %s60
      %s77 = sphi 0, %s61
      %s81 = sphi 0, %s81
      %s83 = sphi 0, %s81
      %s84 = sphi 0, %s83
      %s98 = sphi 0, %s84
      %s102 = sphi 0, %s102
      %s104 = sphi 0, %s102
      %s105 = sphi 0, %s104
      %s119 = sphi 0, %s105
      %s123 = sphi 0, %s123
      %s125 = sphi 0, %s123
      %s126 = sphi 0, %s125
      %s140 = sphi 0, %s126
      %s144 = sphi 0, %s144
      %s146 = sphi 0, %s144
      %s147 = sphi 0, %s146
      %s161 = sphi 0, %s147
      %s165 = sphi 0, %s165
      %s167 = sphi 0, %s165
      %s168 = sphi 0, %s167
      %s182 = sphi 0, %s168
      %s186 = sphi 0, %s186
      %s188 = sphi 0, %s186
      %s189 = sphi 0, %s188
      %s203 = sphi 0, %s189
      %s207 = sphi 0, %s207
      %s209 = sphi 0, %s207
      %s210 = sphi 0, %s209
      %s224 = sphi 0, %s210
      %s228 = sphi 0, %s228
      %s230 = sphi 0, %s228
      %s231 = sphi 0, %s230
      %s245 = sphi 0, %s231
      %s249 = sphi 0, %s249
      %s251 = sphi 0, %s249
      %s252 = sphi 0, %s251
      %s266 = sphi 0, %s252
      %s270 = sphi 0, %s270
      %s272 = sphi 0, %s270
      %s273 = sphi 0, %s272
      %s287 = sphi 0, %s273
      %s291 = sphi 0, %s291
      %s293 = sphi 0, %s291
      %s294 = sphi 0, %s293
      %s308 = sphi 0, %s294
      %s312 = sphi 0, %s312
      %s314 = sphi 0, %s312
      %s315 = sphi 0, %s314
      %s329 = sphi 0, %s315
      %s333 = sphi 0, %s333
      %s335 = sphi 0, %s333
      %s336 = sphi 0, %s335
      %s350 = sphi 0, %s336
      %s356 = sphi 0, %s358
      %s359 = sphi 0, %s356
      %s360 = sphi 0, %s359
      %s376 = sphi 0, %s360
    $region4: #{bi_upsampler_forward.1} parent=1 // loop_header_branch
      %24 = sbr.rel (%p22) target = $region8
    $region5: #{bi_upsampler_forward.1} parent=1 // loop_body
      %s26 = ssub.s32 %s21, 1
      %s27 = ssub.s32 %s21, 2
      %s28 = sadd.s32 %s21, 1
      %s29 = ssub.s32 %s21, %s28
      %p30 = scmp.eq.s32.totalorder %s29, 0
      %s32 = sadd.s32 %s31, 1
      %s33 = scalar_select %p30, %s31, %s32
      %p36 = pneg %p30
      %p37 = scmp.eq.s32.totalorder %s21, 3
      %p38 = por %p36, %p37
      %p39 = scmp.ne.s32.totalorder %s31, %s34
      %p40 = scmp.eq.s32.totalorder %s21, 0
      %p41 = por %p39, %p40
      %p42 = scmp.ne.s32.totalorder %s31, %s34
      %p43 = scmp.eq.s32.totalorder %s26, 3
      %p44 = por %p42, %p43
      %p45 = scmp.ne.s32.totalorder %s34, %s35
      %p46 = scmp.eq.s32.totalorder %s26, 0
      %p47 = por %p45, %p46
      %p48 = scmp.ne.s32.totalorder %s34, %s35
      %p49 = scmp.eq.s32.totalorder %s27, 3
      %p50 = por %p48, %p49
      %p52 = scmp.ne.s32.totalorder %s35, %s51
      %p53 = scmp.eq.s32.totalorder %s27, 0
      %p54 = por %p52, %p53
      %s55 = ssub.s32 %s21, %s28
      %p56 = scmp.eq.s32.totalorder %s55, 0
      %s58 = sadd.s32 %s57, 1
      %s59 = scalar_select %p56, %s57, %s58
      %p62 = pneg %p56
      %p63 = scmp.eq.s32.totalorder %s21, 3
      %p64 = por %p62, %p63
      %p65 = scmp.ne.s32.totalorder %s57, %s60
      %p66 = scmp.eq.s32.totalorder %s21, 0
      %p67 = por %p65, %p66
      %p68 = scmp.ne.s32.totalorder %s57, %s60
      %p69 = scmp.eq.s32.totalorder %s26, 3
      %p70 = por %p68, %p69
      %p71 = scmp.ne.s32.totalorder %s60, %s61
      %p72 = scmp.eq.s32.totalorder %s26, 0
      %p73 = por %p71, %p72
      %p74 = scmp.ne.s32.totalorder %s60, %s61
      %p75 = scmp.eq.s32.totalorder %s27, 3
      %p76 = por %p74, %p75
      %p78 = scmp.ne.s32.totalorder %s61, %s77
      %p79 = scmp.eq.s32.totalorder %s27, 0
      %p80 = por %p78, %p79
      %s82 = sadd.s32 %s81, 1
      %p85 = scmp.eq.s32.totalorder %s21, 3
      %p86 = scmp.ne.s32.totalorder %s81, %s83
      %p87 = scmp.eq.s32.totalorder %s21, 0
      %p88 = por %p86, %p87
      %p89 = scmp.ne.s32.totalorder %s81, %s83
      %p90 = scmp.eq.s32.totalorder %s26, 3
      %p91 = por %p89, %p90
      %p92 = scmp.ne.s32.totalorder %s83, %s84
      %p93 = scmp.eq.s32.totalorder %s26, 0
      %p94 = por %p92, %p93
      %p95 = scmp.ne.s32.totalorder %s83, %s84
      %p96 = scmp.eq.s32.totalorder %s27, 3
      %p97 = por %p95, %p96
      %p99 = scmp.ne.s32.totalorder %s84, %s98
      %p100 = scmp.eq.s32.totalorder %s27, 0
      %p101 = por %p99, %p100
      %s103 = sadd.s32 %s102, 1
      %p106 = scmp.eq.s32.totalorder %s21, 3
      %p107 = scmp.ne.s32.totalorder %s102, %s104
      %p108 = scmp.eq.s32.totalorder %s21, 0
      %p109 = por %p107, %p108
      %p110 = scmp.ne.s32.totalorder %s102, %s104
      %p111 = scmp.eq.s32.totalorder %s26, 3
      %p112 = por %p110, %p111
      %p113 = scmp.ne.s32.totalorder %s104, %s105
      %p114 = scmp.eq.s32.totalorder %s26, 0
      %p115 = por %p113, %p114
      %p116 = scmp.ne.s32.totalorder %s104, %s105
      %p117 = scmp.eq.s32.totalorder %s27, 3
      %p118 = por %p116, %p117
      %p120 = scmp.ne.s32.totalorder %s105, %s119
      %p121 = scmp.eq.s32.totalorder %s27, 0
      %p122 = por %p120, %p121
      %s124 = sadd.s32 %s123, 1
      %p127 = scmp.eq.s32.totalorder %s21, 3
      %p128 = scmp.ne.s32.totalorder %s123, %s125
      %p129 = scmp.eq.s32.totalorder %s21, 0
      %p130 = por %p128, %p129
      %p131 = scmp.ne.s32.totalorder %s123, %s125
      %p132 = scmp.eq.s32.totalorder %s26, 3
      %p133 = por %p131, %p132
      %p134 = scmp.ne.s32.totalorder %s125, %s126
      %p135 = scmp.eq.s32.totalorder %s26, 0
      %p136 = por %p134, %p135
      %p137 = scmp.ne.s32.totalorder %s125, %s126
      %p138 = scmp.eq.s32.totalorder %s27, 3
      %p139 = por %p137, %p138
      %p141 = scmp.ne.s32.totalorder %s126, %s140
      %p142 = scmp.eq.s32.totalorder %s27, 0
      %p143 = por %p141, %p142
      %s145 = sadd.s32 %s144, 1
      %p148 = scmp.eq.s32.totalorder %s21, 3
      %p149 = scmp.ne.s32.totalorder %s144, %s146
      %p150 = scmp.eq.s32.totalorder %s21, 0
      %p151 = por %p149, %p150
      %p152 = scmp.ne.s32.totalorder %s144, %s146
      %p153 = scmp.eq.s32.totalorder %s26, 3
      %p154 = por %p152, %p153
      %p155 = scmp.ne.s32.totalorder %s146, %s147
      %p156 = scmp.eq.s32.totalorder %s26, 0
      %p157 = por %p155, %p156
      %p158 = scmp.ne.s32.totalorder %s146, %s147
      %p159 = scmp.eq.s32.totalorder %s27, 3
      %p160 = por %p158, %p159
      %p162 = scmp.ne.s32.totalorder %s147, %s161
      %p163 = scmp.eq.s32.totalorder %s27, 0
      %p164 = por %p162, %p163
      %s166 = sadd.s32 %s165, 1
      %p169 = scmp.eq.s32.totalorder %s21, 3
      %p170 = scmp.ne.s32.totalorder %s165, %s167
      %p171 = scmp.eq.s32.totalorder %s21, 0
      %p172 = por %p170, %p171
      %p173 = scmp.ne.s32.totalorder %s165, %s167
      %p174 = scmp.eq.s32.totalorder %s26, 3
      %p175 = por %p173, %p174
      %p176 = scmp.ne.s32.totalorder %s167, %s168
      %p177 = scmp.eq.s32.totalorder %s26, 0
      %p178 = por %p176, %p177
      %p179 = scmp.ne.s32.totalorder %s167, %s168
      %p180 = scmp.eq.s32.totalorder %s27, 3
      %p181 = por %p179, %p180
      %p183 = scmp.ne.s32.totalorder %s168, %s182
      %p184 = scmp.eq.s32.totalorder %s27, 0
      %p185 = por %p183, %p184
      %s187 = sadd.s32 %s186, 1
      %p190 = scmp.eq.s32.totalorder %s21, 3
      %p191 = scmp.ne.s32.totalorder %s186, %s188
      %p192 = scmp.eq.s32.totalorder %s21, 0
      %p193 = por %p191, %p192
      %p194 = scmp.ne.s32.totalorder %s186, %s188
      %p195 = scmp.eq.s32.totalorder %s26, 3
      %p196 = por %p194, %p195
      %p197 = scmp.ne.s32.totalorder %s188, %s189
      %p198 = scmp.eq.s32.totalorder %s26, 0
      %p199 = por %p197, %p198
      %p200 = scmp.ne.s32.totalorder %s188, %s189
      %p201 = scmp.eq.s32.totalorder %s27, 3
      %p202 = por %p200, %p201
      %p204 = scmp.ne.s32.totalorder %s189, %s203
      %p205 = scmp.eq.s32.totalorder %s27, 0
      %p206 = por %p204, %p205
      %s208 = sadd.s32 %s207, 1
      %p211 = scmp.eq.s32.totalorder %s21, 3
      %p212 = scmp.ne.s32.totalorder %s207, %s209
      %p213 = scmp.eq.s32.totalorder %s21, 0
      %p214 = por %p212, %p213
      %p215 = scmp.ne.s32.totalorder %s207, %s209
      %p216 = scmp.eq.s32.totalorder %s26, 3
      %p217 = por %p215, %p216
      %p218 = scmp.ne.s32.totalorder %s209, %s210
      %p219 = scmp.eq.s32.totalorder %s26, 0
      %p220 = por %p218, %p219
      %p221 = scmp.ne.s32.totalorder %s209, %s210
      %p222 = scmp.eq.s32.totalorder %s27, 3
      %p223 = por %p221, %p222
      %p225 = scmp.ne.s32.totalorder %s210, %s224
      %p226 = scmp.eq.s32.totalorder %s27, 0
      %p227 = por %p225, %p226
      %s229 = sadd.s32 %s228, 1
      %p232 = scmp.eq.s32.totalorder %s21, 3
      %p233 = scmp.ne.s32.totalorder %s228, %s230
      %p234 = scmp.eq.s32.totalorder %s21, 0
      %p235 = por %p233, %p234
      %p236 = scmp.ne.s32.totalorder %s228, %s230
      %p237 = scmp.eq.s32.totalorder %s26, 3
      %p238 = por %p236, %p237
      %p239 = scmp.ne.s32.totalorder %s230, %s231
      %p240 = scmp.eq.s32.totalorder %s26, 0
      %p241 = por %p239, %p240
      %p242 = scmp.ne.s32.totalorder %s230, %s231
      %p243 = scmp.eq.s32.totalorder %s27, 3
      %p244 = por %p242, %p243
      %p246 = scmp.ne.s32.totalorder %s231, %s245
      %p247 = scmp.eq.s32.totalorder %s27, 0
      %p248 = por %p246, %p247
      %s250 = sadd.s32 %s249, 1
      %p253 = scmp.eq.s32.totalorder %s21, 3
      %p254 = scmp.ne.s32.totalorder %s249, %s251
      %p255 = scmp.eq.s32.totalorder %s21, 0
      %p256 = por %p254, %p255
      %p257 = scmp.ne.s32.totalorder %s249, %s251
      %p258 = scmp.eq.s32.totalorder %s26, 3
      %p259 = por %p257, %p258
      %p260 = scmp.ne.s32.totalorder %s251, %s252
      %p261 = scmp.eq.s32.totalorder %s26, 0
      %p262 = por %p260, %p261
      %p263 = scmp.ne.s32.totalorder %s251, %s252
      %p264 = scmp.eq.s32.totalorder %s27, 3
      %p265 = por %p263, %p264
      %p267 = scmp.ne.s32.totalorder %s252, %s266
      %p268 = scmp.eq.s32.totalorder %s27, 0
      %p269 = por %p267, %p268
      %s271 = sadd.s32 %s270, 1
      %p274 = scmp.eq.s32.totalorder %s21, 3
      %p275 = scmp.ne.s32.totalorder %s270, %s272
      %p276 = scmp.eq.s32.totalorder %s21, 0
      %p277 = por %p275, %p276
      %p278 = scmp.ne.s32.totalorder %s270, %s272
      %p279 = scmp.eq.s32.totalorder %s26, 3
      %p280 = por %p278, %p279
      %p281 = scmp.ne.s32.totalorder %s272, %s273
      %p282 = scmp.eq.s32.totalorder %s26, 0
      %p283 = por %p281, %p282
      %p284 = scmp.ne.s32.totalorder %s272, %s273
      %p285 = scmp.eq.s32.totalorder %s27, 3
      %p286 = por %p284, %p285
      %p288 = scmp.ne.s32.totalorder %s273, %s287
      %p289 = scmp.eq.s32.totalorder %s27, 0
      %p290 = por %p288, %p289
      %s292 = sadd.s32 %s291, 1
      %p295 = scmp.eq.s32.totalorder %s21, 3
      %p296 = scmp.ne.s32.totalorder %s291, %s293
      %p297 = scmp.eq.s32.totalorder %s21, 0
      %p298 = por %p296, %p297
      %p299 = scmp.ne.s32.totalorder %s291, %s293
      %p300 = scmp.eq.s32.totalorder %s26, 3
      %p301 = por %p299, %p300
      %p302 = scmp.ne.s32.totalorder %s293, %s294
      %p303 = scmp.eq.s32.totalorder %s26, 0
      %p304 = por %p302, %p303
      %p305 = scmp.ne.s32.totalorder %s293, %s294
      %p306 = scmp.eq.s32.totalorder %s27, 3
      %p307 = por %p305, %p306
      %p309 = scmp.ne.s32.totalorder %s294, %s308
      %p310 = scmp.eq.s32.totalorder %s27, 0
      %p311 = por %p309, %p310
      %s313 = sadd.s32 %s312, 1
      %p316 = scmp.eq.s32.totalorder %s21, 3
      %p317 = scmp.ne.s32.totalorder %s312, %s314
      %p318 = scmp.eq.s32.totalorder %s21, 0
      %p319 = por %p317, %p318
      %p320 = scmp.ne.s32.totalorder %s312, %s314
      %p321 = scmp.eq.s32.totalorder %s26, 3
      %p322 = por %p320, %p321
      %p323 = scmp.ne.s32.totalorder %s314, %s315
      %p324 = scmp.eq.s32.totalorder %s26, 0
      %p325 = por %p323, %p324
      %p326 = scmp.ne.s32.totalorder %s314, %s315
      %p327 = scmp.eq.s32.totalorder %s27, 3
      %p328 = por %p326, %p327
      %p330 = scmp.ne.s32.totalorder %s315, %s329
      %p331 = scmp.eq.s32.totalorder %s27, 0
      %p332 = por %p330, %p331
      %s334 = sadd.s32 %s333, 1
      %p337 = scmp.eq.s32.totalorder %s21, 3
      %p338 = scmp.ne.s32.totalorder %s333, %s335
      %p339 = scmp.eq.s32.totalorder %s21, 0
      %p340 = por %p338, %p339
      %p341 = scmp.ne.s32.totalorder %s333, %s335
      %p342 = scmp.eq.s32.totalorder %s26, 3
      %p343 = por %p341, %p342
      %p344 = scmp.ne.s32.totalorder %s335, %s336
      %p345 = scmp.eq.s32.totalorder %s26, 0
      %p346 = por %p344, %p345
      %p347 = scmp.ne.s32.totalorder %s335, %s336
      %p348 = scmp.eq.s32.totalorder %s27, 3
      %p349 = por %p347, %p348
      %p351 = scmp.ne.s32.totalorder %s336, %s350
      %p352 = scmp.eq.s32.totalorder %s27, 0
      %p353 = por %p351, %p352
      %s354 = ssub.s32 %s21, %s28
      %p355 = scmp.eq.s32.totalorder %s354, 0
      %s357 = sadd.s32 %s356, 1
      %s358 = scalar_select %p355, %s356, %s357
      %p361 = pneg %p355
      %p362 = scmp.eq.s32.totalorder %s21, 3
      %p363 = por %p361, %p362
      %p364 = scmp.ne.s32.totalorder %s356, %s359
      %p365 = scmp.eq.s32.totalorder %s21, 0
      %p366 = por %p364, %p365
      %p367 = scmp.ne.s32.totalorder %s356, %s359
      %p368 = scmp.eq.s32.totalorder %s26, 3
      %p369 = por %p367, %p368
      %p370 = scmp.ne.s32.totalorder %s359, %s360
      %p371 = scmp.eq.s32.totalorder %s26, 0
      %p372 = por %p370, %p371
      %p373 = scmp.ne.s32.totalorder %s359, %s360
      %p374 = scmp.eq.s32.totalorder %s27, 3
      %p375 = por %p373, %p374
      %p377 = scmp.ne.s32.totalorder %s360, %s376
      %p378 = scmp.eq.s32.totalorder %s27, 0
      %p379 = por %p377, %p378
      %p380 = scmp.le.s32.totalorder 1, %s21
      %p381 = scmp.lt.s32.totalorder %s21, 5
      %p382 = pnand %p380, %p381
      %p383 = pneg %p382
      // Predicated region
      $region9: #{bi_upsampler_forward.1} parent=5 // pred_check
        _
      $region10: #{bi_upsampler_forward.1} parent=5 // pred_check_branch
        %385 = sbr.rel (%p382) target = $region12
      $region11: #{bi_upsampler_forward.1} parent=5 // pred_region
        %s386 = ssub.s32 %s21, 1
        // Predicated region
        $region13: #{bi_upsampler_forward.1} parent=11 // pred_check
          %p387 = pneg %p94
        $region14: #{bi_upsampler_forward.1} parent=11 // pred_check_branch
          %389 = sbr.rel (%p387) target = $region16
        $region15: #{bi_upsampler_forward.1} parent=11 // pred_region
          _
        $region16: #{bi_upsampler_forward.1} parent=11 // pred_fallthru
          _
        // Predicated region
        $region17: #{bi_upsampler_forward.1} parent=11 // pred_check
          %p390 = pneg %p115
        $region18: #{bi_upsampler_forward.1} parent=11 // pred_check_branch
          %392 = sbr.rel (%p390) target = $region20
        $region19: #{bi_upsampler_forward.1} parent=11 // pred_region
          _
        $region20: #{bi_upsampler_forward.1} parent=11 // pred_fallthru
          _
        // Predicated region
        $region21: #{bi_upsampler_forward.1} parent=11 // pred_check
          %p393 = pneg %p136
        $region22: #{bi_upsampler_forward.1} parent=11 // pred_check_branch
          %395 = sbr.rel (%p393) target = $region24
        $region23: #{bi_upsampler_forward.1} parent=11 // pred_region
          _
        $region24: #{bi_upsampler_forward.1} parent=11 // pred_fallthru
          _
        // Predicated region
        $region25: #{bi_upsampler_forward.1} parent=11 // pred_check
          %p396 = pneg %p157
        $region26: #{bi_upsampler_forward.1} parent=11 // pred_check_branch
          %398 = sbr.rel (%p396) target = $region28
        $region27: #{bi_upsampler_forward.1} parent=11 // pred_region
          _
        $region28: #{bi_upsampler_forward.1} parent=11 // pred_fallthru
          _
        // Predicated region
        $region29: #{bi_upsampler_forward.1} parent=11 // pred_check
          %p399 = pneg %p178
        $region30: #{bi_upsampler_forward.1} parent=11 // pred_check_branch
          %401 = sbr.rel (%p399) target = $region32
        $region31: #{bi_upsampler_forward.1} parent=11 // pred_region
          _
        $region32: #{bi_upsampler_forward.1} parent=11 // pred_fallthru
          _
        // Predicated region
        $region33: #{bi_upsampler_forward.1} parent=11 // pred_check
          %p402 = pneg %p199
        $region34: #{bi_upsampler_forward.1} parent=11 // pred_check_branch
          %404 = sbr.rel (%p402) target = $region36
        $region35: #{bi_upsampler_forward.1} parent=11 // pred_region
          _
        $region36: #{bi_upsampler_forward.1} parent=11 // pred_fallthru
          _
        // Predicated region
        $region37: #{bi_upsampler_forward.1} parent=11 // pred_check
          %p405 = pneg %p220
        $region38: #{bi_upsampler_forward.1} parent=11 // pred_check_branch
          %407 = sbr.rel (%p405) target = $region40
        $region39: #{bi_upsampler_forward.1} parent=11 // pred_region
          _
        $region40: #{bi_upsampler_forward.1} parent=11 // pred_fallthru
          _
        // Predicated region
        $region41: #{bi_upsampler_forward.1} parent=11 // pred_check
          %p408 = pneg %p241
        $region42: #{bi_upsampler_forward.1} parent=11 // pred_check_branch
          %410 = sbr.rel (%p408) target = $region44
        $region43: #{bi_upsampler_forward.1} parent=11 // pred_region
          _
        $region44: #{bi_upsampler_forward.1} parent=11 // pred_fallthru
          _
        // Predicated region
        $region45: #{bi_upsampler_forward.1} parent=11 // pred_check
          %p411 = pneg %p262
        $region46: #{bi_upsampler_forward.1} parent=11 // pred_check_branch
          %413 = sbr.rel (%p411) target = $region48
        $region47: #{bi_upsampler_forward.1} parent=11 // pred_region
          _
        $region48: #{bi_upsampler_forward.1} parent=11 // pred_fallthru
          _
        // Predicated region
        $region49: #{bi_upsampler_forward.1} parent=11 // pred_check
          %p414 = pneg %p283
        $region50: #{bi_upsampler_forward.1} parent=11 // pred_check_branch
          %416 = sbr.rel (%p414) target = $region52
        $region51: #{bi_upsampler_forward.1} parent=11 // pred_region
          _
        $region52: #{bi_upsampler_forward.1} parent=11 // pred_fallthru
          _
        // Predicated region
        $region53: #{bi_upsampler_forward.1} parent=11 // pred_check
          %p417 = pneg %p304
        $region54: #{bi_upsampler_forward.1} parent=11 // pred_check_branch
          %419 = sbr.rel (%p417) target = $region56
        $region55: #{bi_upsampler_forward.1} parent=11 // pred_region
          _
        $region56: #{bi_upsampler_forward.1} parent=11 // pred_fallthru
          _
        // Predicated region
        $region57: #{bi_upsampler_forward.1} parent=11 // pred_check
          %p420 = pneg %p325
        $region58: #{bi_upsampler_forward.1} parent=11 // pred_check_branch
          %422 = sbr.rel (%p420) target = $region60
        $region59: #{bi_upsampler_forward.1} parent=11 // pred_region
          _
        $region60: #{bi_upsampler_forward.1} parent=11 // pred_fallthru
          _
        // Predicated region
        $region61: #{bi_upsampler_forward.1} parent=11 // pred_check
          %p423 = pneg %p346
        $region62: #{bi_upsampler_forward.1} parent=11 // pred_check_branch
          %425 = sbr.rel (%p423) target = $region64
        $region63: #{bi_upsampler_forward.1} parent=11 // pred_region
          _
        $region64: #{bi_upsampler_forward.1} parent=11 // pred_fallthru
          _
      $region12: #{bi_upsampler_forward.1} parent=5 // pred_fallthru
        _
      %p426 = scmp.lt.s32.totalorder %s21, 4
      // Predicated region
      $region65: #{bi_upsampler_forward.1} parent=5 // pred_check
        %p427 = pneg %p426
      $region66: #{bi_upsampler_forward.1} parent=5 // pred_check_branch
        %429 = sbr.rel (%p427) target = $region68
      $region67: #{bi_upsampler_forward.1} parent=5 // pred_region
        // Predicated region
        $region69: #{bi_upsampler_forward.1} parent=67 // pred_check
          %p430 = pneg %p41
        $region70: #{bi_upsampler_forward.1} parent=67 // pred_check_branch
          %432 = sbr.rel (%p430) target = $region72
        $region71: #{bi_upsampler_forward.1} parent=67 // pred_region
          %s433 = smul.u32 2, %s21
          %p434 = scmp.lt.s32.totalorder %s433, 7
          %s435 = scalar_select %p434, %s433, 7
          %s436 = smul.addr %s435, 4
          %s437 = scalar_lea.vmem %s0, %s436
          %s438 = smul.u32 2, %s21
        $region72: #{bi_upsampler_forward.1} parent=67 // pred_fallthru
          _
        // Predicated region
        $region73: #{bi_upsampler_forward.1} parent=67 // pred_check
          %p439 = pneg %p67
        $region74: #{bi_upsampler_forward.1} parent=67 // pred_check_branch
          %441 = sbr.rel (%p439) target = $region76
        $region75: #{bi_upsampler_forward.1} parent=67 // pred_region
          %s442 = sand.u32 %s57, 1
          %s443 = sand.u32 %s57, 1
          %s444 = smul.addr %s443, 144
          %s445 = scalar_lea.vmem [#allocation4], %s444
          %s446 = smul.u32 2, %s21
          %s447 = smul.addr %s446, 4
          %s448 = scalar_lea.vmem %s1, %s447
          // Predicated region
          $region77: #{bi_upsampler_forward.1} parent=75 // pred_check
            _
          $region78: #{bi_upsampler_forward.1} parent=75 // pred_check_branch
            %450 = sbr.rel (0) target = $region80
          $region79: #{bi_upsampler_forward.1} parent=75 // pred_region
            // Predicated region
            $region81: #{bi_upsampler_forward.1} parent=79 // pred_check
              _
            $region82: #{bi_upsampler_forward.1} parent=79 // pred_check_branch
              %452 = sbr.rel (0) target = $region84
            $region83: #{bi_upsampler_forward.1} parent=79 // pred_region
              // Predicated region
              $region96: #{bi_upsampler_forward.1} parent=83 // pred_check
                _
              $region97: #{bi_upsampler_forward.1} parent=83 // pred_check_branch
                %501 = sbr.rel (0) target = $region99
              $region98: #{bi_upsampler_forward.1} parent=83 // pred_region
                loop: start=0, step=1, limit=1
                $region100: #{bi_upsampler_forward.1} parent=98 // loop_pre_header
                  _
                $region101: #{bi_upsampler_forward.1} parent=98 // loop_header
                  %s503 = sphi 0, %s507
                  %p504 = scmp.ge.s32.totalorder %s503, 1
                  %s508 = sphi %s448, %s448
                  %s509 = sphi %s445, %s445
                $region102: #{bi_upsampler_forward.1} parent=98 // loop_header_branch
                  %506 = sbr.rel (%p504) target = $region106
                $region103: #{bi_upsampler_forward.1} parent=98 // loop_body
                  %v510 = vld [vmem:[%s508] sm:$0xff]
                  %511 = vst [vmem:[%s509] sm:$0xff] %v510
                  %v512 = vld [vmem:[%s508 + $0x20] sm:$0xff]
                  %513 = vst [vmem:[%s509 + $0x8] sm:$0xff] %v512
                  %v514 = vld [vmem:[%s508 + $0x40] sm:$0xff]
                  %515 = vst [vmem:[%s509 + $0x10] sm:$0xff] %v514
                  %v516 = vld [vmem:[%s508 + $0x60] sm:$0xff]
                  %517 = vst [vmem:[%s509 + $0x18] sm:$0xff] %v516
                  %v518 = vld [vmem:[%s508 + $0x80] sm:$0xff]
                  %519 = vst [vmem:[%s509 + $0x20] sm:$0xff] %v518
                  %v520 = vld [vmem:[%s508 + $0xa0] sm:$0xff]
                  %521 = vst [vmem:[%s509 + $0x28] sm:$0xff] %v520
                  %v522 = vld [vmem:[%s508 + $0xc0] sm:$0xff]
                  %523 = vst [vmem:[%s509 + $0x30] sm:$0xff] %v522
                  %v524 = vld [vmem:[%s508 + $0xe0] sm:$0xff]
                  %525 = vst [vmem:[%s509 + $0x38] sm:$0xff] %v524
                  %v526 = vld [vmem:[%s508 + $0x100] sm:$0xff]
                  %527 = vst [vmem:[%s509 + $0x40] sm:$0xff] %v526
                  %v528 = vld [vmem:[%s508 + $0x120] sm:$0xff]
                  %529 = vst [vmem:[%s509 + $0x48] sm:$0xff] %v528
                  %v530 = vld [vmem:[%s508 + $0x140] sm:$0xff]
                  %531 = vst [vmem:[%s509 + $0x50] sm:$0xff] %v530
                  %v532 = vld [vmem:[%s508 + $0x160] sm:$0xff]
                  %533 = vst [vmem:[%s509 + $0x58] sm:$0xff] %v532
                  %v534 = vld [vmem:[%s508 + $0x180] sm:$0xff]
                  %535 = vst [vmem:[%s509 + $0x60] sm:$0xff] %v534
                  %v536 = vld [vmem:[%s508 + $0x1a0] sm:$0xff]
                  %537 = vst [vmem:[%s509 + $0x68] sm:$0xff] %v536
                  %v538 = vld [vmem:[%s508 + $0x1c0] sm:$0xff]
                  %539 = vst [vmem:[%s509 + $0x70] sm:$0xff] %v538
                  %v540 = vld [vmem:[%s508 + $0x1e0] sm:$0xff]
                  %541 = vst [vmem:[%s509 + $0x78] sm:$0xff] %v540
                  %v542 = vld [vmem:[%s508 + $0x200] sm:$0xff]
                  %543 = vst [vmem:[%s509 + $0x80] sm:$0xff] %v542
                  %v544 = vld [vmem:[%s508 + $0x220] sm:$0xff]
                  %545 = vst [vmem:[%s509 + $0x88] sm:$0xff] %v544
                $region104: #{bi_upsampler_forward.1} parent=98 // loop_footer
                  %s507 = sadd.s32 1, %s503
                $region105: #{bi_upsampler_forward.1} parent=98 // loop_footer_branch
                  %502 = sbr.rel target = $region101
                $region106: #{bi_upsampler_forward.1} parent=98 // loop_exit
                  _
              $region99: #{bi_upsampler_forward.1} parent=83 // pred_fallthru
                _
              // Predicated region
              $region107: #{bi_upsampler_forward.1} parent=83 // pred_check
                _
              $region108: #{bi_upsampler_forward.1} parent=83 // pred_check_branch
                %547 = sbr.rel target = $region110
              $region109: #{bi_upsampler_forward.1} parent=83 // pred_region
                _
              $region110: #{bi_upsampler_forward.1} parent=83 // pred_fallthru
                _
            $region84: #{bi_upsampler_forward.1} parent=79 // pred_fallthru
              _
            // Predicated region
            $region85: #{bi_upsampler_forward.1} parent=79 // pred_check
              _
            $region86: #{bi_upsampler_forward.1} parent=79 // pred_check_branch
              %454 = sbr.rel target = $region88
            $region87: #{bi_upsampler_forward.1} parent=79 // pred_region
              loop: start=0, step=1, limit=1
              $region89: #{bi_upsampler_forward.1} parent=87 // loop_pre_header
                _
              $region90: #{bi_upsampler_forward.1} parent=87 // loop_header
                %s457 = sphi 0, %s461
                %p458 = scmp.ge.s32.totalorder %s457, 1
                %s462 = sphi %s448, %s448
                %s463 = sphi %s445, %s445
              $region91: #{bi_upsampler_forward.1} parent=87 // loop_header_branch
                %460 = sbr.rel (%p458) target = $region95
              $region92: #{bi_upsampler_forward.1} parent=87 // loop_body
                %v464 = vld [vmem:[%s462] sm:$0xff]
                %465 = vst [vmem:[%s463] sm:$0xff] %v464
                %v466 = vld [vmem:[%s462 + $0x20] sm:$0xff]
                %467 = vst [vmem:[%s463 + $0x8] sm:$0xff] %v466
                %v468 = vld [vmem:[%s462 + $0x40] sm:$0xff]
                %469 = vst [vmem:[%s463 + $0x10] sm:$0xff] %v468
                %v470 = vld [vmem:[%s462 + $0x60] sm:$0xff]
                %471 = vst [vmem:[%s463 + $0x18] sm:$0xff] %v470
                %v472 = vld [vmem:[%s462 + $0x80] sm:$0xff]
                %473 = vst [vmem:[%s463 + $0x20] sm:$0xff] %v472
                %v474 = vld [vmem:[%s462 + $0xa0] sm:$0xff]
                %475 = vst [vmem:[%s463 + $0x28] sm:$0xff] %v474
                %v476 = vld [vmem:[%s462 + $0xc0] sm:$0xff]
                %477 = vst [vmem:[%s463 + $0x30] sm:$0xff] %v476
                %v478 = vld [vmem:[%s462 + $0xe0] sm:$0xff]
                %479 = vst [vmem:[%s463 + $0x38] sm:$0xff] %v478
                %v480 = vld [vmem:[%s462 + $0x100] sm:$0xff]
                %481 = vst [vmem:[%s463 + $0x40] sm:$0xff] %v480
                %v482 = vld [vmem:[%s462 + $0x120] sm:$0xff]
                %483 = vst [vmem:[%s463 + $0x48] sm:$0xff] %v482
                %v484 = vld [vmem:[%s462 + $0x140] sm:$0xff]
                %485 = vst [vmem:[%s463 + $0x50] sm:$0xff] %v484
                %v486 = vld [vmem:[%s462 + $0x160] sm:$0xff]
                %487 = vst [vmem:[%s463 + $0x58] sm:$0xff] %v486
                %v488 = vld [vmem:[%s462 + $0x180] sm:$0xff]
                %489 = vst [vmem:[%s463 + $0x60] sm:$0xff] %v488
                %v490 = vld [vmem:[%s462 + $0x1a0] sm:$0xff]
                %491 = vst [vmem:[%s463 + $0x68] sm:$0xff] %v490
                %v492 = vld [vmem:[%s462 + $0x1c0] sm:$0xff]
                %493 = vst [vmem:[%s463 + $0x70] sm:$0xff] %v492
                %v494 = vld [vmem:[%s462 + $0x1e0] sm:$0xff]
                %495 = vst [vmem:[%s463 + $0x78] sm:$0xff] %v494
                %v496 = vld [vmem:[%s462 + $0x200] sm:$0xff]
                %497 = vst [vmem:[%s463 + $0x80] sm:$0xff] %v496
                %v498 = vld [vmem:[%s462 + $0x220] sm:$0xff]
                %499 = vst [vmem:[%s463 + $0x88] sm:$0xff] %v498
              $region93: #{bi_upsampler_forward.1} parent=87 // loop_footer
                %s461 = sadd.s32 1, %s457
              $region94: #{bi_upsampler_forward.1} parent=87 // loop_footer_branch
                %456 = sbr.rel target = $region90
              $region95: #{bi_upsampler_forward.1} parent=87 // loop_exit
                _
            $region88: #{bi_upsampler_forward.1} parent=79 // pred_fallthru
              _
          $region80: #{bi_upsampler_forward.1} parent=75 // pred_fallthru
            _
          %548 = vnop
        $region76: #{bi_upsampler_forward.1} parent=67 // pred_fallthru
          _
      $region68: #{bi_upsampler_forward.1} parent=5 // pred_fallthru
        _
      %p549 = scmp.le.s32.totalorder 1, %s21
      %p550 = scmp.lt.s32.totalorder %s21, 5
      %p551 = pnand %p549, %p550
      %p552 = pneg %p551
      // Predicated region
      $region111: #{bi_upsampler_forward.1} parent=5 // pred_check
        _
      $region112: #{bi_upsampler_forward.1} parent=5 // pred_check_branch
        %554 = sbr.rel (%p551) target = $region114
      $region113: #{bi_upsampler_forward.1} parent=5 // pred_region
        %s555 = ssub.s32 %s21, 1
        %s556 = sand.u32 %s60, 1
        %s557 = sand.u32 %s60, 1
        %s558 = smul.addr %s557, 144
        %s559 = scalar_lea.vmem [#allocation4], %s558
        // Predicated region
        $region115: #{bi_upsampler_forward.1} parent=113 // pred_check
          %p560 = pneg %p73
        $region116: #{bi_upsampler_forward.1} parent=113 // pred_check_branch
          %562 = sbr.rel (%p560) target = $region118
        $region117: #{bi_upsampler_forward.1} parent=113 // pred_region
          _
        $region118: #{bi_upsampler_forward.1} parent=113 // pred_fallthru
          _
        %s563 = smul.u32 2, %s26
        %p564 = scmp.lt.s32.totalorder %s563, 7
        %s565 = scalar_select %p564, %s563, 7
        %s566 = smul.addr %s565, 4
        %s567 = scalar_lea.vmem %s0, %s566
        %p568 = pneg %p47
        %p569 = pneg %p44
        %s570 = sand.u32 %s60, 1
        %s571 = sand.u32 %s60, 1
        %s572 = smul.addr %s571, 144
        %s573 = scalar_lea.vmem [#allocation4], %s572
        %p574 = pneg %p73
        %p575 = pneg %p70
        %p576 = pneg %p94
        %p577 = pneg %p91
        %p578 = pneg %p115
        %p579 = pneg %p112
        %p580 = pneg %p136
        %p581 = pneg %p133
        %p582 = pneg %p157
        %p583 = pneg %p154
        %p584 = pneg %p178
        %p585 = pneg %p175
        %p586 = pneg %p199
        %p587 = pneg %p196
        %p588 = pneg %p220
        %p589 = pneg %p217
        %p590 = pneg %p241
        %p591 = pneg %p238
        %p592 = pneg %p262
        %p593 = pneg %p259
        %p594 = pneg %p283
        %p595 = pneg %p280
        %p596 = pneg %p304
        %p597 = pneg %p301
        %p598 = pneg %p325
        %p599 = pneg %p322
        %p600 = pneg %p346
        %p601 = pneg %p343
        %p602 = pneg %p372
        %p603 = pneg %p369
        %s604 = sand.u32 %s359, 1
        %s605 = sand.u32 %s359, 1
        %s606 = smul.addr %s605, 16
        %s607 = scalar_lea.vmem [#allocation5], %s606
        %s608 = smul.u32 2, %s26
        %p609 = scmp.lt.s32.totalorder %s608, 7
        %s610 = scalar_select %p609, %s608, 7
        %s611 = smul.addr %s610, 4
        %s612 = scalar_lea.vmem %s0, %s611
        %s613 = smul.u32 2, %s26
        %s614 = smul.u32 2, %s26
        %s615 = smul.u32 2, %s26
        %v617 = vld [vmem:[%s612] sm:$0x77]
        %v618 = vld [vmem:[%s3] sm:$0xff]
        %v619 = vld [vmem:[%s3 + $0x8] sm:$0xff]
        %v620 = vld [vmem:[%s3 + $0x10] sm:$0xff]
        %v621 = vld [vmem:[%s3 + $0x18] sm:$0xff]
        %v622 = vld [vmem:[%s3 + $0x20] sm:$0xff]
        %v623 = vld [vmem:[%s3 + $0x28] sm:$0xff]
        %v624 = vld [vmem:[%s3 + $0x30] sm:$0xff]
        %v625 = vld [vmem:[%s3 + $0x38] sm:$0xff]
        %v626 = vld [vmem:[%s4] sm:$0xff]
        %v627 = vld [vmem:[%s4 + $0x8] sm:$0xff]
        %v628 = vld [vmem:[%s4 + $0x10] sm:$0xff]
        %v629 = vld [vmem:[%s4 + $0x18] sm:$0xff]
        %v630 = vld [vmem:[%s4 + $0x20] sm:$0xff]
        %v631 = vld [vmem:[%s4 + $0x28] sm:$0xff]
        %v632 = vld [vmem:[%s4 + $0x30] sm:$0xff]
        %v633 = vld [vmem:[%s4 + $0x38] sm:$0xff]
        %v634 = vld [vmem:[%s5] sm:$0xf]
        %v635 = vld [vmem:[%s5 + $0x4] sm:$0xf]
        %v636 = vld [vmem:[%s5 + $0x8] sm:$0xf]
        %v637 = vld [vmem:[%s5 + $0xc] sm:$0xf]
        %v638 = vld [vmem:[%s5 + $0x10] sm:$0xf]
        %v639 = vld [vmem:[%s5 + $0x14] sm:$0xf]
        %v640 = vld [vmem:[%s5 + $0x18] sm:$0xf]
        %v641 = vld [vmem:[%s5 + $0x1c] sm:$0xf]
        %v642 = vld [vmem:[%s5 + $0x20] sm:$0xf]
        %v643 = vld [vmem:[%s5 + $0x24] sm:$0xf]
        %v644 = vld [vmem:[%s5 + $0x28] sm:$0xf]
        %v645 = vld [vmem:[%s5 + $0x2c] sm:$0xf]
        %v646 = vld [vmem:[%s5 + $0x30] sm:$0xf]
        %v647 = vld [vmem:[%s5 + $0x34] sm:$0xf]
        %v648 = vld [vmem:[%s5 + $0x38] sm:$0xf]
        %v649 = vld [vmem:[%s5 + $0x3c] sm:$0xf]
        %v650 = vld [vmem:[%s5 + $0x40] sm:$0xf]
        %v651 = vld [vmem:[%s5 + $0x44] sm:$0xf]
        %v652 = vld [vmem:[%s5 + $0x48] sm:$0xf]
        %v653 = vld [vmem:[%s5 + $0x4c] sm:$0xf]
        %v654 = vld [vmem:[%s5 + $0x50] sm:$0xf]
        %v655 = vld [vmem:[%s5 + $0x54] sm:$0xf]
        %v656 = vld [vmem:[%s5 + $0x58] sm:$0xf]
        %v657 = vld [vmem:[%s5 + $0x5c] sm:$0xf]
        %v658 = vld [vmem:[%s5 + $0x60] sm:$0xf]
        %v659 = vld [vmem:[%s5 + $0x64] sm:$0xf]
        %v660 = vld [vmem:[%s5 + $0x68] sm:$0xf]
        %v661 = vld [vmem:[%s5 + $0x6c] sm:$0xf]
        %v662 = vld [vmem:[%s5 + $0x70] sm:$0xf]
        %v663 = vld [vmem:[%s5 + $0x74] sm:$0xf]
        %v664 = vld [vmem:[%s5 + $0x78] sm:$0xf]
        %v665 = vld [vmem:[%s5 + $0x7c] sm:$0xf]
        %v666 = vld [vmem:[%s6] sm:$0xff]
        %v667 = vld [vmem:[%s6 + $0x8] sm:$0xff]
        %v668 = vld [vmem:[%s6 + $0x10] sm:$0xff]
        %v669 = vld [vmem:[%s6 + $0x18] sm:$0xff]
        %v670 = vld [vmem:[%s6 + $0x20] sm:$0xff]
        %v671 = vld [vmem:[%s6 + $0x28] sm:$0xff]
        %v672 = vld [vmem:[%s6 + $0x30] sm:$0xff]
        %v673 = vld [vmem:[%s6 + $0x38] sm:$0xff]
        %v674 = vld [vmem:[%s6 + $0x40] sm:$0xff]
        %v675 = vld [vmem:[%s6 + $0x48] sm:$0xff]
        %v676 = vld [vmem:[%s6 + $0x50] sm:$0xff]
        %v677 = vld [vmem:[%s6 + $0x58] sm:$0xff]
        %v678 = vld [vmem:[%s6 + $0x60] sm:$0xff]
        %v679 = vld [vmem:[%s6 + $0x68] sm:$0xff]
        %v680 = vld [vmem:[%s6 + $0x70] sm:$0xff]
        %v681 = vld [vmem:[%s6 + $0x78] sm:$0xff]
        %v682 = vld [vmem:[%s6 + $0x80] sm:$0xff]
        %v683 = vld [vmem:[%s6 + $0x88] sm:$0xff]
        %v684 = vld [vmem:[%s6 + $0x90] sm:$0xff]
        %v685 = vld [vmem:[%s6 + $0x98] sm:$0xff]
        %v686 = vld [vmem:[%s6 + $0xa0] sm:$0xff]
        %v687 = vld [vmem:[%s6 + $0xa8] sm:$0xff]
        %v688 = vld [vmem:[%s6 + $0xb0] sm:$0xff]
        %v689 = vld [vmem:[%s6 + $0xb8] sm:$0xff]
        %v690 = vld [vmem:[%s6 + $0xc0] sm:$0xff]
        %v691 = vld [vmem:[%s6 + $0xc8] sm:$0xff]
        %v692 = vld [vmem:[%s6 + $0xd0] sm:$0xff]
        %v693 = vld [vmem:[%s6 + $0xd8] sm:$0xff]
        %v694 = vld [vmem:[%s6 + $0xe0] sm:$0xff]
        %v695 = vld [vmem:[%s6 + $0xe8] sm:$0xff]
        %v696 = vld [vmem:[%s6 + $0xf0] sm:$0xff]
        %v697 = vld [vmem:[%s6 + $0xf8] sm:$0xff]
        %v698 = vld [vmem:[%s7] sm:$0xff]
        %v699 = vld [vmem:[%s7 + $0x8] sm:$0xff]
        %v700 = vld [vmem:[%s7 + $0x10] sm:$0xff]
        %v701 = vld [vmem:[%s7 + $0x18] sm:$0xff]
        %v702 = vld [vmem:[%s7 + $0x20] sm:$0xff]
        %v703 = vld [vmem:[%s7 + $0x28] sm:$0xff]
        %v704 = vld [vmem:[%s7 + $0x30] sm:$0xff]
        %v705 = vld [vmem:[%s7 + $0x38] sm:$0xff]
        %v706 = vld [vmem:[%s7 + $0x40] sm:$0xff]
        %v707 = vld [vmem:[%s8] sm:$0xff]
        %v708 = vld [vmem:[%s8 + $0x8] sm:$0xff]
        %v709 = vld [vmem:[%s8 + $0x10] sm:$0xff]
        %v710 = vld [vmem:[%s8 + $0x18] sm:$0xff]
        %v711 = vld [vmem:[%s8 + $0x20] sm:$0xff]
        %v712 = vld [vmem:[%s8 + $0x28] sm:$0xff]
        %v713 = vld [vmem:[%s8 + $0x30] sm:$0xff]
        %v714 = vld [vmem:[%s8 + $0x38] sm:$0xff]
        %v715 = vld [vmem:[%s8 + $0x40] sm:$0xff]
        %717 = vset.pattern.permute.xlu0 0
        %718 = vperm.xlu0 %717, %v618
        %v719 = vpop.permute.xlu0 %718
        %722 = vset.pattern.permute.xlu0 0
        %723 = vperm.xlu0 %722, %v619
        %v724 = vpop.permute.xlu0 %723
        %727 = vset.pattern.permute.xlu0 0
        %728 = vperm.xlu0 %727, %v620
        %v729 = vpop.permute.xlu0 %728
        %732 = vset.pattern.permute.xlu0 0
        %733 = vperm.xlu0 %732, %v621
        %v734 = vpop.permute.xlu0 %733
        %737 = vset.pattern.permute.xlu0 0
        %738 = vperm.xlu0 %737, %v622
        %v739 = vpop.permute.xlu0 %738
        %742 = vset.pattern.permute.xlu0 0
        %743 = vperm.xlu0 %742, %v623
        %v744 = vpop.permute.xlu0 %743
        %747 = vset.pattern.permute.xlu0 0
        %748 = vperm.xlu0 %747, %v624
        %v749 = vpop.permute.xlu0 %748
        %752 = vset.pattern.permute.xlu0 0
        %753 = vperm.xlu0 %752, %v625
        %v754 = vpop.permute.xlu0 %753
        %v757 = vlaneseq
        %v758 = vshrl.u32 %v757, 7
        %v759 = vsub.s32 0, %v758
        %v760 = vrot.slane %v617, %v759
        %v761 = vlaneseq
        %v762 = vshrl.u32 %v761, 7
        %v763 = vsub.s32 4, %v762
        %v764 = vrot.slane %v617, %v763
        %v767 = vlaneseq
        %v768 = vshrl.u32 %v767, 7
        %v769 = vsub.s32 0, %v768
        %v770 = vrot.slane %v760, %v769
        %v771 = vlaneseq
        %v772 = vshrl.u32 %v771, 7
        %v773 = vsub.s32 0, %v772
        %v774 = vrot.slane %v764, %v773
        %v775 = vmul.f32 %v719, %v770
        %v776 = vmul.f32 %v719, %v774
        %v777 = vmul.f32 %v724, %v770
        %v778 = vmul.f32 %v724, %v774
        %v779 = vmul.f32 %v729, %v770
        %v780 = vmul.f32 %v729, %v774
        %v781 = vmul.f32 %v734, %v770
        %v782 = vmul.f32 %v734, %v774
        %v783 = vmul.f32 %v739, %v770
        %v784 = vmul.f32 %v739, %v774
        %v785 = vmul.f32 %v744, %v770
        %v786 = vmul.f32 %v744, %v774
        %v787 = vmul.f32 %v749, %v770
        %v788 = vmul.f32 %v749, %v774
        %v789 = vmul.f32 %v754, %v770
        %v790 = vmul.f32 %v754, %v774
        %791 = vset.pattern.permute.xlu0 1
        %792 = vperm.xlu0 %791, %v618
        %v793 = vpop.permute.xlu0 %792
        %795 = vset.pattern.permute.xlu0 1
        %796 = vperm.xlu0 %795, %v619
        %v797 = vpop.permute.xlu0 %796
        %799 = vset.pattern.permute.xlu0 1
        %800 = vperm.xlu0 %799, %v620
        %v801 = vpop.permute.xlu0 %800
        %803 = vset.pattern.permute.xlu0 1
        %804 = vperm.xlu0 %803, %v621
        %v805 = vpop.permute.xlu0 %804
        %807 = vset.pattern.permute.xlu0 1
        %808 = vperm.xlu0 %807, %v622
        %v809 = vpop.permute.xlu0 %808
        %811 = vset.pattern.permute.xlu0 1
        %812 = vperm.xlu0 %811, %v623
        %v813 = vpop.permute.xlu0 %812
        %815 = vset.pattern.permute.xlu0 1
        %816 = vperm.xlu0 %815, %v624
        %v817 = vpop.permute.xlu0 %816
        %819 = vset.pattern.permute.xlu0 1
        %820 = vperm.xlu0 %819, %v625
        %v821 = vpop.permute.xlu0 %820
        %v823 = vlaneseq
        %v824 = vshrl.u32 %v823, 7
        %v825 = vsub.s32 1, %v824
        %v826 = vrot.slane %v617, %v825
        %v827 = vlaneseq
        %v828 = vshrl.u32 %v827, 7
        %v829 = vsub.s32 5, %v828
        %v830 = vrot.slane %v617, %v829
        %v833 = vlaneseq
        %v834 = vshrl.u32 %v833, 7
        %v835 = vsub.s32 1, %v834
        %v836 = vrot.slane %v826, %v835
        %v837 = vlaneseq
        %v838 = vshrl.u32 %v837, 7
        %v839 = vsub.s32 1, %v838
        %v840 = vrot.slane %v830, %v839
        %v841 = vmul.f32 %v793, %v836
        %v842 = vmul.f32 %v793, %v840
        %v843 = vmul.f32 %v797, %v836
        %v844 = vmul.f32 %v797, %v840
        %v845 = vmul.f32 %v801, %v836
        %v846 = vmul.f32 %v801, %v840
        %v847 = vmul.f32 %v805, %v836
        %v848 = vmul.f32 %v805, %v840
        %v849 = vmul.f32 %v809, %v836
        %v850 = vmul.f32 %v809, %v840
        %v851 = vmul.f32 %v813, %v836
        %v852 = vmul.f32 %v813, %v840
        %v853 = vmul.f32 %v817, %v836
        %v854 = vmul.f32 %v817, %v840
        %v855 = vmul.f32 %v821, %v836
        %v856 = vmul.f32 %v821, %v840
        %v857 = vadd.f32 %v775, %v841
        %v858 = vadd.f32 %v776, %v842
        %v859 = vadd.f32 %v777, %v843
        %v860 = vadd.f32 %v778, %v844
        %v861 = vadd.f32 %v779, %v845
        %v862 = vadd.f32 %v780, %v846
        %v863 = vadd.f32 %v781, %v847
        %v864 = vadd.f32 %v782, %v848
        %v865 = vadd.f32 %v783, %v849
        %v866 = vadd.f32 %v784, %v850
        %v867 = vadd.f32 %v785, %v851
        %v868 = vadd.f32 %v786, %v852
        %v869 = vadd.f32 %v787, %v853
        %v870 = vadd.f32 %v788, %v854
        %v871 = vadd.f32 %v789, %v855
        %v872 = vadd.f32 %v790, %v856
        %873 = vset.pattern.permute.xlu0 2
        %874 = vperm.xlu0 %873, %v618
        %v875 = vpop.permute.xlu0 %874
        %877 = vset.pattern.permute.xlu0 2
        %878 = vperm.xlu0 %877, %v619
        %v879 = vpop.permute.xlu0 %878
        %881 = vset.pattern.permute.xlu0 2
        %882 = vperm.xlu0 %881, %v620
        %v883 = vpop.permute.xlu0 %882
        %885 = vset.pattern.permute.xlu0 2
        %886 = vperm.xlu0 %885, %v621
        %v887 = vpop.permute.xlu0 %886
        %889 = vset.pattern.permute.xlu0 2
        %890 = vperm.xlu0 %889, %v622
        %v891 = vpop.permute.xlu0 %890
        %893 = vset.pattern.permute.xlu0 2
        %894 = vperm.xlu0 %893, %v623
        %v895 = vpop.permute.xlu0 %894
        %897 = vset.pattern.permute.xlu0 2
        %898 = vperm.xlu0 %897, %v624
        %v899 = vpop.permute.xlu0 %898
        %901 = vset.pattern.permute.xlu0 2
        %902 = vperm.xlu0 %901, %v625
        %v903 = vpop.permute.xlu0 %902
        %v905 = vlaneseq
        %v906 = vshrl.u32 %v905, 7
        %v907 = vsub.s32 2, %v906
        %v908 = vrot.slane %v617, %v907
        %v909 = vlaneseq
        %v910 = vshrl.u32 %v909, 7
        %v911 = vsub.s32 6, %v910
        %v912 = vrot.slane %v617, %v911
        %v915 = vlaneseq
        %v916 = vshrl.u32 %v915, 7
        %v917 = vsub.s32 2, %v916
        %v918 = vrot.slane %v908, %v917
        %v919 = vlaneseq
        %v920 = vshrl.u32 %v919, 7
        %v921 = vsub.s32 2, %v920
        %v922 = vrot.slane %v912, %v921
        %v923 = vmul.f32 %v875, %v918
        %v924 = vmul.f32 %v875, %v922
        %v925 = vmul.f32 %v879, %v918
        %v926 = vmul.f32 %v879, %v922
        %v927 = vmul.f32 %v883, %v918
        %v928 = vmul.f32 %v883, %v922
        %v929 = vmul.f32 %v887, %v918
        %v930 = vmul.f32 %v887, %v922
        %v931 = vmul.f32 %v891, %v918
        %v932 = vmul.f32 %v891, %v922
        %v933 = vmul.f32 %v895, %v918
        %v934 = vmul.f32 %v895, %v922
        %v935 = vmul.f32 %v899, %v918
        %v936 = vmul.f32 %v899, %v922
        %v937 = vmul.f32 %v903, %v918
        %v938 = vmul.f32 %v903, %v922
        %v939 = vadd.f32 %v857, %v923
        %v940 = vadd.f32 %v858, %v924
        %v941 = vadd.f32 %v859, %v925
        %v942 = vadd.f32 %v860, %v926
        %v943 = vadd.f32 %v861, %v927
        %v944 = vadd.f32 %v862, %v928
        %v945 = vadd.f32 %v863, %v929
        %v946 = vadd.f32 %v864, %v930
        %v947 = vadd.f32 %v865, %v931
        %v948 = vadd.f32 %v866, %v932
        %v949 = vadd.f32 %v867, %v933
        %v950 = vadd.f32 %v868, %v934
        %v951 = vadd.f32 %v869, %v935
        %v952 = vadd.f32 %v870, %v936
        %v953 = vadd.f32 %v871, %v937
        %v954 = vadd.f32 %v872, %v938
        %956 = vset.pattern.permute.xlu0 0
        %957 = vperm.xlu0 %956, %v626
        %v958 = vpop.permute.xlu0 %957
        %961 = vset.pattern.permute.xlu0 0
        %962 = vperm.xlu0 %961, %v627
        %v963 = vpop.permute.xlu0 %962
        %966 = vset.pattern.permute.xlu0 0
        %967 = vperm.xlu0 %966, %v628
        %v968 = vpop.permute.xlu0 %967
        %971 = vset.pattern.permute.xlu0 0
        %972 = vperm.xlu0 %971, %v629
        %v973 = vpop.permute.xlu0 %972
        %976 = vset.pattern.permute.xlu0 0
        %977 = vperm.xlu0 %976, %v630
        %v978 = vpop.permute.xlu0 %977
        %981 = vset.pattern.permute.xlu0 0
        %982 = vperm.xlu0 %981, %v631
        %v983 = vpop.permute.xlu0 %982
        %986 = vset.pattern.permute.xlu0 0
        %987 = vperm.xlu0 %986, %v632
        %v988 = vpop.permute.xlu0 %987
        %991 = vset.pattern.permute.xlu0 0
        %992 = vperm.xlu0 %991, %v633
        %v993 = vpop.permute.xlu0 %992
        %v995 = vadd.f32 %v939, %v958
        %v996 = vadd.f32 %v940, %v958
        %v997 = vadd.f32 %v941, %v963
        %v998 = vadd.f32 %v942, %v963
        %v999 = vadd.f32 %v943, %v968
        %v1000 = vadd.f32 %v944, %v968
        %v1001 = vadd.f32 %v945, %v973
        %v1002 = vadd.f32 %v946, %v973
        %v1003 = vadd.f32 %v947, %v978
        %v1004 = vadd.f32 %v948, %v978
        %v1005 = vadd.f32 %v949, %v983
        %v1006 = vadd.f32 %v950, %v983
        %v1007 = vadd.f32 %v951, %v988
        %v1008 = vadd.f32 %v952, %v988
        %v1009 = vadd.f32 %v953, %v993
        %v1010 = vadd.f32 %v954, %v993
        %v1011 = vmax.f32 %v995, 0.0
        %v1012 = vmax.f32 %v996, 0.0
        %v1013 = vmax.f32 %v997, 0.0
        %v1014 = vmax.f32 %v998, 0.0
        %v1015 = vmax.f32 %v999, 0.0
        %v1016 = vmax.f32 %v1000, 0.0
        %v1017 = vmax.f32 %v1001, 0.0
        %v1018 = vmax.f32 %v1002, 0.0
        %v1019 = vmax.f32 %v1003, 0.0
        %v1020 = vmax.f32 %v1004, 0.0
        %v1021 = vmax.f32 %v1005, 0.0
        %v1022 = vmax.f32 %v1006, 0.0
        %v1023 = vmax.f32 %v1007, 0.0
        %v1024 = vmax.f32 %v1008, 0.0
        %v1025 = vmax.f32 %v1009, 0.0
        %v1026 = vmax.f32 %v1010, 0.0
        %v1027 = vpack.c.bf16 %v1013, %v1011
        %v1028 = vpack.c.bf16 %v1014, %v1012
        %v1029 = vpack.c.bf16 %v1017, %v1015
        %v1030 = vpack.c.bf16 %v1018, %v1016
        %v1031 = vpack.c.bf16 %v1021, %v1019
        %v1032 = vpack.c.bf16 %v1022, %v1020
        %v1033 = vpack.c.bf16 %v1025, %v1023
        %v1034 = vpack.c.bf16 %v1026, %v1024
        %1036 = vset.pattern.permute.xlu0 0
        %1037 = vperm.xlu0 %1036, %v666
        %v1038 = vpop.permute.xlu0 %1037
        %1041 = vset.pattern.permute.xlu0 0
        %1042 = vperm.xlu0 %1041, %v667
        %v1043 = vpop.permute.xlu0 %1042
        %1046 = vset.pattern.permute.xlu0 0
        %1047 = vperm.xlu0 %1046, %v668
        %v1048 = vpop.permute.xlu0 %1047
        %1051 = vset.pattern.permute.xlu0 0
        %1052 = vperm.xlu0 %1051, %v669
        %v1053 = vpop.permute.xlu0 %1052
        %1056 = vset.pattern.permute.xlu0 0
        %1057 = vperm.xlu0 %1056, %v670
        %v1058 = vpop.permute.xlu0 %1057
        %1061 = vset.pattern.permute.xlu0 0
        %1062 = vperm.xlu0 %1061, %v671
        %v1063 = vpop.permute.xlu0 %1062
        %1066 = vset.pattern.permute.xlu0 0
        %1067 = vperm.xlu0 %1066, %v672
        %v1068 = vpop.permute.xlu0 %1067
        %1071 = vset.pattern.permute.xlu0 0
        %1072 = vperm.xlu0 %1071, %v673
        %v1073 = vpop.permute.xlu0 %1072
        %1076 = vset.pattern.permute.xlu0 0
        %1077 = vperm.xlu0 %1076, %v674
        %v1078 = vpop.permute.xlu0 %1077
        %1081 = vset.pattern.permute.xlu0 0
        %1082 = vperm.xlu0 %1081, %v675
        %v1083 = vpop.permute.xlu0 %1082
        %1086 = vset.pattern.permute.xlu0 0
        %1087 = vperm.xlu0 %1086, %v676
        %v1088 = vpop.permute.xlu0 %1087
        %1091 = vset.pattern.permute.xlu0 0
        %1092 = vperm.xlu0 %1091, %v677
        %v1093 = vpop.permute.xlu0 %1092
        %1096 = vset.pattern.permute.xlu0 0
        %1097 = vperm.xlu0 %1096, %v678
        %v1098 = vpop.permute.xlu0 %1097
        %1101 = vset.pattern.permute.xlu0 0
        %1102 = vperm.xlu0 %1101, %v679
        %v1103 = vpop.permute.xlu0 %1102
        %1106 = vset.pattern.permute.xlu0 0
        %1107 = vperm.xlu0 %1106, %v680
        %v1108 = vpop.permute.xlu0 %1107
        %1111 = vset.pattern.permute.xlu0 0
        %1112 = vperm.xlu0 %1111, %v681
        %v1113 = vpop.permute.xlu0 %1112
        %1116 = vset.pattern.permute.xlu0 0
        %1117 = vperm.xlu0 %1116, %v682
        %v1118 = vpop.permute.xlu0 %1117
        %1121 = vset.pattern.permute.xlu0 0
        %1122 = vperm.xlu0 %1121, %v683
        %v1123 = vpop.permute.xlu0 %1122
        %1126 = vset.pattern.permute.xlu0 0
        %1127 = vperm.xlu0 %1126, %v684
        %v1128 = vpop.permute.xlu0 %1127
        %1131 = vset.pattern.permute.xlu0 0
        %1132 = vperm.xlu0 %1131, %v685
        %v1133 = vpop.permute.xlu0 %1132
        %1136 = vset.pattern.permute.xlu0 0
        %1137 = vperm.xlu0 %1136, %v686
        %v1138 = vpop.permute.xlu0 %1137
        %1141 = vset.pattern.permute.xlu0 0
        %1142 = vperm.xlu0 %1141, %v687
        %v1143 = vpop.permute.xlu0 %1142
        %1146 = vset.pattern.permute.xlu0 0
        %1147 = vperm.xlu0 %1146, %v688
        %v1148 = vpop.permute.xlu0 %1147
        %1151 = vset.pattern.permute.xlu0 0
        %1152 = vperm.xlu0 %1151, %v689
        %v1153 = vpop.permute.xlu0 %1152
        %1156 = vset.pattern.permute.xlu0 0
        %1157 = vperm.xlu0 %1156, %v690
        %v1158 = vpop.permute.xlu0 %1157
        %1161 = vset.pattern.permute.xlu0 0
        %1162 = vperm.xlu0 %1161, %v691
        %v1163 = vpop.permute.xlu0 %1162
        %1166 = vset.pattern.permute.xlu0 0
        %1167 = vperm.xlu0 %1166, %v692
        %v1168 = vpop.permute.xlu0 %1167
        %1171 = vset.pattern.permute.xlu0 0
        %1172 = vperm.xlu0 %1171, %v693
        %v1173 = vpop.permute.xlu0 %1172
        %1176 = vset.pattern.permute.xlu0 0
        %1177 = vperm.xlu0 %1176, %v694
        %v1178 = vpop.permute.xlu0 %1177
        %1181 = vset.pattern.permute.xlu0 0
        %1182 = vperm.xlu0 %1181, %v695
        %v1183 = vpop.permute.xlu0 %1182
        %1186 = vset.pattern.permute.xlu0 0
        %1187 = vperm.xlu0 %1186, %v696
        %v1188 = vpop.permute.xlu0 %1187
        %1191 = vset.pattern.permute.xlu0 0
        %1192 = vperm.xlu0 %1191, %v697
        %v1193 = vpop.permute.xlu0 %1192
        %v1227 = vunpack.c.l.b16 %v634
        %v1228 = vunpack.c.l.b16 %v635
        %v1229 = vunpack.c.l.b16 %v636
        %v1230 = vunpack.c.l.b16 %v637
        %v1231 = vunpack.c.l.b16 %v638
        %v1232 = vunpack.c.l.b16 %v639
        %v1233 = vunpack.c.l.b16 %v640
        %v1234 = vunpack.c.l.b16 %v641
        %v1235 = vunpack.c.l.b16 %v642
        %v1236 = vunpack.c.l.b16 %v643
        %v1237 = vunpack.c.l.b16 %v644
        %v1238 = vunpack.c.l.b16 %v645
        %v1239 = vunpack.c.l.b16 %v646
        %v1240 = vunpack.c.l.b16 %v647
        %v1241 = vunpack.c.l.b16 %v648
        %v1242 = vunpack.c.l.b16 %v649
        %v1243 = vunpack.c.l.b16 %v650
        %v1244 = vunpack.c.l.b16 %v651
        %v1245 = vunpack.c.l.b16 %v652
        %v1246 = vunpack.c.l.b16 %v653
        %v1247 = vunpack.c.l.b16 %v654
        %v1248 = vunpack.c.l.b16 %v655
        %v1249 = vunpack.c.l.b16 %v656
        %v1250 = vunpack.c.l.b16 %v657
        %v1251 = vunpack.c.l.b16 %v658
        %v1252 = vunpack.c.l.b16 %v659
        %v1253 = vunpack.c.l.b16 %v660
        %v1254 = vunpack.c.l.b16 %v661
        %v1255 = vunpack.c.l.b16 %v662
        %v1256 = vunpack.c.l.b16 %v663
        %v1257 = vunpack.c.l.b16 %v664
        %v1258 = vunpack.c.l.b16 %v665
        %v1259 = vpack.c.b16 %v1228, %v1227
        %v1260 = vpack.c.b16 %v1230, %v1229
        %v1261 = vpack.c.b16 %v1232, %v1231
        %v1262 = vpack.c.b16 %v1234, %v1233
        %v1263 = vpack.c.b16 %v1236, %v1235
        %v1264 = vpack.c.b16 %v1238, %v1237
        %v1265 = vpack.c.b16 %v1240, %v1239
        %v1266 = vpack.c.b16 %v1242, %v1241
        %v1267 = vpack.c.b16 %v1244, %v1243
        %v1268 = vpack.c.b16 %v1246, %v1245
        %v1269 = vpack.c.b16 %v1248, %v1247
        %v1270 = vpack.c.b16 %v1250, %v1249
        %v1271 = vpack.c.b16 %v1252, %v1251
        %v1272 = vpack.c.b16 %v1254, %v1253
        %v1273 = vpack.c.b16 %v1256, %v1255
        %v1274 = vpack.c.b16 %v1258, %v1257
        %vm1275 = vcmask 523264
        %v1277 = vsel %vm1275, %v1259, 0
        %v1280 = vsel %vm1275, %v1260, 0
        %v1283 = vsel %vm1275, %v1261, 0
        %v1286 = vsel %vm1275, %v1262, 0
        %v1289 = vsel %vm1275, %v1263, 0
        %v1292 = vsel %vm1275, %v1264, 0
        %v1295 = vsel %vm1275, %v1265, 0
        %v1298 = vsel %vm1275, %v1266, 0
        %v1301 = vsel %vm1275, %v1267, 0
        %v1304 = vsel %vm1275, %v1268, 0
        %v1307 = vsel %vm1275, %v1269, 0
        %v1310 = vsel %vm1275, %v1270, 0
        %v1313 = vsel %vm1275, %v1271, 0
        %v1316 = vsel %vm1275, %v1272, 0
        %v1319 = vsel %vm1275, %v1273, 0
        %v1322 = vsel %vm1275, %v1274, 0
        %1324 = vmatprep.subr.bf16.mxu0 %v1028
        %1325 = vmatpush1.bf16.msra.mxu0 %v1027
        %1326 = vmatprep.subr.bf16.mxu0 %v1030
        %1327 = vmatpush1.bf16.msra.mxu0 %v1029
        %1328 = vmatprep.subr.bf16.mxu0 %v1032
        %1329 = vmatpush1.bf16.msra.mxu0 %v1031
        %1330 = vmatprep.subr.bf16.mxu0 %v1034
        %1331 = vmatpush1.bf16.msra.mxu0 %v1033
        %1332 = vmatprep.subr.bf16.mxu0 0
        %1333 = vmatpush1.bf16.msra.mxu0 0
        %1334 = vmatprep.subr.bf16.mxu0 0
        %1335 = vmatpush1.bf16.msra.mxu0 0
        %1336 = vmatprep.subr.bf16.mxu0 0
        %1337 = vmatpush1.bf16.msra.mxu0 0
        %1338 = vmatprep.subr.bf16.mxu0 0
        %1339 = vmatpush1.bf16.msra.mxu0 0
        %1340 = vmatprep.subr.bf16.mxu0 0
        %1341 = vmatpush1.bf16.msra.mxu0 0
        %1342 = vmatprep.subr.bf16.mxu0 0
        %1343 = vmatpush1.bf16.msra.mxu0 0
        %1344 = vmatprep.subr.bf16.mxu0 0
        %1345 = vmatpush1.bf16.msra.mxu0 0
        %1346 = vmatprep.subr.bf16.mxu0 0
        %1347 = vmatpush1.bf16.msra.mxu0 0
        %1348 = vmatprep.subr.bf16.mxu0 0
        %1349 = vmatpush1.bf16.msra.mxu0 0
        %1350 = vmatprep.subr.bf16.mxu0 0
        %1351 = vmatpush1.bf16.msra.mxu0 0
        %1352 = vmatprep.subr.bf16.mxu0 0
        %1353 = vmatpush1.bf16.msra.mxu0 0
        %1354 = vmatprep.subr.bf16.mxu0 0
        %1355 = vmatpush1.bf16.msra.mxu0 0
        %1356 = vmatprep.mubr.bf16.mxu0 0
        %1357 = vmatmul.mubr.bf16.gmra.mrb[0].mxu0 %v1277
        %v1358 = vpop.f32.mrb[0].mxu0
        %v1359 = vadd.f32 %v1038, %v1358
        %v1360 = vpop.f32.mrb[0].mxu0
        %v1361 = vadd.f32 %v1038, %v1360
        %v1362 = vpop.f32.mrb[0].mxu0
        %v1363 = vadd.f32 %v1043, %v1362
        %v1364 = vpop.f32.mrb[0].mxu0
        %v1365 = vadd.f32 %v1043, %v1364
        %1366 = vmatprep.mubr.bf16.mxu0 0
        %1367 = vmatmul.mubr.bf16.gmra.mrb[0].mxu0 %v1280
        %v1368 = vpop.f32.mrb[0].mxu0
        %v1369 = vadd.f32 %v1048, %v1368
        %v1370 = vpop.f32.mrb[0].mxu0
        %v1371 = vadd.f32 %v1048, %v1370
        %v1372 = vpop.f32.mrb[0].mxu0
        %v1373 = vadd.f32 %v1053, %v1372
        %v1374 = vpop.f32.mrb[0].mxu0
        %v1375 = vadd.f32 %v1053, %v1374
        %1376 = vmatprep.mubr.bf16.mxu0 0
        %1377 = vmatmul.mubr.bf16.gmra.mrb[0].mxu0 %v1283
        %v1378 = vpop.f32.mrb[0].mxu0
        %v1379 = vadd.f32 %v1058, %v1378
        %v1380 = vpop.f32.mrb[0].mxu0
        %v1381 = vadd.f32 %v1058, %v1380
        %v1382 = vpop.f32.mrb[0].mxu0
        %v1383 = vadd.f32 %v1063, %v1382
        %v1384 = vpop.f32.mrb[0].mxu0
        %v1385 = vadd.f32 %v1063, %v1384
        %1386 = vmatprep.mubr.bf16.mxu0 0
        %1387 = vmatmul.mubr.bf16.gmra.mrb[0].mxu0 %v1286
        %v1388 = vpop.f32.mrb[0].mxu0
        %v1389 = vadd.f32 %v1068, %v1388
        %v1390 = vpop.f32.mrb[0].mxu0
        %v1391 = vadd.f32 %v1068, %v1390
        %v1392 = vpop.f32.mrb[0].mxu0
        %v1393 = vadd.f32 %v1073, %v1392
        %v1394 = vpop.f32.mrb[0].mxu0
        %v1395 = vadd.f32 %v1073, %v1394
        %1396 = vmatprep.mubr.bf16.mxu0 0
        %1397 = vmatmul.mubr.bf16.gmra.mrb[0].mxu0 %v1289
        %v1398 = vpop.f32.mrb[0].mxu0
        %v1399 = vadd.f32 %v1078, %v1398
        %v1400 = vpop.f32.mrb[0].mxu0
        %v1401 = vadd.f32 %v1078, %v1400
        %v1402 = vpop.f32.mrb[0].mxu0
        %v1403 = vadd.f32 %v1083, %v1402
        %v1404 = vpop.f32.mrb[0].mxu0
        %v1405 = vadd.f32 %v1083, %v1404
        %1406 = vmatprep.mubr.bf16.mxu0 0
        %1407 = vmatmul.mubr.bf16.gmra.mrb[0].mxu0 %v1292
        %v1408 = vpop.f32.mrb[0].mxu0
        %v1409 = vadd.f32 %v1088, %v1408
        %v1410 = vpop.f32.mrb[0].mxu0
        %v1411 = vadd.f32 %v1088, %v1410
        %v1412 = vpop.f32.mrb[0].mxu0
        %v1413 = vadd.f32 %v1093, %v1412
        %v1414 = vpop.f32.mrb[0].mxu0
        %v1415 = vadd.f32 %v1093, %v1414
        %1416 = vmatprep.mubr.bf16.mxu0 0
        %1417 = vmatmul.mubr.bf16.gmra.mrb[0].mxu0 %v1295
        %v1418 = vpop.f32.mrb[0].mxu0
        %v1419 = vadd.f32 %v1098, %v1418
        %v1420 = vpop.f32.mrb[0].mxu0
        %v1421 = vadd.f32 %v1098, %v1420
        %v1422 = vpop.f32.mrb[0].mxu0
        %v1423 = vadd.f32 %v1103, %v1422
        %v1424 = vpop.f32.mrb[0].mxu0
        %v1425 = vadd.f32 %v1103, %v1424
        %1426 = vmatprep.mubr.bf16.mxu0 0
        %1427 = vmatmul.mubr.bf16.gmra.mrb[0].mxu0 %v1298
        %v1428 = vpop.f32.mrb[0].mxu0
        %v1429 = vadd.f32 %v1108, %v1428
        %v1430 = vpop.f32.mrb[0].mxu0
        %v1431 = vadd.f32 %v1108, %v1430
        %v1432 = vpop.f32.mrb[0].mxu0
        %v1433 = vadd.f32 %v1113, %v1432
        %v1434 = vpop.f32.mrb[0].mxu0
        %v1435 = vadd.f32 %v1113, %v1434
        %1436 = vmatprep.mubr.bf16.mxu0 0
        %1437 = vmatmul.mubr.bf16.gmra.mrb[0].mxu0 %v1301
        %v1438 = vpop.f32.mrb[0].mxu0
        %v1439 = vadd.f32 %v1118, %v1438
        %v1440 = vpop.f32.mrb[0].mxu0
        %v1441 = vadd.f32 %v1118, %v1440
        %v1442 = vpop.f32.mrb[0].mxu0
        %v1443 = vadd.f32 %v1123, %v1442
        %v1444 = vpop.f32.mrb[0].mxu0
        %v1445 = vadd.f32 %v1123, %v1444
        %1446 = vmatprep.mubr.bf16.mxu0 0
        %1447 = vmatmul.mubr.bf16.gmra.mrb[0].mxu0 %v1304
        %v1448 = vpop.f32.mrb[0].mxu0
        %v1449 = vadd.f32 %v1128, %v1448
        %v1450 = vpop.f32.mrb[0].mxu0
        %v1451 = vadd.f32 %v1128, %v1450
        %v1452 = vpop.f32.mrb[0].mxu0
        %v1453 = vadd.f32 %v1133, %v1452
        %v1454 = vpop.f32.mrb[0].mxu0
        %v1455 = vadd.f32 %v1133, %v1454
        %1456 = vmatprep.mubr.bf16.mxu0 0
        %1457 = vmatmul.mubr.bf16.gmra.mrb[0].mxu0 %v1307
        %v1458 = vpop.f32.mrb[0].mxu0
        %v1459 = vadd.f32 %v1138, %v1458
        %v1460 = vpop.f32.mrb[0].mxu0
        %v1461 = vadd.f32 %v1138, %v1460
        %v1462 = vpop.f32.mrb[0].mxu0
        %v1463 = vadd.f32 %v1143, %v1462
        %v1464 = vpop.f32.mrb[0].mxu0
        %v1465 = vadd.f32 %v1143, %v1464
        %1466 = vmatprep.mubr.bf16.mxu0 0
        %1467 = vmatmul.mubr.bf16.gmra.mrb[0].mxu0 %v1310
        %v1468 = vpop.f32.mrb[0].mxu0
        %v1469 = vadd.f32 %v1148, %v1468
        %v1470 = vpop.f32.mrb[0].mxu0
        %v1471 = vadd.f32 %v1148, %v1470
        %v1472 = vpop.f32.mrb[0].mxu0
        %v1473 = vadd.f32 %v1153, %v1472
        %v1474 = vpop.f32.mrb[0].mxu0
        %v1475 = vadd.f32 %v1153, %v1474
        %1476 = vmatprep.mubr.bf16.mxu0 0
        %1477 = vmatmul.mubr.bf16.gmra.mrb[0].mxu0 %v1313
        %v1478 = vpop.f32.mrb[0].mxu0
        %v1479 = vadd.f32 %v1158, %v1478
        %v1480 = vpop.f32.mrb[0].mxu0
        %v1481 = vadd.f32 %v1158, %v1480
        %v1482 = vpop.f32.mrb[0].mxu0
        %v1483 = vadd.f32 %v1163, %v1482
        %v1484 = vpop.f32.mrb[0].mxu0
        %v1485 = vadd.f32 %v1163, %v1484
        %1486 = vmatprep.mubr.bf16.mxu0 0
        %1487 = vmatmul.mubr.bf16.gmra.mrb[0].mxu0 %v1316
        %v1488 = vpop.f32.mrb[0].mxu0
        %v1489 = vadd.f32 %v1168, %v1488
        %v1490 = vpop.f32.mrb[0].mxu0
        %v1491 = vadd.f32 %v1168, %v1490
        %v1492 = vpop.f32.mrb[0].mxu0
        %v1493 = vadd.f32 %v1173, %v1492
        %v1494 = vpop.f32.mrb[0].mxu0
        %v1495 = vadd.f32 %v1173, %v1494
        %1496 = vmatprep.mubr.bf16.mxu0 0
        %1497 = vmatmul.mubr.bf16.gmra.mrb[0].mxu0 %v1319
        %v1498 = vpop.f32.mrb[0].mxu0
        %v1499 = vadd.f32 %v1178, %v1498
        %v1500 = vpop.f32.mrb[0].mxu0
        %v1501 = vadd.f32 %v1178, %v1500
        %v1502 = vpop.f32.mrb[0].mxu0
        %v1503 = vadd.f32 %v1183, %v1502
        %v1504 = vpop.f32.mrb[0].mxu0
        %v1505 = vadd.f32 %v1183, %v1504
        %1506 = vmatprep.mubr.bf16.mxu0 0
        %1507 = vmatmul.mubr.bf16.gmra.mrb[0].mxu0 %v1322
        %v1508 = vpop.f32.mrb[0].mxu0
        %v1509 = vadd.f32 %v1188, %v1508
        %v1510 = vpop.f32.mrb[0].mxu0
        %v1511 = vadd.f32 %v1188, %v1510
        %v1512 = vpop.f32.mrb[0].mxu0
        %v1513 = vadd.f32 %v1193, %v1512
        %v1514 = vpop.f32.mrb[0].mxu0
        %v1515 = vadd.f32 %v1193, %v1514
        %1516 = vdwg.mxu0
        %v1517 = vmax.f32 %v1359, 0.0
        %v1518 = vmax.f32 %v1361, 0.0
        %v1519 = vmax.f32 %v1363, 0.0
        %v1520 = vmax.f32 %v1365, 0.0
        %v1521 = vmax.f32 %v1369, 0.0
        %v1522 = vmax.f32 %v1371, 0.0
        %v1523 = vmax.f32 %v1373, 0.0
        %v1524 = vmax.f32 %v1375, 0.0
        %v1525 = vmax.f32 %v1379, 0.0
        %v1526 = vmax.f32 %v1381, 0.0
        %v1527 = vmax.f32 %v1383, 0.0
        %v1528 = vmax.f32 %v1385, 0.0
        %v1529 = vmax.f32 %v1389, 0.0
        %v1530 = vmax.f32 %v1391, 0.0
        %v1531 = vmax.f32 %v1393, 0.0
        %v1532 = vmax.f32 %v1395, 0.0
        %v1533 = vmax.f32 %v1399, 0.0
        %v1534 = vmax.f32 %v1401, 0.0
        %v1535 = vmax.f32 %v1403, 0.0
        %v1536 = vmax.f32 %v1405, 0.0
        %v1537 = vmax.f32 %v1409, 0.0
        %v1538 = vmax.f32 %v1411, 0.0
        %v1539 = vmax.f32 %v1413, 0.0
        %v1540 = vmax.f32 %v1415, 0.0
        %v1541 = vmax.f32 %v1419, 0.0
        %v1542 = vmax.f32 %v1421, 0.0
        %v1543 = vmax.f32 %v1423, 0.0
        %v1544 = vmax.f32 %v1425, 0.0
        %v1545 = vmax.f32 %v1429, 0.0
        %v1546 = vmax.f32 %v1431, 0.0
        %v1547 = vmax.f32 %v1433, 0.0
        %v1548 = vmax.f32 %v1435, 0.0
        %v1549 = vmax.f32 %v1439, 0.0
        %v1550 = vmax.f32 %v1441, 0.0
        %v1551 = vmax.f32 %v1443, 0.0
        %v1552 = vmax.f32 %v1445, 0.0
        %v1553 = vmax.f32 %v1449, 0.0
        %v1554 = vmax.f32 %v1451, 0.0
        %v1555 = vmax.f32 %v1453, 0.0
        %v1556 = vmax.f32 %v1455, 0.0
        %v1557 = vmax.f32 %v1459, 0.0
        %v1558 = vmax.f32 %v1461, 0.0
        %v1559 = vmax.f32 %v1463, 0.0
        %v1560 = vmax.f32 %v1465, 0.0
        %v1561 = vmax.f32 %v1469, 0.0
        %v1562 = vmax.f32 %v1471, 0.0
        %v1563 = vmax.f32 %v1473, 0.0
        %v1564 = vmax.f32 %v1475, 0.0
        %v1565 = vmax.f32 %v1479, 0.0
        %v1566 = vmax.f32 %v1481, 0.0
        %v1567 = vmax.f32 %v1483, 0.0
        %v1568 = vmax.f32 %v1485, 0.0
        %v1569 = vmax.f32 %v1489, 0.0
        %v1570 = vmax.f32 %v1491, 0.0
        %v1571 = vmax.f32 %v1493, 0.0
        %v1572 = vmax.f32 %v1495, 0.0
        %v1573 = vmax.f32 %v1499, 0.0
        %v1574 = vmax.f32 %v1501, 0.0
        %v1575 = vmax.f32 %v1503, 0.0
        %v1576 = vmax.f32 %v1505, 0.0
        %v1577 = vmax.f32 %v1509, 0.0
        %v1578 = vmax.f32 %v1511, 0.0
        %v1579 = vmax.f32 %v1513, 0.0
        %v1580 = vmax.f32 %v1515, 0.0
        %v1581 = vpack.c.bf16 %v1519, %v1517
        %v1582 = vpack.c.bf16 %v1520, %v1518
        %v1583 = vpack.c.bf16 %v1523, %v1521
        %v1584 = vpack.c.bf16 %v1524, %v1522
        %v1585 = vpack.c.bf16 %v1527, %v1525
        %v1586 = vpack.c.bf16 %v1528, %v1526
        %v1587 = vpack.c.bf16 %v1531, %v1529
        %v1588 = vpack.c.bf16 %v1532, %v1530
        %v1589 = vpack.c.bf16 %v1535, %v1533
        %v1590 = vpack.c.bf16 %v1536, %v1534
        %v1591 = vpack.c.bf16 %v1539, %v1537
        %v1592 = vpack.c.bf16 %v1540, %v1538
        %v1593 = vpack.c.bf16 %v1543, %v1541
        %v1594 = vpack.c.bf16 %v1544, %v1542
        %v1595 = vpack.c.bf16 %v1547, %v1545
        %v1596 = vpack.c.bf16 %v1548, %v1546
        %v1597 = vpack.c.bf16 %v1551, %v1549
        %v1598 = vpack.c.bf16 %v1552, %v1550
        %v1599 = vpack.c.bf16 %v1555, %v1553
        %v1600 = vpack.c.bf16 %v1556, %v1554
        %v1601 = vpack.c.bf16 %v1559, %v1557
        %v1602 = vpack.c.bf16 %v1560, %v1558
        %v1603 = vpack.c.bf16 %v1563, %v1561
        %v1604 = vpack.c.bf16 %v1564, %v1562
        %v1605 = vpack.c.bf16 %v1567, %v1565
        %v1606 = vpack.c.bf16 %v1568, %v1566
        %v1607 = vpack.c.bf16 %v1571, %v1569
        %v1608 = vpack.c.bf16 %v1572, %v1570
        %v1609 = vpack.c.bf16 %v1575, %v1573
        %v1610 = vpack.c.bf16 %v1576, %v1574
        %v1611 = vpack.c.bf16 %v1579, %v1577
        %v1612 = vpack.c.bf16 %v1580, %v1578
        %1614 = vset.pattern.permute.xlu0 0
        %1615 = vperm.xlu0 %1614, %v707
        %v1616 = vpop.permute.xlu0 %1615
        %1619 = vset.pattern.permute.xlu0 0
        %1620 = vperm.xlu0 %1619, %v708
        %v1621 = vpop.permute.xlu0 %1620
        %1624 = vset.pattern.permute.xlu0 0
        %1625 = vperm.xlu0 %1624, %v709
        %v1626 = vpop.permute.xlu0 %1625
        %1629 = vset.pattern.permute.xlu0 0
        %1630 = vperm.xlu0 %1629, %v710
        %v1631 = vpop.permute.xlu0 %1630
        %1634 = vset.pattern.permute.xlu0 0
        %1635 = vperm.xlu0 %1634, %v711
        %v1636 = vpop.permute.xlu0 %1635
        %1639 = vset.pattern.permute.xlu0 0
        %1640 = vperm.xlu0 %1639, %v712
        %v1641 = vpop.permute.xlu0 %1640
        %1644 = vset.pattern.permute.xlu0 0
        %1645 = vperm.xlu0 %1644, %v713
        %v1646 = vpop.permute.xlu0 %1645
        %1649 = vset.pattern.permute.xlu0 0
        %1650 = vperm.xlu0 %1649, %v714
        %v1651 = vpop.permute.xlu0 %1650
        %1654 = vset.pattern.permute.xlu0 0
        %1655 = vperm.xlu0 %1654, %v715
        %v1656 = vpop.permute.xlu0 %1655
        %v1667 = vunpack.c.l.b16 %v698
        %v1668 = vunpack.c.h.b16 %v698
        %v1669 = vunpack.c.l.b16 %v699
        %v1670 = vunpack.c.h.b16 %v699
        %v1671 = vunpack.c.l.b16 %v700
        %v1672 = vunpack.c.h.b16 %v700
        %v1673 = vunpack.c.l.b16 %v701
        %v1674 = vunpack.c.h.b16 %v701
        %v1675 = vunpack.c.l.b16 %v702
        %v1676 = vunpack.c.h.b16 %v702
        %v1677 = vunpack.c.l.b16 %v703
        %v1678 = vunpack.c.h.b16 %v703
        %v1679 = vunpack.c.l.b16 %v704
        %v1680 = vunpack.c.h.b16 %v704
        %v1681 = vunpack.c.l.b16 %v705
        %v1682 = vunpack.c.h.b16 %v705
        %v1683 = vunpack.c.l.b16 %v706
        %v1684 = vunpack.c.h.b16 %v706
        %v1685 = vpack.c.b16 %v1669, %v1667
        %v1686 = vpack.c.b16 %v1670, %v1668
        %v1687 = vpack.c.b16 %v1673, %v1671
        %v1688 = vpack.c.b16 %v1674, %v1672
        %v1689 = vpack.c.b16 %v1677, %v1675
        %v1690 = vpack.c.b16 %v1678, %v1676
        %v1691 = vpack.c.b16 %v1681, %v1679
        %v1692 = vpack.c.b16 %v1682, %v1680
        %v1693 = vpack.c.b16 %v1683, %v1683
        %v1694 = vpack.c.b16 %v1684, %v1684
        %1705 = vmatprep.subr.bf16.mxu0 %v1582
        %1706 = vmatpush1.bf16.msra.mxu0 %v1581
        %1707 = vmatprep.subr.bf16.mxu0 %v1584
        %1708 = vmatpush1.bf16.msra.mxu0 %v1583
        %1709 = vmatprep.subr.bf16.mxu0 %v1586
        %1710 = vmatpush1.bf16.msra.mxu0 %v1585
        %1711 = vmatprep.subr.bf16.mxu0 %v1588
        %1712 = vmatpush1.bf16.msra.mxu0 %v1587
        %1713 = vmatprep.subr.bf16.mxu0 %v1590
        %1714 = vmatpush1.bf16.msra.mxu0 %v1589
        %1715 = vmatprep.subr.bf16.mxu0 %v1592
        %1716 = vmatpush1.bf16.msra.mxu0 %v1591
        %1717 = vmatprep.subr.bf16.mxu0 %v1594
        %1718 = vmatpush1.bf16.msra.mxu0 %v1593
        %1719 = vmatprep.subr.bf16.mxu0 %v1596
        %1720 = vmatpush1.bf16.msra.mxu0 %v1595
        %1721 = vmatprep.subr.bf16.mxu0 %v1598
        %1722 = vmatpush1.bf16.msra.mxu0 %v1597
        %1723 = vmatprep.subr.bf16.mxu0 %v1600
        %1724 = vmatpush1.bf16.msra.mxu0 %v1599
        %1725 = vmatprep.subr.bf16.mxu0 %v1602
        %1726 = vmatpush1.bf16.msra.mxu0 %v1601
        %1727 = vmatprep.subr.bf16.mxu0 %v1604
        %1728 = vmatpush1.bf16.msra.mxu0 %v1603
        %1729 = vmatprep.subr.bf16.mxu0 %v1606
        %1730 = vmatpush1.bf16.msra.mxu0 %v1605
        %1731 = vmatprep.subr.bf16.mxu0 %v1608
        %1732 = vmatpush1.bf16.msra.mxu0 %v1607
        %1733 = vmatprep.subr.bf16.mxu0 %v1610
        %1734 = vmatpush1.bf16.msra.mxu0 %v1609
        %1735 = vmatprep.subr.bf16.mxu0 %v1612
        %1736 = vmatpush1.bf16.msra.mxu0 %v1611
        %1737 = vmatprep.mubr.bf16.mxu0 %v1686
        %1738 = vmatmul.mubr.bf16.gmra.mrb[0].mxu0 %v1685
        %v1739 = vpop.f32.mrb[0].mxu0
        %v1740 = vadd.f32 %v1616, %v1739
        %v1741 = vpop.f32.mrb[0].mxu0
        %v1742 = vadd.f32 %v1616, %v1741
        %v1743 = vpop.f32.mrb[0].mxu0
        %v1744 = vadd.f32 %v1621, %v1743
        %v1745 = vpop.f32.mrb[0].mxu0
        %v1746 = vadd.f32 %v1621, %v1745
        %1747 = vmatprep.mubr.bf16.mxu0 %v1688
        %1748 = vmatmul.mubr.bf16.gmra.mrb[0].mxu0 %v1687
        %v1749 = vpop.f32.mrb[0].mxu0
        %v1750 = vadd.f32 %v1626, %v1749
        %v1751 = vpop.f32.mrb[0].mxu0
        %v1752 = vadd.f32 %v1626, %v1751
        %v1753 = vpop.f32.mrb[0].mxu0
        %v1754 = vadd.f32 %v1631, %v1753
        %v1755 = vpop.f32.mrb[0].mxu0
        %v1756 = vadd.f32 %v1631, %v1755
        %1757 = vmatprep.mubr.bf16.mxu0 %v1690
        %1758 = vmatmul.mubr.bf16.gmra.mrb[0].mxu0 %v1689
        %v1759 = vpop.f32.mrb[0].mxu0
        %v1760 = vadd.f32 %v1636, %v1759
        %v1761 = vpop.f32.mrb[0].mxu0
        %v1762 = vadd.f32 %v1636, %v1761
        %v1763 = vpop.f32.mrb[0].mxu0
        %v1764 = vadd.f32 %v1641, %v1763
        %v1765 = vpop.f32.mrb[0].mxu0
        %v1766 = vadd.f32 %v1641, %v1765
        %1767 = vmatprep.mubr.bf16.mxu0 %v1692
        %1768 = vmatmul.mubr.bf16.gmra.mrb[0].mxu0 %v1691
        %v1769 = vpop.f32.mrb[0].mxu0
        %v1770 = vadd.f32 %v1646, %v1769
        %v1771 = vpop.f32.mrb[0].mxu0
        %v1772 = vadd.f32 %v1646, %v1771
        %v1773 = vpop.f32.mrb[0].mxu0
        %v1774 = vadd.f32 %v1651, %v1773
        %v1775 = vpop.f32.mrb[0].mxu0
        %v1776 = vadd.f32 %v1651, %v1775
        %1777 = vmatprep.mubr.bf16.mxu0 %v1694
        %1778 = vmatmul.mubr.bf16.gmra.mrb[0].mxu0 %v1693
        %v1779 = vpop.f32.mrb[0].mxu0
        %v1780 = vadd.f32 %v1656, %v1779
        %v1781 = vpop.f32.mrb[0].mxu0
        %v1782 = vadd.f32 %v1656, %v1781
        %v1783 = vpop.f32.mrb[0].mxu0
        %v1784 = vpop.f32.mrb[0].mxu0
        %1785 = vdwg.mxu0
        %1786 = vst [vmem:[#allocation2] sm:$0xff] %v1740
        %1787 = vst [vmem:[#allocation2 + $0x8] sm:$0xff] %v1742
        %1788 = vst [vmem:[#allocation2 + $0x10] sm:$0xff] %v1744
        %1789 = vst [vmem:[#allocation2 + $0x18] sm:$0xff] %v1746
        %1790 = vst [vmem:[#allocation2 + $0x20] sm:$0xff] %v1750
        %1791 = vst [vmem:[#allocation2 + $0x28] sm:$0xff] %v1752
        %1792 = vst [vmem:[#allocation2 + $0x30] sm:$0xff] %v1754
        %1793 = vst [vmem:[#allocation2 + $0x38] sm:$0xff] %v1756
        %1794 = vst [vmem:[#allocation2 + $0x40] sm:$0xff] %v1760
        %1795 = vst [vmem:[#allocation2 + $0x48] sm:$0xff] %v1762
        %1796 = vst [vmem:[#allocation2 + $0x50] sm:$0xff] %v1764
        %1797 = vst [vmem:[#allocation2 + $0x58] sm:$0xff] %v1766
        %1798 = vst [vmem:[#allocation2 + $0x60] sm:$0xff] %v1770
        %1799 = vst [vmem:[#allocation2 + $0x68] sm:$0xff] %v1772
        %1800 = vst [vmem:[#allocation2 + $0x70] sm:$0xff] %v1774
        %1801 = vst [vmem:[#allocation2 + $0x78] sm:$0xff] %v1776
        %1802 = vst [vmem:[#allocation2 + $0x80] sm:$0xff] %v1780
        %1803 = vst [vmem:[#allocation2 + $0x88] sm:$0xff] %v1782
        %v1804 = vld [vmem:[%s9] sm:$0xff]
        %v1805 = vld [vmem:[%s9 + $0x8] sm:$0xff]
        %v1806 = vld [vmem:[%s9 + $0x10] sm:$0xff]
        %v1807 = vld [vmem:[%s9 + $0x18] sm:$0xff]
        %v1808 = vld [vmem:[%s9 + $0x20] sm:$0xff]
        %v1809 = vld [vmem:[%s9 + $0x28] sm:$0xff]
        %v1810 = vld [vmem:[%s9 + $0x30] sm:$0xff]
        %v1811 = vld [vmem:[%s9 + $0x38] sm:$0xff]
        %v1812 = vld [vmem:[%s10] sm:$0xff]
        %v1813 = vld [vmem:[%s10 + $0x8] sm:$0xff]
        %v1814 = vld [vmem:[%s10 + $0x10] sm:$0xff]
        %v1815 = vld [vmem:[%s10 + $0x18] sm:$0xff]
        %v1816 = vld [vmem:[%s10 + $0x20] sm:$0xff]
        %v1817 = vld [vmem:[%s10 + $0x28] sm:$0xff]
        %v1818 = vld [vmem:[%s10 + $0x30] sm:$0xff]
        %v1819 = vld [vmem:[%s10 + $0x38] sm:$0xff]
        %v1820 = vld [vmem:[%s11] sm:$0xf]
        %v1821 = vld [vmem:[%s11 + $0x4] sm:$0xf]
        %v1822 = vld [vmem:[%s11 + $0x8] sm:$0xf]
        %v1823 = vld [vmem:[%s11 + $0xc] sm:$0xf]
        %v1824 = vld [vmem:[%s11 + $0x10] sm:$0xf]
        %v1825 = vld [vmem:[%s11 + $0x14] sm:$0xf]
        %v1826 = vld [vmem:[%s11 + $0x18] sm:$0xf]
        %v1827 = vld [vmem:[%s11 + $0x1c] sm:$0xf]
        %v1828 = vld [vmem:[%s11 + $0x20] sm:$0xf]
        %v1829 = vld [vmem:[%s11 + $0x24] sm:$0xf]
        %v1830 = vld [vmem:[%s11 + $0x28] sm:$0xf]
        %v1831 = vld [vmem:[%s11 + $0x2c] sm:$0xf]
        %v1832 = vld [vmem:[%s11 + $0x30] sm:$0xf]
        %v1833 = vld [vmem:[%s11 + $0x34] sm:$0xf]
        %v1834 = vld [vmem:[%s11 + $0x38] sm:$0xf]
        %v1835 = vld [vmem:[%s11 + $0x3c] sm:$0xf]
        %v1836 = vld [vmem:[%s11 + $0x40] sm:$0xf]
        %v1837 = vld [vmem:[%s11 + $0x44] sm:$0xf]
        %v1838 = vld [vmem:[%s11 + $0x48] sm:$0xf]
        %v1839 = vld [vmem:[%s11 + $0x4c] sm:$0xf]
        %v1840 = vld [vmem:[%s11 + $0x50] sm:$0xf]
        %v1841 = vld [vmem:[%s11 + $0x54] sm:$0xf]
        %v1842 = vld [vmem:[%s11 + $0x58] sm:$0xf]
        %v1843 = vld [vmem:[%s11 + $0x5c] sm:$0xf]
        %v1844 = vld [vmem:[%s11 + $0x60] sm:$0xf]
        %v1845 = vld [vmem:[%s11 + $0x64] sm:$0xf]
        %v1846 = vld [vmem:[%s11 + $0x68] sm:$0xf]
        %v1847 = vld [vmem:[%s11 + $0x6c] sm:$0xf]
        %v1848 = vld [vmem:[%s11 + $0x70] sm:$0xf]
        %v1849 = vld [vmem:[%s11 + $0x74] sm:$0xf]
        %v1850 = vld [vmem:[%s11 + $0x78] sm:$0xf]
        %v1851 = vld [vmem:[%s11 + $0x7c] sm:$0xf]
        %v1852 = vld [vmem:[%s12] sm:$0xff]
        %v1853 = vld [vmem:[%s12 + $0x8] sm:$0xff]
        %v1854 = vld [vmem:[%s12 + $0x10] sm:$0xff]
        %v1855 = vld [vmem:[%s12 + $0x18] sm:$0xff]
        %v1856 = vld [vmem:[%s12 + $0x20] sm:$0xff]
        %v1857 = vld [vmem:[%s12 + $0x28] sm:$0xff]
        %v1858 = vld [vmem:[%s12 + $0x30] sm:$0xff]
        %v1859 = vld [vmem:[%s12 + $0x38] sm:$0xff]
        %v1860 = vld [vmem:[%s12 + $0x40] sm:$0xff]
        %v1861 = vld [vmem:[%s12 + $0x48] sm:$0xff]
        %v1862 = vld [vmem:[%s12 + $0x50] sm:$0xff]
        %v1863 = vld [vmem:[%s12 + $0x58] sm:$0xff]
        %v1864 = vld [vmem:[%s12 + $0x60] sm:$0xff]
        %v1865 = vld [vmem:[%s12 + $0x68] sm:$0xff]
        %v1866 = vld [vmem:[%s12 + $0x70] sm:$0xff]
        %v1867 = vld [vmem:[%s12 + $0x78] sm:$0xff]
        %v1868 = vld [vmem:[%s12 + $0x80] sm:$0xff]
        %v1869 = vld [vmem:[%s12 + $0x88] sm:$0xff]
        %v1870 = vld [vmem:[%s12 + $0x90] sm:$0xff]
        %v1871 = vld [vmem:[%s12 + $0x98] sm:$0xff]
        %v1872 = vld [vmem:[%s12 + $0xa0] sm:$0xff]
        %v1873 = vld [vmem:[%s12 + $0xa8] sm:$0xff]
        %v1874 = vld [vmem:[%s12 + $0xb0] sm:$0xff]
        %v1875 = vld [vmem:[%s12 + $0xb8] sm:$0xff]
        %v1876 = vld [vmem:[%s12 + $0xc0] sm:$0xff]
        %v1877 = vld [vmem:[%s12 + $0xc8] sm:$0xff]
        %v1878 = vld [vmem:[%s12 + $0xd0] sm:$0xff]
        %v1879 = vld [vmem:[%s12 + $0xd8] sm:$0xff]
        %v1880 = vld [vmem:[%s12 + $0xe0] sm:$0xff]
        %v1881 = vld [vmem:[%s12 + $0xe8] sm:$0xff]
        %v1882 = vld [vmem:[%s12 + $0xf0] sm:$0xff]
        %v1883 = vld [vmem:[%s12 + $0xf8] sm:$0xff]
        %v1884 = vld [vmem:[%s13] sm:$0xff]
        %v1885 = vld [vmem:[%s13 + $0x8] sm:$0xff]
        %v1886 = vld [vmem:[%s13 + $0x10] sm:$0xff]
        %v1887 = vld [vmem:[%s14] sm:$0xff]
        %v1888 = vld [vmem:[%s14 + $0x8] sm:$0xff]
        %v1889 = vld [vmem:[%s14 + $0x10] sm:$0xff]
        %1891 = vset.pattern.permute.xlu0 0
        %1892 = vperm.xlu0 %1891, %v1804
        %v1893 = vpop.permute.xlu0 %1892
        %1896 = vset.pattern.permute.xlu0 0
        %1897 = vperm.xlu0 %1896, %v1805
        %v1898 = vpop.permute.xlu0 %1897
        %1901 = vset.pattern.permute.xlu0 0
        %1902 = vperm.xlu0 %1901, %v1806
        %v1903 = vpop.permute.xlu0 %1902
        %1906 = vset.pattern.permute.xlu0 0
        %1907 = vperm.xlu0 %1906, %v1807
        %v1908 = vpop.permute.xlu0 %1907
        %1911 = vset.pattern.permute.xlu0 0
        %1912 = vperm.xlu0 %1911, %v1808
        %v1913 = vpop.permute.xlu0 %1912
        %1916 = vset.pattern.permute.xlu0 0
        %1917 = vperm.xlu0 %1916, %v1809
        %v1918 = vpop.permute.xlu0 %1917
        %1921 = vset.pattern.permute.xlu0 0
        %1922 = vperm.xlu0 %1921, %v1810
        %v1923 = vpop.permute.xlu0 %1922
        %1926 = vset.pattern.permute.xlu0 0
        %1927 = vperm.xlu0 %1926, %v1811
        %v1928 = vpop.permute.xlu0 %1927
        %v1930 = vmul.f32 %v1893, %v770
        %v1931 = vmul.f32 %v1893, %v774
        %v1932 = vmul.f32 %v1898, %v770
        %v1933 = vmul.f32 %v1898, %v774
        %v1934 = vmul.f32 %v1903, %v770
        %v1935 = vmul.f32 %v1903, %v774
        %v1936 = vmul.f32 %v1908, %v770
        %v1937 = vmul.f32 %v1908, %v774
        %v1938 = vmul.f32 %v1913, %v770
        %v1939 = vmul.f32 %v1913, %v774
        %v1940 = vmul.f32 %v1918, %v770
        %v1941 = vmul.f32 %v1918, %v774
        %v1942 = vmul.f32 %v1923, %v770
        %v1943 = vmul.f32 %v1923, %v774
        %v1944 = vmul.f32 %v1928, %v770
        %v1945 = vmul.f32 %v1928, %v774
        %1946 = vset.pattern.permute.xlu0 1
        %1947 = vperm.xlu0 %1946, %v1804
        %v1948 = vpop.permute.xlu0 %1947
        %1950 = vset.pattern.permute.xlu0 1
        %1951 = vperm.xlu0 %1950, %v1805
        %v1952 = vpop.permute.xlu0 %1951
        %1954 = vset.pattern.permute.xlu0 1
        %1955 = vperm.xlu0 %1954, %v1806
        %v1956 = vpop.permute.xlu0 %1955
        %1958 = vset.pattern.permute.xlu0 1
        %1959 = vperm.xlu0 %1958, %v1807
        %v1960 = vpop.permute.xlu0 %1959
        %1962 = vset.pattern.permute.xlu0 1
        %1963 = vperm.xlu0 %1962, %v1808
        %v1964 = vpop.permute.xlu0 %1963
        %1966 = vset.pattern.permute.xlu0 1
        %1967 = vperm.xlu0 %1966, %v1809
        %v1968 = vpop.permute.xlu0 %1967
        %1970 = vset.pattern.permute.xlu0 1
        %1971 = vperm.xlu0 %1970, %v1810
        %v1972 = vpop.permute.xlu0 %1971
        %1974 = vset.pattern.permute.xlu0 1
        %1975 = vperm.xlu0 %1974, %v1811
        %v1976 = vpop.permute.xlu0 %1975
        %v1978 = vmul.f32 %v1948, %v836
        %v1979 = vmul.f32 %v1948, %v840
        %v1980 = vmul.f32 %v1952, %v836
        %v1981 = vmul.f32 %v1952, %v840
        %v1982 = vmul.f32 %v1956, %v836
        %v1983 = vmul.f32 %v1956, %v840
        %v1984 = vmul.f32 %v1960, %v836
        %v1985 = vmul.f32 %v1960, %v840
        %v1986 = vmul.f32 %v1964, %v836
        %v1987 = vmul.f32 %v1964, %v840
        %v1988 = vmul.f32 %v1968, %v836
        %v1989 = vmul.f32 %v1968, %v840
        %v1990 = vmul.f32 %v1972, %v836
        %v1991 = vmul.f32 %v1972, %v840
        %v1992 = vmul.f32 %v1976, %v836
        %v1993 = vmul.f32 %v1976, %v840
        %v1994 = vadd.f32 %v1930, %v1978
        %v1995 = vadd.f32 %v1931, %v1979
        %v1996 = vadd.f32 %v1932, %v1980
        %v1997 = vadd.f32 %v1933, %v1981
        %v1998 = vadd.f32 %v1934, %v1982
        %v1999 = vadd.f32 %v1935, %v1983
        %v2000 = vadd.f32 %v1936, %v1984
        %v2001 = vadd.f32 %v1937, %v1985
        %v2002 = vadd.f32 %v1938, %v1986
        %v2003 = vadd.f32 %v1939, %v1987
        %v2004 = vadd.f32 %v1940, %v1988
        %v2005 = vadd.f32 %v1941, %v1989
        %v2006 = vadd.f32 %v1942, %v1990
        %v2007 = vadd.f32 %v1943, %v1991
        %v2008 = vadd.f32 %v1944, %v1992
        %v2009 = vadd.f32 %v1945, %v1993
        %2010 = vset.pattern.permute.xlu0 2
        %2011 = vperm.xlu0 %2010, %v1804
        %v2012 = vpop.permute.xlu0 %2011
        %2014 = vset.pattern.permute.xlu0 2
        %2015 = vperm.xlu0 %2014, %v1805
        %v2016 = vpop.permute.xlu0 %2015
        %2018 = vset.pattern.permute.xlu0 2
        %2019 = vperm.xlu0 %2018, %v1806
        %v2020 = vpop.permute.xlu0 %2019
        %2022 = vset.pattern.permute.xlu0 2
        %2023 = vperm.xlu0 %2022, %v1807
        %v2024 = vpop.permute.xlu0 %2023
        %2026 = vset.pattern.permute.xlu0 2
        %2027 = vperm.xlu0 %2026, %v1808
        %v2028 = vpop.permute.xlu0 %2027
        %2030 = vset.pattern.permute.xlu0 2
        %2031 = vperm.xlu0 %2030, %v1809
        %v2032 = vpop.permute.xlu0 %2031
        %2034 = vset.pattern.permute.xlu0 2
        %2035 = vperm.xlu0 %2034, %v1810
        %v2036 = vpop.permute.xlu0 %2035
        %2038 = vset.pattern.permute.xlu0 2
        %2039 = vperm.xlu0 %2038, %v1811
        %v2040 = vpop.permute.xlu0 %2039
        %v2042 = vmul.f32 %v2012, %v918
        %v2043 = vmul.f32 %v2012, %v922
        %v2044 = vmul.f32 %v2016, %v918
        %v2045 = vmul.f32 %v2016, %v922
        %v2046 = vmul.f32 %v2020, %v918
        %v2047 = vmul.f32 %v2020, %v922
        %v2048 = vmul.f32 %v2024, %v918
        %v2049 = vmul.f32 %v2024, %v922
        %v2050 = vmul.f32 %v2028, %v918
        %v2051 = vmul.f32 %v2028, %v922
        %v2052 = vmul.f32 %v2032, %v918
        %v2053 = vmul.f32 %v2032, %v922
        %v2054 = vmul.f32 %v2036, %v918
        %v2055 = vmul.f32 %v2036, %v922
        %v2056 = vmul.f32 %v2040, %v918
        %v2057 = vmul.f32 %v2040, %v922
        %v2058 = vadd.f32 %v1994, %v2042
        %v2059 = vadd.f32 %v1995, %v2043
        %v2060 = vadd.f32 %v1996, %v2044
        %v2061 = vadd.f32 %v1997, %v2045
        %v2062 = vadd.f32 %v1998, %v2046
        %v2063 = vadd.f32 %v1999, %v2047
        %v2064 = vadd.f32 %v2000, %v2048
        %v2065 = vadd.f32 %v2001, %v2049
        %v2066 = vadd.f32 %v2002, %v2050
        %v2067 = vadd.f32 %v2003, %v2051
        %v2068 = vadd.f32 %v2004, %v2052
        %v2069 = vadd.f32 %v2005, %v2053
        %v2070 = vadd.f32 %v2006, %v2054
        %v2071 = vadd.f32 %v2007, %v2055
        %v2072 = vadd.f32 %v2008, %v2056
        %v2073 = vadd.f32 %v2009, %v2057
        %2075 = vset.pattern.permute.xlu0 0
        %2076 = vperm.xlu0 %2075, %v1812
        %v2077 = vpop.permute.xlu0 %2076
        %2080 = vset.pattern.permute.xlu0 0
        %2081 = vperm.xlu0 %2080, %v1813
        %v2082 = vpop.permute.xlu0 %2081
        %2085 = vset.pattern.permute.xlu0 0
        %2086 = vperm.xlu0 %2085, %v1814
        %v2087 = vpop.permute.xlu0 %2086
        %2090 = vset.pattern.permute.xlu0 0
        %2091 = vperm.xlu0 %2090, %v1815
        %v2092 = vpop.permute.xlu0 %2091
        %2095 = vset.pattern.permute.xlu0 0
        %2096 = vperm.xlu0 %2095, %v1816
        %v2097 = vpop.permute.xlu0 %2096
        %2100 = vset.pattern.permute.xlu0 0
        %2101 = vperm.xlu0 %2100, %v1817
        %v2102 = vpop.permute.xlu0 %2101
        %2105 = vset.pattern.permute.xlu0 0
        %2106 = vperm.xlu0 %2105, %v1818
        %v2107 = vpop.permute.xlu0 %2106
        %2110 = vset.pattern.permute.xlu0 0
        %2111 = vperm.xlu0 %2110, %v1819
        %v2112 = vpop.permute.xlu0 %2111
        %v2114 = vadd.f32 %v2058, %v2077
        %v2115 = vadd.f32 %v2059, %v2077
        %v2116 = vadd.f32 %v2060, %v2082
        %v2117 = vadd.f32 %v2061, %v2082
        %v2118 = vadd.f32 %v2062, %v2087
        %v2119 = vadd.f32 %v2063, %v2087
        %v2120 = vadd.f32 %v2064, %v2092
        %v2121 = vadd.f32 %v2065, %v2092
        %v2122 = vadd.f32 %v2066, %v2097
        %v2123 = vadd.f32 %v2067, %v2097
        %v2124 = vadd.f32 %v2068, %v2102
        %v2125 = vadd.f32 %v2069, %v2102
        %v2126 = vadd.f32 %v2070, %v2107
        %v2127 = vadd.f32 %v2071, %v2107
        %v2128 = vadd.f32 %v2072, %v2112
        %v2129 = vadd.f32 %v2073, %v2112
        %v2130 = vmax.f32 %v2114, 0.0
        %v2131 = vmax.f32 %v2115, 0.0
        %v2132 = vmax.f32 %v2116, 0.0
        %v2133 = vmax.f32 %v2117, 0.0
        %v2134 = vmax.f32 %v2118, 0.0
        %v2135 = vmax.f32 %v2119, 0.0
        %v2136 = vmax.f32 %v2120, 0.0
        %v2137 = vmax.f32 %v2121, 0.0
        %v2138 = vmax.f32 %v2122, 0.0
        %v2139 = vmax.f32 %v2123, 0.0
        %v2140 = vmax.f32 %v2124, 0.0
        %v2141 = vmax.f32 %v2125, 0.0
        %v2142 = vmax.f32 %v2126, 0.0
        %v2143 = vmax.f32 %v2127, 0.0
        %v2144 = vmax.f32 %v2128, 0.0
        %v2145 = vmax.f32 %v2129, 0.0
        %v2146 = vpack.c.bf16 %v2132, %v2130
        %v2147 = vpack.c.bf16 %v2133, %v2131
        %v2148 = vpack.c.bf16 %v2136, %v2134
        %v2149 = vpack.c.bf16 %v2137, %v2135
        %v2150 = vpack.c.bf16 %v2140, %v2138
        %v2151 = vpack.c.bf16 %v2141, %v2139
        %v2152 = vpack.c.bf16 %v2144, %v2142
        %v2153 = vpack.c.bf16 %v2145, %v2143
        %2155 = vset.pattern.permute.xlu0 0
        %2156 = vperm.xlu0 %2155, %v1852
        %v2157 = vpop.permute.xlu0 %2156
        %2160 = vset.pattern.permute.xlu0 0
        %2161 = vperm.xlu0 %2160, %v1853
        %v2162 = vpop.permute.xlu0 %2161
        %2165 = vset.pattern.permute.xlu0 0
        %2166 = vperm.xlu0 %2165, %v1854
        %v2167 = vpop.permute.xlu0 %2166
        %2170 = vset.pattern.permute.xlu0 0
        %2171 = vperm.xlu0 %2170, %v1855
        %v2172 = vpop.permute.xlu0 %2171
        %2175 = vset.pattern.permute.xlu0 0
        %2176 = vperm.xlu0 %2175, %v1856
        %v2177 = vpop.permute.xlu0 %2176
        %2180 = vset.pattern.permute.xlu0 0
        %2181 = vperm.xlu0 %2180, %v1857
        %v2182 = vpop.permute.xlu0 %2181
        %2185 = vset.pattern.permute.xlu0 0
        %2186 = vperm.xlu0 %2185, %v1858
        %v2187 = vpop.permute.xlu0 %2186
        %2190 = vset.pattern.permute.xlu0 0
        %2191 = vperm.xlu0 %2190, %v1859
        %v2192 = vpop.permute.xlu0 %2191
        %2195 = vset.pattern.permute.xlu0 0
        %2196 = vperm.xlu0 %2195, %v1860
        %v2197 = vpop.permute.xlu0 %2196
        %2200 = vset.pattern.permute.xlu0 0
        %2201 = vperm.xlu0 %2200, %v1861
        %v2202 = vpop.permute.xlu0 %2201
        %2205 = vset.pattern.permute.xlu0 0
        %2206 = vperm.xlu0 %2205, %v1862
        %v2207 = vpop.permute.xlu0 %2206
        %2210 = vset.pattern.permute.xlu0 0
        %2211 = vperm.xlu0 %2210, %v1863
        %v2212 = vpop.permute.xlu0 %2211
        %2215 = vset.pattern.permute.xlu0 0
        %2216 = vperm.xlu0 %2215, %v1864
        %v2217 = vpop.permute.xlu0 %2216
        %2220 = vset.pattern.permute.xlu0 0
        %2221 = vperm.xlu0 %2220, %v1865
        %v2222 = vpop.permute.xlu0 %2221
        %2225 = vset.pattern.permute.xlu0 0
        %2226 = vperm.xlu0 %2225, %v1866
        %v2227 = vpop.permute.xlu0 %2226
        %2230 = vset.pattern.permute.xlu0 0
        %2231 = vperm.xlu0 %2230, %v1867
        %v2232 = vpop.permute.xlu0 %2231
        %2235 = vset.pattern.permute.xlu0 0
        %2236 = vperm.xlu0 %2235, %v1868
        %v2237 = vpop.permute.xlu0 %2236
        %2240 = vset.pattern.permute.xlu0 0
        %2241 = vperm.xlu0 %2240, %v1869
        %v2242 = vpop.permute.xlu0 %2241
        %2245 = vset.pattern.permute.xlu0 0
        %2246 = vperm.xlu0 %2245, %v1870
        %v2247 = vpop.permute.xlu0 %2246
        %2250 = vset.pattern.permute.xlu0 0
        %2251 = vperm.xlu0 %2250, %v1871
        %v2252 = vpop.permute.xlu0 %2251
        %2255 = vset.pattern.permute.xlu0 0
        %2256 = vperm.xlu0 %2255, %v1872
        %v2257 = vpop.permute.xlu0 %2256
        %2260 = vset.pattern.permute.xlu0 0
        %2261 = vperm.xlu0 %2260, %v1873
        %v2262 = vpop.permute.xlu0 %2261
        %2265 = vset.pattern.permute.xlu0 0
        %2266 = vperm.xlu0 %2265, %v1874
        %v2267 = vpop.permute.xlu0 %2266
        %2270 = vset.pattern.permute.xlu0 0
        %2271 = vperm.xlu0 %2270, %v1875
        %v2272 = vpop.permute.xlu0 %2271
        %2275 = vset.pattern.permute.xlu0 0
        %2276 = vperm.xlu0 %2275, %v1876
        %v2277 = vpop.permute.xlu0 %2276
        %2280 = vset.pattern.permute.xlu0 0
        %2281 = vperm.xlu0 %2280, %v1877
        %v2282 = vpop.permute.xlu0 %2281
        %2285 = vset.pattern.permute.xlu0 0
        %2286 = vperm.xlu0 %2285, %v1878
        %v2287 = vpop.permute.xlu0 %2286
        %2290 = vset.pattern.permute.xlu0 0
        %2291 = vperm.xlu0 %2290, %v1879
        %v2292 = vpop.permute.xlu0 %2291
        %2295 = vset.pattern.permute.xlu0 0
        %2296 = vperm.xlu0 %2295, %v1880
        %v2297 = vpop.permute.xlu0 %2296
        %2300 = vset.pattern.permute.xlu0 0
        %2301 = vperm.xlu0 %2300, %v1881
        %v2302 = vpop.permute.xlu0 %2301
        %2305 = vset.pattern.permute.xlu0 0
        %2306 = vperm.xlu0 %2305, %v1882
        %v2307 = vpop.permute.xlu0 %2306
        %2310 = vset.pattern.permute.xlu0 0
        %2311 = vperm.xlu0 %2310, %v1883
        %v2312 = vpop.permute.xlu0 %2311
        %v2346 = vunpack.c.l.b16 %v1820
        %v2347 = vunpack.c.l.b16 %v1821
        %v2348 = vunpack.c.l.b16 %v1822
        %v2349 = vunpack.c.l.b16 %v1823
        %v2350 = vunpack.c.l.b16 %v1824
        %v2351 = vunpack.c.l.b16 %v1825
        %v2352 = vunpack.c.l.b16 %v1826
        %v2353 = vunpack.c.l.b16 %v1827
        %v2354 = vunpack.c.l.b16 %v1828
        %v2355 = vunpack.c.l.b16 %v1829
        %v2356 = vunpack.c.l.b16 %v1830
        %v2357 = vunpack.c.l.b16 %v1831
        %v2358 = vunpack.c.l.b16 %v1832
        %v2359 = vunpack.c.l.b16 %v1833
        %v2360 = vunpack.c.l.b16 %v1834
        %v2361 = vunpack.c.l.b16 %v1835
        %v2362 = vunpack.c.l.b16 %v1836
        %v2363 = vunpack.c.l.b16 %v1837
        %v2364 = vunpack.c.l.b16 %v1838
        %v2365 = vunpack.c.l.b16 %v1839
        %v2366 = vunpack.c.l.b16 %v1840
        %v2367 = vunpack.c.l.b16 %v1841
        %v2368 = vunpack.c.l.b16 %v1842
        %v2369 = vunpack.c.l.b16 %v1843
        %v2370 = vunpack.c.l.b16 %v1844
        %v2371 = vunpack.c.l.b16 %v1845
        %v2372 = vunpack.c.l.b16 %v1846
        %v2373 = vunpack.c.l.b16 %v1847
        %v2374 = vunpack.c.l.b16 %v1848
        %v2375 = vunpack.c.l.b16 %v1849
        %v2376 = vunpack.c.l.b16 %v1850
        %v2377 = vunpack.c.l.b16 %v1851
        %v2378 = vpack.c.b16 %v2347, %v2346
        %v2379 = vpack.c.b16 %v2349, %v2348
        %v2380 = vpack.c.b16 %v2351, %v2350
        %v2381 = vpack.c.b16 %v2353, %v2352
        %v2382 = vpack.c.b16 %v2355, %v2354
        %v2383 = vpack.c.b16 %v2357, %v2356
        %v2384 = vpack.c.b16 %v2359, %v2358
        %v2385 = vpack.c.b16 %v2361, %v2360
        %v2386 = vpack.c.b16 %v2363, %v2362
        %v2387 = vpack.c.b16 %v2365, %v2364
        %v2388 = vpack.c.b16 %v2367, %v2366
        %v2389 = vpack.c.b16 %v2369, %v2368
        %v2390 = vpack.c.b16 %v2371, %v2370
        %v2391 = vpack.c.b16 %v2373, %v2372
        %v2392 = vpack.c.b16 %v2375, %v2374
        %v2393 = vpack.c.b16 %v2377, %v2376
        %v2395 = vsel %vm1275, %v2378, 0
        %v2398 = vsel %vm1275, %v2379, 0
        %v2401 = vsel %vm1275, %v2380, 0
        %v2404 = vsel %vm1275, %v2381, 0
        %v2407 = vsel %vm1275, %v2382, 0
        %v2410 = vsel %vm1275, %v2383, 0
        %v2413 = vsel %vm1275, %v2384, 0
        %v2416 = vsel %vm1275, %v2385, 0
        %v2419 = vsel %vm1275, %v2386, 0
        %v2422 = vsel %vm1275, %v2387, 0
        %v2425 = vsel %vm1275, %v2388, 0
        %v2428 = vsel %vm1275, %v2389, 0
        %v2431 = vsel %vm1275, %v2390, 0
        %v2434 = vsel %vm1275, %v2391, 0
        %v2437 = vsel %vm1275, %v2392, 0
        %v2440 = vsel %vm1275, %v2393, 0
        %2442 = vmatprep.subr.bf16.mxu0 %v2147
        %2443 = vmatpush1.bf16.msra.mxu0 %v2146
        %2444 = vmatprep.subr.bf16.mxu0 %v2149
        %2445 = vmatpush1.bf16.msra.mxu0 %v2148
        %2446 = vmatprep.subr.bf16.mxu0 %v2151
        %2447 = vmatpush1.bf16.msra.mxu0 %v2150
        %2448 = vmatprep.subr.bf16.mxu0 %v2153
        %2449 = vmatpush1.bf16.msra.mxu0 %v2152
        %2450 = vmatprep.subr.bf16.mxu0 0
        %2451 = vmatpush1.bf16.msra.mxu0 0
        %2452 = vmatprep.subr.bf16.mxu0 0
        %2453 = vmatpush1.bf16.msra.mxu0 0
        %2454 = vmatprep.subr.bf16.mxu0 0
        %2455 = vmatpush1.bf16.msra.mxu0 0
        %2456 = vmatprep.subr.bf16.mxu0 0
        %2457 = vmatpush1.bf16.msra.mxu0 0
        %2458 = vmatprep.subr.bf16.mxu0 0
        %2459 = vmatpush1.bf16.msra.mxu0 0
        %2460 = vmatprep.subr.bf16.mxu0 0
        %2461 = vmatpush1.bf16.msra.mxu0 0
        %2462 = vmatprep.subr.bf16.mxu0 0
        %2463 = vmatpush1.bf16.msra.mxu0 0
        %2464 = vmatprep.subr.bf16.mxu0 0
        %2465 = vmatpush1.bf16.msra.mxu0 0
        %2466 = vmatprep.subr.bf16.mxu0 0
        %2467 = vmatpush1.bf16.msra.mxu0 0
        %2468 = vmatprep.subr.bf16.mxu0 0
        %2469 = vmatpush1.bf16.msra.mxu0 0
        %2470 = vmatprep.subr.bf16.mxu0 0
        %2471 = vmatpush1.bf16.msra.mxu0 0
        %2472 = vmatprep.subr.bf16.mxu0 0
        %2473 = vmatpush1.bf16.msra.mxu0 0
        %2474 = vmatprep.mubr.bf16.mxu0 0
        %2475 = vmatmul.mubr.bf16.gmra.mrb[0].mxu0 %v2395
        %v2476 = vpop.f32.mrb[0].mxu0
        %v2477 = vadd.f32 %v2157, %v2476
        %v2478 = vpop.f32.mrb[0].mxu0
        %v2479 = vadd.f32 %v2157, %v2478
        %v2480 = vpop.f32.mrb[0].mxu0
        %v2481 = vadd.f32 %v2162, %v2480
        %v2482 = vpop.f32.mrb[0].mxu0
        %v2483 = vadd.f32 %v2162, %v2482
        %2484 = vmatprep.mubr.bf16.mxu0 0
        %2485 = vmatmul.mubr.bf16.gmra.mrb[0].mxu0 %v2398
        %v2486 = vpop.f32.mrb[0].mxu0
        %v2487 = vadd.f32 %v2167, %v2486
        %v2488 = vpop.f32.mrb[0].mxu0
        %v2489 = vadd.f32 %v2167, %v2488
        %v2490 = vpop.f32.mrb[0].mxu0
        %v2491 = vadd.f32 %v2172, %v2490
        %v2492 = vpop.f32.mrb[0].mxu0
        %v2493 = vadd.f32 %v2172, %v2492
        %2494 = vmatprep.mubr.bf16.mxu0 0
        %2495 = vmatmul.mubr.bf16.gmra.mrb[0].mxu0 %v2401
        %v2496 = vpop.f32.mrb[0].mxu0
        %v2497 = vadd.f32 %v2177, %v2496
        %v2498 = vpop.f32.mrb[0].mxu0
        %v2499 = vadd.f32 %v2177, %v2498
        %v2500 = vpop.f32.mrb[0].mxu0
        %v2501 = vadd.f32 %v2182, %v2500
        %v2502 = vpop.f32.mrb[0].mxu0
        %v2503 = vadd.f32 %v2182, %v2502
        %2504 = vmatprep.mubr.bf16.mxu0 0
        %2505 = vmatmul.mubr.bf16.gmra.mrb[0].mxu0 %v2404
        %v2506 = vpop.f32.mrb[0].mxu0
        %v2507 = vadd.f32 %v2187, %v2506
        %v2508 = vpop.f32.mrb[0].mxu0
        %v2509 = vadd.f32 %v2187, %v2508
        %v2510 = vpop.f32.mrb[0].mxu0
        %v2511 = vadd.f32 %v2192, %v2510
        %v2512 = vpop.f32.mrb[0].mxu0
        %v2513 = vadd.f32 %v2192, %v2512
        %2514 = vmatprep.mubr.bf16.mxu0 0
        %2515 = vmatmul.mubr.bf16.gmra.mrb[0].mxu0 %v2407
        %v2516 = vpop.f32.mrb[0].mxu0
        %v2517 = vadd.f32 %v2197, %v2516
        %v2518 = vpop.f32.mrb[0].mxu0
        %v2519 = vadd.f32 %v2197, %v2518
        %v2520 = vpop.f32.mrb[0].mxu0
        %v2521 = vadd.f32 %v2202, %v2520
        %v2522 = vpop.f32.mrb[0].mxu0
        %v2523 = vadd.f32 %v2202, %v2522
        %2524 = vmatprep.mubr.bf16.mxu0 0
        %2525 = vmatmul.mubr.bf16.gmra.mrb[0].mxu0 %v2410
        %v2526 = vpop.f32.mrb[0].mxu0
        %v2527 = vadd.f32 %v2207, %v2526
        %v2528 = vpop.f32.mrb[0].mxu0
        %v2529 = vadd.f32 %v2207, %v2528
        %v2530 = vpop.f32.mrb[0].mxu0
        %v2531 = vadd.f32 %v2212, %v2530
        %v2532 = vpop.f32.mrb[0].mxu0
        %v2533 = vadd.f32 %v2212, %v2532
        %2534 = vmatprep.mubr.bf16.mxu0 0
        %2535 = vmatmul.mubr.bf16.gmra.mrb[0].mxu0 %v2413
        %v2536 = vpop.f32.mrb[0].mxu0
        %v2537 = vadd.f32 %v2217, %v2536
        %v2538 = vpop.f32.mrb[0].mxu0
        %v2539 = vadd.f32 %v2217, %v2538
        %v2540 = vpop.f32.mrb[0].mxu0
        %v2541 = vadd.f32 %v2222, %v2540
        %v2542 = vpop.f32.mrb[0].mxu0
        %v2543 = vadd.f32 %v2222, %v2542
        %2544 = vmatprep.mubr.bf16.mxu0 0
        %2545 = vmatmul.mubr.bf16.gmra.mrb[0].mxu0 %v2416
        %v2546 = vpop.f32.mrb[0].mxu0
        %v2547 = vadd.f32 %v2227, %v2546
        %v2548 = vpop.f32.mrb[0].mxu0
        %v2549 = vadd.f32 %v2227, %v2548
        %v2550 = vpop.f32.mrb[0].mxu0
        %v2551 = vadd.f32 %v2232, %v2550
        %v2552 = vpop.f32.mrb[0].mxu0
        %v2553 = vadd.f32 %v2232, %v2552
        %2554 = vmatprep.mubr.bf16.mxu0 0
        %2555 = vmatmul.mubr.bf16.gmra.mrb[0].mxu0 %v2419
        %v2556 = vpop.f32.mrb[0].mxu0
        %v2557 = vadd.f32 %v2237, %v2556
        %v2558 = vpop.f32.mrb[0].mxu0
        %v2559 = vadd.f32 %v2237, %v2558
        %v2560 = vpop.f32.mrb[0].mxu0
        %v2561 = vadd.f32 %v2242, %v2560
        %v2562 = vpop.f32.mrb[0].mxu0
        %v2563 = vadd.f32 %v2242, %v2562
        %2564 = vmatprep.mubr.bf16.mxu0 0
        %2565 = vmatmul.mubr.bf16.gmra.mrb[0].mxu0 %v2422
        %v2566 = vpop.f32.mrb[0].mxu0
        %v2567 = vadd.f32 %v2247, %v2566
        %v2568 = vpop.f32.mrb[0].mxu0
        %v2569 = vadd.f32 %v2247, %v2568
        %v2570 = vpop.f32.mrb[0].mxu0
        %v2571 = vadd.f32 %v2252, %v2570
        %v2572 = vpop.f32.mrb[0].mxu0
        %v2573 = vadd.f32 %v2252, %v2572
        %2574 = vmatprep.mubr.bf16.mxu0 0
        %2575 = vmatmul.mubr.bf16.gmra.mrb[0].mxu0 %v2425
        %v2576 = vpop.f32.mrb[0].mxu0
        %v2577 = vadd.f32 %v2257, %v2576
        %v2578 = vpop.f32.mrb[0].mxu0
        %v2579 = vadd.f32 %v2257, %v2578
        %v2580 = vpop.f32.mrb[0].mxu0
        %v2581 = vadd.f32 %v2262, %v2580
        %v2582 = vpop.f32.mrb[0].mxu0
        %v2583 = vadd.f32 %v2262, %v2582
        %2584 = vmatprep.mubr.bf16.mxu0 0
        %2585 = vmatmul.mubr.bf16.gmra.mrb[0].mxu0 %v2428
        %v2586 = vpop.f32.mrb[0].mxu0
        %v2587 = vadd.f32 %v2267, %v2586
        %v2588 = vpop.f32.mrb[0].mxu0
        %v2589 = vadd.f32 %v2267, %v2588
        %v2590 = vpop.f32.mrb[0].mxu0
        %v2591 = vadd.f32 %v2272, %v2590
        %v2592 = vpop.f32.mrb[0].mxu0
        %v2593 = vadd.f32 %v2272, %v2592
        %2594 = vmatprep.mubr.bf16.mxu0 0
        %2595 = vmatmul.mubr.bf16.gmra.mrb[0].mxu0 %v2431
        %v2596 = vpop.f32.mrb[0].mxu0
        %v2597 = vadd.f32 %v2277, %v2596
        %v2598 = vpop.f32.mrb[0].mxu0
        %v2599 = vadd.f32 %v2277, %v2598
        %v2600 = vpop.f32.mrb[0].mxu0
        %v2601 = vadd.f32 %v2282, %v2600
        %v2602 = vpop.f32.mrb[0].mxu0
        %v2603 = vadd.f32 %v2282, %v2602
        %2604 = vmatprep.mubr.bf16.mxu0 0
        %2605 = vmatmul.mubr.bf16.gmra.mrb[0].mxu0 %v2434
        %v2606 = vpop.f32.mrb[0].mxu0
        %v2607 = vadd.f32 %v2287, %v2606
        %v2608 = vpop.f32.mrb[0].mxu0
        %v2609 = vadd.f32 %v2287, %v2608
        %v2610 = vpop.f32.mrb[0].mxu0
        %v2611 = vadd.f32 %v2292, %v2610
        %v2612 = vpop.f32.mrb[0].mxu0
        %v2613 = vadd.f32 %v2292, %v2612
        %2614 = vmatprep.mubr.bf16.mxu0 0
        %2615 = vmatmul.mubr.bf16.gmra.mrb[0].mxu0 %v2437
        %v2616 = vpop.f32.mrb[0].mxu0
        %v2617 = vadd.f32 %v2297, %v2616
        %v2618 = vpop.f32.mrb[0].mxu0
        %v2619 = vadd.f32 %v2297, %v2618
        %v2620 = vpop.f32.mrb[0].mxu0
        %v2621 = vadd.f32 %v2302, %v2620
        %v2622 = vpop.f32.mrb[0].mxu0
        %v2623 = vadd.f32 %v2302, %v2622
        %2624 = vmatprep.mubr.bf16.mxu0 0
        %2625 = vmatmul.mubr.bf16.gmra.mrb[0].mxu0 %v2440
        %v2626 = vpop.f32.mrb[0].mxu0
        %v2627 = vadd.f32 %v2307, %v2626
        %v2628 = vpop.f32.mrb[0].mxu0
        %v2629 = vadd.f32 %v2307, %v2628
        %v2630 = vpop.f32.mrb[0].mxu0
        %v2631 = vadd.f32 %v2312, %v2630
        %v2632 = vpop.f32.mrb[0].mxu0
        %v2633 = vadd.f32 %v2312, %v2632
        %2634 = vdwg.mxu0
        %v2635 = vmax.f32 %v2477, 0.0
        %v2636 = vmax.f32 %v2479, 0.0
        %v2637 = vmax.f32 %v2481, 0.0
        %v2638 = vmax.f32 %v2483, 0.0
        %v2639 = vmax.f32 %v2487, 0.0
        %v2640 = vmax.f32 %v2489, 0.0
        %v2641 = vmax.f32 %v2491, 0.0
        %v2642 = vmax.f32 %v2493, 0.0
        %v2643 = vmax.f32 %v2497, 0.0
        %v2644 = vmax.f32 %v2499, 0.0
        %v2645 = vmax.f32 %v2501, 0.0
        %v2646 = vmax.f32 %v2503, 0.0
        %v2647 = vmax.f32 %v2507, 0.0
        %v2648 = vmax.f32 %v2509, 0.0
        %v2649 = vmax.f32 %v2511, 0.0
        %v2650 = vmax.f32 %v2513, 0.0
        %v2651 = vmax.f32 %v2517, 0.0
        %v2652 = vmax.f32 %v2519, 0.0
        %v2653 = vmax.f32 %v2521, 0.0
        %v2654 = vmax.f32 %v2523, 0.0
        %v2655 = vmax.f32 %v2527, 0.0
        %v2656 = vmax.f32 %v2529, 0.0
        %v2657 = vmax.f32 %v2531, 0.0
        %v2658 = vmax.f32 %v2533, 0.0
        %v2659 = vmax.f32 %v2537, 0.0
        %v2660 = vmax.f32 %v2539, 0.0
        %v2661 = vmax.f32 %v2541, 0.0
        %v2662 = vmax.f32 %v2543, 0.0
        %v2663 = vmax.f32 %v2547, 0.0
        %v2664 = vmax.f32 %v2549, 0.0
        %v2665 = vmax.f32 %v2551, 0.0
        %v2666 = vmax.f32 %v2553, 0.0
        %v2667 = vmax.f32 %v2557, 0.0
        %v2668 = vmax.f32 %v2559, 0.0
        %v2669 = vmax.f32 %v2561, 0.0
        %v2670 = vmax.f32 %v2563, 0.0
        %v2671 = vmax.f32 %v2567, 0.0
        %v2672 = vmax.f32 %v2569, 0.0
        %v2673 = vmax.f32 %v2571, 0.0
        %v2674 = vmax.f32 %v2573, 0.0
        %v2675 = vmax.f32 %v2577, 0.0
        %v2676 = vmax.f32 %v2579, 0.0
        %v2677 = vmax.f32 %v2581, 0.0
        %v2678 = vmax.f32 %v2583, 0.0
        %v2679 = vmax.f32 %v2587, 0.0
        %v2680 = vmax.f32 %v2589, 0.0
        %v2681 = vmax.f32 %v2591, 0.0
        %v2682 = vmax.f32 %v2593, 0.0
        %v2683 = vmax.f32 %v2597, 0.0
        %v2684 = vmax.f32 %v2599, 0.0
        %v2685 = vmax.f32 %v2601, 0.0
        %v2686 = vmax.f32 %v2603, 0.0
        %v2687 = vmax.f32 %v2607, 0.0
        %v2688 = vmax.f32 %v2609, 0.0
        %v2689 = vmax.f32 %v2611, 0.0
        %v2690 = vmax.f32 %v2613, 0.0
        %v2691 = vmax.f32 %v2617, 0.0
        %v2692 = vmax.f32 %v2619, 0.0
        %v2693 = vmax.f32 %v2621, 0.0
        %v2694 = vmax.f32 %v2623, 0.0
        %v2695 = vmax.f32 %v2627, 0.0
        %v2696 = vmax.f32 %v2629, 0.0
        %v2697 = vmax.f32 %v2631, 0.0
        %v2698 = vmax.f32 %v2633, 0.0
        %v2699 = vpack.c.bf16 %v2637, %v2635
        %v2700 = vpack.c.bf16 %v2638, %v2636
        %v2701 = vpack.c.bf16 %v2641, %v2639
        %v2702 = vpack.c.bf16 %v2642, %v2640
        %v2703 = vpack.c.bf16 %v2645, %v2643
        %v2704 = vpack.c.bf16 %v2646, %v2644
        %v2705 = vpack.c.bf16 %v2649, %v2647
        %v2706 = vpack.c.bf16 %v2650, %v2648
        %v2707 = vpack.c.bf16 %v2653, %v2651
        %v2708 = vpack.c.bf16 %v2654, %v2652
        %v2709 = vpack.c.bf16 %v2657, %v2655
        %v2710 = vpack.c.bf16 %v2658, %v2656
        %v2711 = vpack.c.bf16 %v2661, %v2659
        %v2712 = vpack.c.bf16 %v2662, %v2660
        %v2713 = vpack.c.bf16 %v2665, %v2663
        %v2714 = vpack.c.bf16 %v2666, %v2664
        %v2715 = vpack.c.bf16 %v2669, %v2667
        %v2716 = vpack.c.bf16 %v2670, %v2668
        %v2717 = vpack.c.bf16 %v2673, %v2671
        %v2718 = vpack.c.bf16 %v2674, %v2672
        %v2719 = vpack.c.bf16 %v2677, %v2675
        %v2720 = vpack.c.bf16 %v2678, %v2676
        %v2721 = vpack.c.bf16 %v2681, %v2679
        %v2722 = vpack.c.bf16 %v2682, %v2680
        %v2723 = vpack.c.bf16 %v2685, %v2683
        %v2724 = vpack.c.bf16 %v2686, %v2684
        %v2725 = vpack.c.bf16 %v2689, %v2687
        %v2726 = vpack.c.bf16 %v2690, %v2688
        %v2727 = vpack.c.bf16 %v2693, %v2691
        %v2728 = vpack.c.bf16 %v2694, %v2692
        %v2729 = vpack.c.bf16 %v2697, %v2695
        %v2730 = vpack.c.bf16 %v2698, %v2696
        %2732 = vset.pattern.permute.xlu0 0
        %2733 = vperm.xlu0 %2732, %v1887
        %v2734 = vpop.permute.xlu0 %2733
        %2737 = vset.pattern.permute.xlu0 0
        %2738 = vperm.xlu0 %2737, %v1888
        %v2739 = vpop.permute.xlu0 %2738
        %2742 = vset.pattern.permute.xlu0 0
        %2743 = vperm.xlu0 %2742, %v1889
        %v2744 = vpop.permute.xlu0 %2743
        %v2749 = vunpack.c.l.b16 %v1884
        %v2750 = vunpack.c.h.b16 %v1884
        %v2751 = vunpack.c.l.b16 %v1885
        %v2752 = vunpack.c.h.b16 %v1885
        %v2753 = vunpack.c.l.b16 %v1886
        %v2754 = vunpack.c.h.b16 %v1886
        %v2755 = vpack.c.b16 %v2751, %v2749
        %v2756 = vpack.c.b16 %v2752, %v2750
        %v2757 = vpack.c.b16 %v2753, %v2753
        %v2758 = vpack.c.b16 %v2754, %v2754
        %2763 = vmatprep.subr.bf16.mxu0 %v2700
        %2764 = vmatpush1.bf16.msra.mxu0 %v2699
        %2765 = vmatprep.subr.bf16.mxu0 %v2702
        %2766 = vmatpush1.bf16.msra.mxu0 %v2701
        %2767 = vmatprep.subr.bf16.mxu0 %v2704
        %2768 = vmatpush1.bf16.msra.mxu0 %v2703
        %2769 = vmatprep.subr.bf16.mxu0 %v2706
        %2770 = vmatpush1.bf16.msra.mxu0 %v2705
        %2771 = vmatprep.subr.bf16.mxu0 %v2708
        %2772 = vmatpush1.bf16.msra.mxu0 %v2707
        %2773 = vmatprep.subr.bf16.mxu0 %v2710
        %2774 = vmatpush1.bf16.msra.mxu0 %v2709
        %2775 = vmatprep.subr.bf16.mxu0 %v2712
        %2776 = vmatpush1.bf16.msra.mxu0 %v2711
        %2777 = vmatprep.subr.bf16.mxu0 %v2714
        %2778 = vmatpush1.bf16.msra.mxu0 %v2713
        %2779 = vmatprep.subr.bf16.mxu0 %v2716
        %2780 = vmatpush1.bf16.msra.mxu0 %v2715
        %2781 = vmatprep.subr.bf16.mxu0 %v2718
        %2782 = vmatpush1.bf16.msra.mxu0 %v2717
        %2783 = vmatprep.subr.bf16.mxu0 %v2720
        %2784 = vmatpush1.bf16.msra.mxu0 %v2719
        %2785 = vmatprep.subr.bf16.mxu0 %v2722
        %2786 = vmatpush1.bf16.msra.mxu0 %v2721
        %2787 = vmatprep.subr.bf16.mxu0 %v2724
        %2788 = vmatpush1.bf16.msra.mxu0 %v2723
        %2789 = vmatprep.subr.bf16.mxu0 %v2726
        %2790 = vmatpush1.bf16.msra.mxu0 %v2725
        %2791 = vmatprep.subr.bf16.mxu0 %v2728
        %2792 = vmatpush1.bf16.msra.mxu0 %v2727
        %2793 = vmatprep.subr.bf16.mxu0 %v2730
        %2794 = vmatpush1.bf16.msra.mxu0 %v2729
        %2795 = vmatprep.mubr.bf16.mxu0 %v2756
        %2796 = vmatmul.mubr.bf16.gmra.mrb[0].mxu0 %v2755
        %v2797 = vpop.f32.mrb[0].mxu0
        %v2798 = vadd.f32 %v2734, %v2797
        %v2799 = vpop.f32.mrb[0].mxu0
        %v2800 = vadd.f32 %v2734, %v2799
        %v2801 = vpop.f32.mrb[0].mxu0
        %v2802 = vadd.f32 %v2739, %v2801
        %v2803 = vpop.f32.mrb[0].mxu0
        %v2804 = vadd.f32 %v2739, %v2803
        %2805 = vmatprep.mubr.bf16.mxu0 %v2758
        %2806 = vmatmul.mubr.bf16.gmra.mrb[0].mxu0 %v2757
        %v2807 = vpop.f32.mrb[0].mxu0
        %v2808 = vadd.f32 %v2744, %v2807
        %v2809 = vpop.f32.mrb[0].mxu0
        %v2810 = vadd.f32 %v2744, %v2809
        %v2811 = vpop.f32.mrb[0].mxu0
        %v2812 = vpop.f32.mrb[0].mxu0
        %2813 = vdwg.mxu0
        %2814 = vst [vmem:[#allocation3] sm:$0xff] %v2798
        %2815 = vst [vmem:[#allocation3 + $0x8] sm:$0xff] %v2800
        %2816 = vst [vmem:[#allocation3 + $0x10] sm:$0xff] %v2802
        %2817 = vst [vmem:[#allocation3 + $0x18] sm:$0xff] %v2804
        %2818 = vst [vmem:[#allocation3 + $0x20] sm:$0xff] %v2808
        %2819 = vst [vmem:[#allocation3 + $0x28] sm:$0xff] %v2810
        %v2820 = vld [vmem:[%s2] sm:$0xff]
        %2822 = vset.pattern.permute.xlu0 0
        %2823 = vperm.xlu0 %2822, %v2820
        %v2824 = vpop.permute.xlu0 %2823
        %v2826 = vld [vmem:[#allocation2] sm:$0xff]
        %v2827 = vld [vmem:[#allocation2 + $0x10] sm:$0xff]
        %v2828 = vld [vmem:[#allocation2 + $0x20] sm:$0xff]
        %v2829 = vld [vmem:[#allocation2 + $0x30] sm:$0xff]
        %v2830 = vld [vmem:[#allocation2 + $0x40] sm:$0xff]
        %v2831 = vld [vmem:[#allocation2 + $0x50] sm:$0xff]
        %v2832 = vld [vmem:[#allocation2 + $0x60] sm:$0xff]
        %v2833 = vld [vmem:[#allocation2 + $0x70] sm:$0xff]
        %v2834 = vld [vmem:[#allocation2 + $0x80] sm:$0xff]
        %v2835 = vmax.f32 %v2826, %v2827
        %v2836 = vmax.f32 %v2835, %v2828
        %v2837 = vmax.f32 %v2836, %v2829
        %v2838 = vmax.f32 %v2837, %v2830
        %v2839 = vmax.f32 %v2838, %v2831
        %v2840 = vmax.f32 %v2839, %v2832
        %v2841 = vmax.f32 %v2840, %v2833
        %v2842 = vmax.f32 %v2841, %v2834
        %v2843 = vsub.f32 %v2826, %v2842
        %v2844 = vmul.f32 %v2843, 1.442695
        %v2845 = vpow.pop %v2844
        %v2846 = vsub.f32 %v2827, %v2842
        %v2847 = vmul.f32 %v2846, 1.442695
        %v2848 = vpow.pop %v2847
        %v2849 = vsub.f32 %v2828, %v2842
        %v2850 = vmul.f32 %v2849, 1.442695
        %v2851 = vpow.pop %v2850
        %v2852 = vsub.f32 %v2829, %v2842
        %v2853 = vmul.f32 %v2852, 1.442695
        %v2854 = vpow.pop %v2853
        %v2855 = vsub.f32 %v2830, %v2842
        %v2856 = vmul.f32 %v2855, 1.442695
        %v2857 = vpow.pop %v2856
        %v2858 = vsub.f32 %v2831, %v2842
        %v2859 = vmul.f32 %v2858, 1.442695
        %v2860 = vpow.pop %v2859
        %v2861 = vsub.f32 %v2832, %v2842
        %v2862 = vmul.f32 %v2861, 1.442695
        %v2863 = vpow.pop %v2862
        %v2864 = vsub.f32 %v2833, %v2842
        %v2865 = vmul.f32 %v2864, 1.442695
        %v2866 = vpow.pop %v2865
        %v2867 = vsub.f32 %v2834, %v2842
        %v2868 = vmul.f32 %v2867, 1.442695
        %v2869 = vpow.pop %v2868
        %v2870 = vadd.f32 %v2845, %v2848
        %v2871 = vadd.f32 %v2870, %v2851
        %v2872 = vadd.f32 %v2871, %v2854
        %v2873 = vadd.f32 %v2872, %v2857
        %v2874 = vadd.f32 %v2873, %v2860
        %v2875 = vadd.f32 %v2874, %v2863
        %v2876 = vadd.f32 %v2875, %v2866
        %v2877 = vadd.f32 %v2876, %v2869
        %v2878 = vrcp.pop %v2877
        %v2879 = vmul.f32 %v2877, %v2878
        %v2880 = vsub.f32 2.0, %v2879
        %v2881 = vmul.f32 %v2878, %v2880
        %v2882 = vld [vmem:[%s559] sm:$0xf]
        %v2883 = vunpack.c.l.bf16 %v2882
        %s2884 = sadd.s32 0, 2
        %s2885 = smul.addr %s2884, 4
        %s2886 = scalar_lea.vmem %s559, %s2885 [#allocation4]
        %v2887 = vld [vmem:[%s2886] sm:$0xf]
        %v2888 = vunpack.c.l.bf16 %v2887
        %s2889 = sadd.s32 0, 4
        %s2890 = smul.addr %s2889, 4
        %s2891 = scalar_lea.vmem %s559, %s2890 [#allocation4]
        %v2892 = vld [vmem:[%s2891] sm:$0xf]
        %v2893 = vunpack.c.l.bf16 %v2892
        %s2894 = sadd.s32 0, 6
        %s2895 = smul.addr %s2894, 4
        %s2896 = scalar_lea.vmem %s559, %s2895 [#allocation4]
        %v2897 = vld [vmem:[%s2896] sm:$0xf]
        %v2898 = vunpack.c.l.bf16 %v2897
        %s2899 = sadd.s32 0, 8
        %s2900 = smul.addr %s2899, 4
        %s2901 = scalar_lea.vmem %s559, %s2900 [#allocation4]
        %v2902 = vld [vmem:[%s2901] sm:$0xf]
        %v2903 = vunpack.c.l.bf16 %v2902
        %s2904 = sadd.s32 0, 10
        %s2905 = smul.addr %s2904, 4
        %s2906 = scalar_lea.vmem %s559, %s2905 [#allocation4]
        %v2907 = vld [vmem:[%s2906] sm:$0xf]
        %v2908 = vunpack.c.l.bf16 %v2907
        %s2909 = sadd.s32 0, 12
        %s2910 = smul.addr %s2909, 4
        %s2911 = scalar_lea.vmem %s559, %s2910 [#allocation4]
        %v2912 = vld [vmem:[%s2911] sm:$0xf]
        %v2913 = vunpack.c.l.bf16 %v2912
        %s2914 = sadd.s32 0, 14
        %s2915 = smul.addr %s2914, 4
        %s2916 = scalar_lea.vmem %s559, %s2915 [#allocation4]
        %v2917 = vld [vmem:[%s2916] sm:$0xf]
        %v2918 = vunpack.c.l.bf16 %v2917
        %s2919 = sadd.s32 0, 16
        %s2920 = smul.addr %s2919, 4
        %s2921 = scalar_lea.vmem %s559, %s2920 [#allocation4]
        %v2922 = vld [vmem:[%s2921] sm:$0xf]
        %v2923 = vunpack.c.l.bf16 %v2922
        %v2924 = vmul.f32 %v2883, %v2845
        %v2925 = vmul.f32 %v2888, %v2848
        %v2926 = vadd.f32 %v2924, %v2925
        %v2927 = vmul.f32 %v2893, %v2851
        %v2928 = vadd.f32 %v2926, %v2927
        %v2929 = vmul.f32 %v2898, %v2854
        %v2930 = vadd.f32 %v2928, %v2929
        %v2931 = vmul.f32 %v2903, %v2857
        %v2932 = vadd.f32 %v2930, %v2931
        %v2933 = vmul.f32 %v2908, %v2860
        %v2934 = vadd.f32 %v2932, %v2933
        %v2935 = vmul.f32 %v2913, %v2863
        %v2936 = vadd.f32 %v2934, %v2935
        %v2937 = vmul.f32 %v2918, %v2866
        %v2938 = vadd.f32 %v2936, %v2937
        %v2939 = vmul.f32 %v2923, %v2869
        %v2940 = vadd.f32 %v2938, %v2939
        %v2941 = vmul.f32 %v2940, %v2881
        %v2942 = vsub.f32 %v2883, %v2941
        %v2943 = vmul.f32 %v2942, %v2942
        %v2944 = vmul.f32 %v2824, %v2943
        %v2945 = vadd.f32 %v2826, %v2944
        %v2946 = vsub.f32 %v2888, %v2941
        %v2947 = vmul.f32 %v2946, %v2946
        %v2948 = vmul.f32 %v2824, %v2947
        %v2949 = vadd.f32 %v2827, %v2948
        %v2950 = vsub.f32 %v2893, %v2941
        %v2951 = vmul.f32 %v2950, %v2950
        %v2952 = vmul.f32 %v2824, %v2951
        %v2953 = vadd.f32 %v2828, %v2952
        %v2954 = vsub.f32 %v2898, %v2941
        %v2955 = vmul.f32 %v2954, %v2954
        %v2956 = vmul.f32 %v2824, %v2955
        %v2957 = vadd.f32 %v2829, %v2956
        %v2958 = vsub.f32 %v2903, %v2941
        %v2959 = vmul.f32 %v2958, %v2958
        %v2960 = vmul.f32 %v2824, %v2959
        %v2961 = vadd.f32 %v2830, %v2960
        %v2962 = vsub.f32 %v2908, %v2941
        %v2963 = vmul.f32 %v2962, %v2962
        %v2964 = vmul.f32 %v2824, %v2963
        %v2965 = vadd.f32 %v2831, %v2964
        %v2966 = vsub.f32 %v2913, %v2941
        %v2967 = vmul.f32 %v2966, %v2966
        %v2968 = vmul.f32 %v2824, %v2967
        %v2969 = vadd.f32 %v2832, %v2968
        %v2970 = vsub.f32 %v2918, %v2941
        %v2971 = vmul.f32 %v2970, %v2970
        %v2972 = vmul.f32 %v2824, %v2971
        %v2973 = vadd.f32 %v2833, %v2972
        %v2974 = vsub.f32 %v2923, %v2941
        %v2975 = vmul.f32 %v2974, %v2974
        %v2976 = vmul.f32 %v2824, %v2975
        %v2977 = vadd.f32 %v2834, %v2976
        %v2978 = vmax.f32 %v2945, %v2949
        %v2979 = vmax.f32 %v2978, %v2953
        %v2980 = vmax.f32 %v2979, %v2957
        %v2981 = vmax.f32 %v2980, %v2961
        %v2982 = vmax.f32 %v2981, %v2965
        %v2983 = vmax.f32 %v2982, %v2969
        %v2984 = vmax.f32 %v2983, %v2973
        %v2985 = vmax.f32 %v2984, %v2977
        %v2986 = vsub.f32 %v2945, %v2985
        %v2987 = vmul.f32 %v2986, 1.442695
        %v2988 = vpow.pop %v2987
        %v2989 = vsub.f32 %v2949, %v2985
        %v2990 = vmul.f32 %v2989, 1.442695
        %v2991 = vpow.pop %v2990
        %v2992 = vsub.f32 %v2953, %v2985
        %v2993 = vmul.f32 %v2992, 1.442695
        %v2994 = vpow.pop %v2993
        %v2995 = vsub.f32 %v2957, %v2985
        %v2996 = vmul.f32 %v2995, 1.442695
        %v2997 = vpow.pop %v2996
        %v2998 = vsub.f32 %v2961, %v2985
        %v2999 = vmul.f32 %v2998, 1.442695
        %v3000 = vpow.pop %v2999
        %v3001 = vsub.f32 %v2965, %v2985
        %v3002 = vmul.f32 %v3001, 1.442695
        %v3003 = vpow.pop %v3002
        %v3004 = vsub.f32 %v2969, %v2985
        %v3005 = vmul.f32 %v3004, 1.442695
        %v3006 = vpow.pop %v3005
        %v3007 = vsub.f32 %v2973, %v2985
        %v3008 = vmul.f32 %v3007, 1.442695
        %v3009 = vpow.pop %v3008
        %v3010 = vsub.f32 %v2977, %v2985
        %v3011 = vmul.f32 %v3010, 1.442695
        %v3012 = vpow.pop %v3011
        %v3013 = vadd.f32 %v2988, %v2991
        %v3014 = vadd.f32 %v3013, %v2994
        %v3015 = vadd.f32 %v3014, %v2997
        %v3016 = vadd.f32 %v3015, %v3000
        %v3017 = vadd.f32 %v3016, %v3003
        %v3018 = vadd.f32 %v3017, %v3006
        %v3019 = vadd.f32 %v3018, %v3009
        %v3020 = vadd.f32 %v3019, %v3012
        %v3021 = vrcp.pop %v3020
        %v3022 = vmul.f32 %v3020, %v3021
        %v3023 = vsub.f32 2.0, %v3022
        %v3024 = vmul.f32 %v3021, %v3023
        %v3025 = vmul.f32 %v2883, %v2988
        %v3026 = vmul.f32 %v2888, %v2991
        %v3027 = vadd.f32 %v3025, %v3026
        %v3028 = vmul.f32 %v2893, %v2994
        %v3029 = vadd.f32 %v3027, %v3028
        %v3030 = vmul.f32 %v2898, %v2997
        %v3031 = vadd.f32 %v3029, %v3030
        %v3032 = vmul.f32 %v2903, %v3000
        %v3033 = vadd.f32 %v3031, %v3032
        %v3034 = vmul.f32 %v2908, %v3003
        %v3035 = vadd.f32 %v3033, %v3034
        %v3036 = vmul.f32 %v2913, %v3006
        %v3037 = vadd.f32 %v3035, %v3036
        %v3038 = vmul.f32 %v2918, %v3009
        %v3039 = vadd.f32 %v3037, %v3038
        %v3040 = vmul.f32 %v2923, %v3012
        %v3041 = vadd.f32 %v3039, %v3040
        %v3042 = vmul.f32 %v3041, %v3024
        %v3043 = vld [vmem:[#allocation3] sm:$0xff]
        %v3044 = vmul.f32 %v3042, %v3043
        %v3045 = vrot.slane %v3044, 4
        %v3046 = vadd.f32 %v3044, %v3045
        %v3047 = vrot.slane %v3046, 2
        %v3048 = vadd.f32 %v3046, %v3047
        %v3049 = vrot.slane %v3048, 1
        %v3050 = vadd.f32 %v3048, %v3049
        %3051 = vst [vmem:[%s607] sm:$0x1] %v3050
        %v3052 = vld [vmem:[#allocation3 + $0x10] sm:$0xff]
        %v3053 = vmul.f32 %v3042, %v3052
        %v3054 = vrot.slane %v3053, 4
        %v3055 = vadd.f32 %v3053, %v3054
        %v3056 = vrot.slane %v3055, 2
        %v3057 = vadd.f32 %v3055, %v3056
        %v3058 = vrot.slane %v3057, 1
        %v3059 = vadd.f32 %v3057, %v3058
        %3060 = vst [vmem:[%s607 + $0x1] sm:$0x1] %v3059
        %v3061 = vld [vmem:[#allocation3 + $0x20] sm:$0xff]
        %v3062 = vmul.f32 %v3042, %v3061
        %v3063 = vrot.slane %v3062, 4
        %v3064 = vadd.f32 %v3062, %v3063
        %v3065 = vrot.slane %v3064, 2
        %v3066 = vadd.f32 %v3064, %v3065
        %v3067 = vrot.slane %v3066, 1
        %v3068 = vadd.f32 %v3066, %v3067
        %3069 = vst [vmem:[%s607 + $0x2] sm:$0x1] %v3068
        %s3070 = sadd.s32 0, 18
        %s3071 = smul.addr %s3070, 4
        %s3072 = scalar_lea.vmem %s559, %s3071 [#allocation4]
        %v3073 = vld [vmem:[%s3072] sm:$0xf]
        %v3074 = vunpack.c.l.bf16 %v3073
        %s3075 = sadd.s32 %s2884, 18
        %s3076 = smul.addr %s3075, 4
        %s3077 = scalar_lea.vmem %s559, %s3076 [#allocation4]
        %v3078 = vld [vmem:[%s3077] sm:$0xf]
        %v3079 = vunpack.c.l.bf16 %v3078
        %s3080 = sadd.s32 %s2889, 18
        %s3081 = smul.addr %s3080, 4
        %s3082 = scalar_lea.vmem %s559, %s3081 [#allocation4]
        %v3083 = vld [vmem:[%s3082] sm:$0xf]
        %v3084 = vunpack.c.l.bf16 %v3083
        %s3085 = sadd.s32 %s2894, 18
        %s3086 = smul.addr %s3085, 4
        %s3087 = scalar_lea.vmem %s559, %s3086 [#allocation4]
        %v3088 = vld [vmem:[%s3087] sm:$0xf]
        %v3089 = vunpack.c.l.bf16 %v3088
        %s3090 = sadd.s32 %s2899, 18
        %s3091 = smul.addr %s3090, 4
        %s3092 = scalar_lea.vmem %s559, %s3091 [#allocation4]
        %v3093 = vld [vmem:[%s3092] sm:$0xf]
        %v3094 = vunpack.c.l.bf16 %v3093
        %s3095 = sadd.s32 %s2904, 18
        %s3096 = smul.addr %s3095, 4
        %s3097 = scalar_lea.vmem %s559, %s3096 [#allocation4]
        %v3098 = vld [vmem:[%s3097] sm:$0xf]
        %v3099 = vunpack.c.l.bf16 %v3098
        %s3100 = sadd.s32 %s2909, 18
        %s3101 = smul.addr %s3100, 4
        %s3102 = scalar_lea.vmem %s559, %s3101 [#allocation4]
        %v3103 = vld [vmem:[%s3102] sm:$0xf]
        %v3104 = vunpack.c.l.bf16 %v3103
        %s3105 = sadd.s32 %s2914, 18
        %s3106 = smul.addr %s3105, 4
        %s3107 = scalar_lea.vmem %s559, %s3106 [#allocation4]
        %v3108 = vld [vmem:[%s3107] sm:$0xf]
        %v3109 = vunpack.c.l.bf16 %v3108
        %s3110 = sadd.s32 %s2919, 18
        %s3111 = smul.addr %s3110, 4
        %s3112 = scalar_lea.vmem %s559, %s3111 [#allocation4]
        %v3113 = vld [vmem:[%s3112] sm:$0xf]
        %v3114 = vunpack.c.l.bf16 %v3113
        %v3115 = vmul.f32 %v3074, %v2845
        %v3116 = vmul.f32 %v3079, %v2848
        %v3117 = vadd.f32 %v3115, %v3116
        %v3118 = vmul.f32 %v3084, %v2851
        %v3119 = vadd.f32 %v3117, %v3118
        %v3120 = vmul.f32 %v3089, %v2854
        %v3121 = vadd.f32 %v3119, %v3120
        %v3122 = vmul.f32 %v3094, %v2857
        %v3123 = vadd.f32 %v3121, %v3122
        %v3124 = vmul.f32 %v3099, %v2860
        %v3125 = vadd.f32 %v3123, %v3124
        %v3126 = vmul.f32 %v3104, %v2863
        %v3127 = vadd.f32 %v3125, %v3126
        %v3128 = vmul.f32 %v3109, %v2866
        %v3129 = vadd.f32 %v3127, %v3128
        %v3130 = vmul.f32 %v3114, %v2869
        %v3131 = vadd.f32 %v3129, %v3130
        %v3132 = vmul.f32 %v3131, %v2881
        %v3133 = vsub.f32 %v3074, %v3132
        %v3134 = vmul.f32 %v3133, %v3133
        %v3135 = vmul.f32 %v2824, %v3134
        %v3136 = vadd.f32 %v2826, %v3135
        %v3137 = vsub.f32 %v3079, %v3132
        %v3138 = vmul.f32 %v3137, %v3137
        %v3139 = vmul.f32 %v2824, %v3138
        %v3140 = vadd.f32 %v2827, %v3139
        %v3141 = vsub.f32 %v3084, %v3132
        %v3142 = vmul.f32 %v3141, %v3141
        %v3143 = vmul.f32 %v2824, %v3142
        %v3144 = vadd.f32 %v2828, %v3143
        %v3145 = vsub.f32 %v3089, %v3132
        %v3146 = vmul.f32 %v3145, %v3145
        %v3147 = vmul.f32 %v2824, %v3146
        %v3148 = vadd.f32 %v2829, %v3147
        %v3149 = vsub.f32 %v3094, %v3132
        %v3150 = vmul.f32 %v3149, %v3149
        %v3151 = vmul.f32 %v2824, %v3150
        %v3152 = vadd.f32 %v2830, %v3151
        %v3153 = vsub.f32 %v3099, %v3132
        %v3154 = vmul.f32 %v3153, %v3153
        %v3155 = vmul.f32 %v2824, %v3154
        %v3156 = vadd.f32 %v2831, %v3155
        %v3157 = vsub.f32 %v3104, %v3132
        %v3158 = vmul.f32 %v3157, %v3157
        %v3159 = vmul.f32 %v2824, %v3158
        %v3160 = vadd.f32 %v2832, %v3159
        %v3161 = vsub.f32 %v3109, %v3132
        %v3162 = vmul.f32 %v3161, %v3161
        %v3163 = vmul.f32 %v2824, %v3162
        %v3164 = vadd.f32 %v2833, %v3163
        %v3165 = vsub.f32 %v3114, %v3132
        %v3166 = vmul.f32 %v3165, %v3165
        %v3167 = vmul.f32 %v2824, %v3166
        %v3168 = vadd.f32 %v2834, %v3167
        %v3169 = vmax.f32 %v3136, %v3140
        %v3170 = vmax.f32 %v3169, %v3144
        %v3171 = vmax.f32 %v3170, %v3148
        %v3172 = vmax.f32 %v3171, %v3152
        %v3173 = vmax.f32 %v3172, %v3156
        %v3174 = vmax.f32 %v3173, %v3160
        %v3175 = vmax.f32 %v3174, %v3164
        %v3176 = vmax.f32 %v3175, %v3168
        %v3177 = vsub.f32 %v3136, %v3176
        %v3178 = vmul.f32 %v3177, 1.442695
        %v3179 = vpow.pop %v3178
        %v3180 = vsub.f32 %v3140, %v3176
        %v3181 = vmul.f32 %v3180, 1.442695
        %v3182 = vpow.pop %v3181
        %v3183 = vsub.f32 %v3144, %v3176
        %v3184 = vmul.f32 %v3183, 1.442695
        %v3185 = vpow.pop %v3184
        %v3186 = vsub.f32 %v3148, %v3176
        %v3187 = vmul.f32 %v3186, 1.442695
        %v3188 = vpow.pop %v3187
        %v3189 = vsub.f32 %v3152, %v3176
        %v3190 = vmul.f32 %v3189, 1.442695
        %v3191 = vpow.pop %v3190
        %v3192 = vsub.f32 %v3156, %v3176
        %v3193 = vmul.f32 %v3192, 1.442695
        %v3194 = vpow.pop %v3193
        %v3195 = vsub.f32 %v3160, %v3176
        %v3196 = vmul.f32 %v3195, 1.442695
        %v3197 = vpow.pop %v3196
        %v3198 = vsub.f32 %v3164, %v3176
        %v3199 = vmul.f32 %v3198, 1.442695
        %v3200 = vpow.pop %v3199
        %v3201 = vsub.f32 %v3168, %v3176
        %v3202 = vmul.f32 %v3201, 1.442695
        %v3203 = vpow.pop %v3202
        %v3204 = vadd.f32 %v3179, %v3182
        %v3205 = vadd.f32 %v3204, %v3185
        %v3206 = vadd.f32 %v3205, %v3188
        %v3207 = vadd.f32 %v3206, %v3191
        %v3208 = vadd.f32 %v3207, %v3194
        %v3209 = vadd.f32 %v3208, %v3197
        %v3210 = vadd.f32 %v3209, %v3200
        %v3211 = vadd.f32 %v3210, %v3203
        %v3212 = vrcp.pop %v3211
        %v3213 = vmul.f32 %v3211, %v3212
        %v3214 = vsub.f32 2.0, %v3213
        %v3215 = vmul.f32 %v3212, %v3214
        %v3216 = vmul.f32 %v3074, %v3179
        %v3217 = vmul.f32 %v3079, %v3182
        %v3218 = vadd.f32 %v3216, %v3217
        %v3219 = vmul.f32 %v3084, %v3185
        %v3220 = vadd.f32 %v3218, %v3219
        %v3221 = vmul.f32 %v3089, %v3188
        %v3222 = vadd.f32 %v3220, %v3221
        %v3223 = vmul.f32 %v3094, %v3191
        %v3224 = vadd.f32 %v3222, %v3223
        %v3225 = vmul.f32 %v3099, %v3194
        %v3226 = vadd.f32 %v3224, %v3225
        %v3227 = vmul.f32 %v3104, %v3197
        %v3228 = vadd.f32 %v3226, %v3227
        %v3229 = vmul.f32 %v3109, %v3200
        %v3230 = vadd.f32 %v3228, %v3229
        %v3231 = vmul.f32 %v3114, %v3203
        %v3232 = vadd.f32 %v3230, %v3231
        %v3233 = vmul.f32 %v3232, %v3215
        %v3234 = vld [vmem:[#allocation3] sm:$0xff]
        %v3235 = vmul.f32 %v3233, %v3234
        %v3236 = vrot.slane %v3235, 4
        %v3237 = vadd.f32 %v3235, %v3236
        %v3238 = vrot.slane %v3237, 2
        %v3239 = vadd.f32 %v3237, %v3238
        %v3240 = vrot.slane %v3239, 1
        %v3241 = vadd.f32 %v3239, %v3240
        %s3242 = smul.addr %s2884, 4
        %s3243 = scalar_lea.vmem %s607, %s3242 [#allocation5]
        %3244 = vst [vmem:[%s3243] sm:$0x1] %v3241
        %v3245 = vld [vmem:[#allocation3 + $0x10] sm:$0xff]
        %v3246 = vmul.f32 %v3233, %v3245
        %v3247 = vrot.slane %v3246, 4
        %v3248 = vadd.f32 %v3246, %v3247
        %v3249 = vrot.slane %v3248, 2
        %v3250 = vadd.f32 %v3248, %v3249
        %v3251 = vrot.slane %v3250, 1
        %v3252 = vadd.f32 %v3250, %v3251
        %3253 = vst [vmem:[%s3243 + $0x1] sm:$0x1] %v3252
        %v3254 = vld [vmem:[#allocation3 + $0x20] sm:$0xff]
        %v3255 = vmul.f32 %v3233, %v3254
        %v3256 = vrot.slane %v3255, 4
        %v3257 = vadd.f32 %v3255, %v3256
        %v3258 = vrot.slane %v3257, 2
        %v3259 = vadd.f32 %v3257, %v3258
        %v3260 = vrot.slane %v3259, 1
        %v3261 = vadd.f32 %v3259, %v3260
        %3262 = vst [vmem:[%s3243 + $0x2] sm:$0x1] %v3261
        %s3263 = scalar_lea.vmem [#allocation2], 8
        %v3264 = vld [vmem:[%s3263] sm:$0xff]
        %v3265 = vld [vmem:[%s3263 + $0x10] sm:$0xff]
        %v3266 = vld [vmem:[%s3263 + $0x20] sm:$0xff]
        %v3267 = vld [vmem:[%s3263 + $0x30] sm:$0xff]
        %v3268 = vld [vmem:[%s3263 + $0x40] sm:$0xff]
        %v3269 = vld [vmem:[%s3263 + $0x50] sm:$0xff]
        %v3270 = vld [vmem:[%s3263 + $0x60] sm:$0xff]
        %v3271 = vld [vmem:[%s3263 + $0x70] sm:$0xff]
        %v3272 = vld [vmem:[%s3263 + $0x80] sm:$0xff]
        %v3273 = vmax.f32 %v3264, %v3265
        %v3274 = vmax.f32 %v3273, %v3266
        %v3275 = vmax.f32 %v3274, %v3267
        %v3276 = vmax.f32 %v3275, %v3268
        %v3277 = vmax.f32 %v3276, %v3269
        %v3278 = vmax.f32 %v3277, %v3270
        %v3279 = vmax.f32 %v3278, %v3271
        %v3280 = vmax.f32 %v3279, %v3272
        %v3281 = vsub.f32 %v3264, %v3280
        %v3282 = vmul.f32 %v3281, 1.442695
        %v3283 = vpow.pop %v3282
        %v3284 = vsub.f32 %v3265, %v3280
        %v3285 = vmul.f32 %v3284, 1.442695
        %v3286 = vpow.pop %v3285
        %v3287 = vsub.f32 %v3266, %v3280
        %v3288 = vmul.f32 %v3287, 1.442695
        %v3289 = vpow.pop %v3288
        %v3290 = vsub.f32 %v3267, %v3280
        %v3291 = vmul.f32 %v3290, 1.442695
        %v3292 = vpow.pop %v3291
        %v3293 = vsub.f32 %v3268, %v3280
        %v3294 = vmul.f32 %v3293, 1.442695
        %v3295 = vpow.pop %v3294
        %v3296 = vsub.f32 %v3269, %v3280
        %v3297 = vmul.f32 %v3296, 1.442695
        %v3298 = vpow.pop %v3297
        %v3299 = vsub.f32 %v3270, %v3280
        %v3300 = vmul.f32 %v3299, 1.442695
        %v3301 = vpow.pop %v3300
        %v3302 = vsub.f32 %v3271, %v3280
        %v3303 = vmul.f32 %v3302, 1.442695
        %v3304 = vpow.pop %v3303
        %v3305 = vsub.f32 %v3272, %v3280
        %v3306 = vmul.f32 %v3305, 1.442695
        %v3307 = vpow.pop %v3306
        %v3308 = vadd.f32 %v3283, %v3286
        %v3309 = vadd.f32 %v3308, %v3289
        %v3310 = vadd.f32 %v3309, %v3292
        %v3311 = vadd.f32 %v3310, %v3295
        %v3312 = vadd.f32 %v3311, %v3298
        %v3313 = vadd.f32 %v3312, %v3301
        %v3314 = vadd.f32 %v3313, %v3304
        %v3315 = vadd.f32 %v3314, %v3307
        %v3316 = vrcp.pop %v3315
        %v3317 = vmul.f32 %v3315, %v3316
        %v3318 = vsub.f32 2.0, %v3317
        %v3319 = vmul.f32 %v3316, %v3318
        %s3320 = scalar_lea.vmem %s559, 4 [#allocation4]
        %v3321 = vld [vmem:[%s3320] sm:$0xf]
        %v3322 = vunpack.c.l.bf16 %v3321
        %s3323 = sadd.s32 1, 2
        %s3324 = smul.addr %s3323, 4
        %s3325 = scalar_lea.vmem %s559, %s3324 [#allocation4]
        %v3326 = vld [vmem:[%s3325] sm:$0xf]
        %v3327 = vunpack.c.l.bf16 %v3326
        %s3328 = sadd.s32 1, 4
        %s3329 = smul.addr %s3328, 4
        %s3330 = scalar_lea.vmem %s559, %s3329 [#allocation4]
        %v3331 = vld [vmem:[%s3330] sm:$0xf]
        %v3332 = vunpack.c.l.bf16 %v3331
        %s3333 = sadd.s32 1, 6
        %s3334 = smul.addr %s3333, 4
        %s3335 = scalar_lea.vmem %s559, %s3334 [#allocation4]
        %v3336 = vld [vmem:[%s3335] sm:$0xf]
        %v3337 = vunpack.c.l.bf16 %v3336
        %s3338 = sadd.s32 1, 8
        %s3339 = smul.addr %s3338, 4
        %s3340 = scalar_lea.vmem %s559, %s3339 [#allocation4]
        %v3341 = vld [vmem:[%s3340] sm:$0xf]
        %v3342 = vunpack.c.l.bf16 %v3341
        %s3343 = sadd.s32 1, 10
        %s3344 = smul.addr %s3343, 4
        %s3345 = scalar_lea.vmem %s559, %s3344 [#allocation4]
        %v3346 = vld [vmem:[%s3345] sm:$0xf]
        %v3347 = vunpack.c.l.bf16 %v3346
        %s3348 = sadd.s32 1, 12
        %s3349 = smul.addr %s3348, 4
        %s3350 = scalar_lea.vmem %s559, %s3349 [#allocation4]
        %v3351 = vld [vmem:[%s3350] sm:$0xf]
        %v3352 = vunpack.c.l.bf16 %v3351
        %s3353 = sadd.s32 1, 14
        %s3354 = smul.addr %s3353, 4
        %s3355 = scalar_lea.vmem %s559, %s3354 [#allocation4]
        %v3356 = vld [vmem:[%s3355] sm:$0xf]
        %v3357 = vunpack.c.l.bf16 %v3356
        %s3358 = sadd.s32 1, 16
        %s3359 = smul.addr %s3358, 4
        %s3360 = scalar_lea.vmem %s559, %s3359 [#allocation4]
        %v3361 = vld [vmem:[%s3360] sm:$0xf]
        %v3362 = vunpack.c.l.bf16 %v3361
        %v3363 = vmul.f32 %v3322, %v3283
        %v3364 = vmul.f32 %v3327, %v3286
        %v3365 = vadd.f32 %v3363, %v3364
        %v3366 = vmul.f32 %v3332, %v3289
        %v3367 = vadd.f32 %v3365, %v3366
        %v3368 = vmul.f32 %v3337, %v3292
        %v3369 = vadd.f32 %v3367, %v3368
        %v3370 = vmul.f32 %v3342, %v3295
        %v3371 = vadd.f32 %v3369, %v3370
        %v3372 = vmul.f32 %v3347, %v3298
        %v3373 = vadd.f32 %v3371, %v3372
        %v3374 = vmul.f32 %v3352, %v3301
        %v3375 = vadd.f32 %v3373, %v3374
        %v3376 = vmul.f32 %v3357, %v3304
        %v3377 = vadd.f32 %v3375, %v3376
        %v3378 = vmul.f32 %v3362, %v3307
        %v3379 = vadd.f32 %v3377, %v3378
        %v3380 = vmul.f32 %v3379, %v3319
        %v3381 = vsub.f32 %v3322, %v3380
        %v3382 = vmul.f32 %v3381, %v3381
        %v3383 = vmul.f32 %v2824, %v3382
        %v3384 = vadd.f32 %v3264, %v3383
        %v3385 = vsub.f32 %v3327, %v3380
        %v3386 = vmul.f32 %v3385, %v3385
        %v3387 = vmul.f32 %v2824, %v3386
        %v3388 = vadd.f32 %v3265, %v3387
        %v3389 = vsub.f32 %v3332, %v3380
        %v3390 = vmul.f32 %v3389, %v3389
        %v3391 = vmul.f32 %v2824, %v3390
        %v3392 = vadd.f32 %v3266, %v3391
        %v3393 = vsub.f32 %v3337, %v3380
        %v3394 = vmul.f32 %v3393, %v3393
        %v3395 = vmul.f32 %v2824, %v3394
        %v3396 = vadd.f32 %v3267, %v3395
        %v3397 = vsub.f32 %v3342, %v3380
        %v3398 = vmul.f32 %v3397, %v3397
        %v3399 = vmul.f32 %v2824, %v3398
        %v3400 = vadd.f32 %v3268, %v3399
        %v3401 = vsub.f32 %v3347, %v3380
        %v3402 = vmul.f32 %v3401, %v3401
        %v3403 = vmul.f32 %v2824, %v3402
        %v3404 = vadd.f32 %v3269, %v3403
        %v3405 = vsub.f32 %v3352, %v3380
        %v3406 = vmul.f32 %v3405, %v3405
        %v3407 = vmul.f32 %v2824, %v3406
        %v3408 = vadd.f32 %v3270, %v3407
        %v3409 = vsub.f32 %v3357, %v3380
        %v3410 = vmul.f32 %v3409, %v3409
        %v3411 = vmul.f32 %v2824, %v3410
        %v3412 = vadd.f32 %v3271, %v3411
        %v3413 = vsub.f32 %v3362, %v3380
        %v3414 = vmul.f32 %v3413, %v3413
        %v3415 = vmul.f32 %v2824, %v3414
        %v3416 = vadd.f32 %v3272, %v3415
        %v3417 = vmax.f32 %v3384, %v3388
        %v3418 = vmax.f32 %v3417, %v3392
        %v3419 = vmax.f32 %v3418, %v3396
        %v3420 = vmax.f32 %v3419, %v3400
        %v3421 = vmax.f32 %v3420, %v3404
        %v3422 = vmax.f32 %v3421, %v3408
        %v3423 = vmax.f32 %v3422, %v3412
        %v3424 = vmax.f32 %v3423, %v3416
        %v3425 = vsub.f32 %v3384, %v3424
        %v3426 = vmul.f32 %v3425, 1.442695
        %v3427 = vpow.pop %v3426
        %v3428 = vsub.f32 %v3388, %v3424
        %v3429 = vmul.f32 %v3428, 1.442695
        %v3430 = vpow.pop %v3429
        %v3431 = vsub.f32 %v3392, %v3424
        %v3432 = vmul.f32 %v3431, 1.442695
        %v3433 = vpow.pop %v3432
        %v3434 = vsub.f32 %v3396, %v3424
        %v3435 = vmul.f32 %v3434, 1.442695
        %v3436 = vpow.pop %v3435
        %v3437 = vsub.f32 %v3400, %v3424
        %v3438 = vmul.f32 %v3437, 1.442695
        %v3439 = vpow.pop %v3438
        %v3440 = vsub.f32 %v3404, %v3424
        %v3441 = vmul.f32 %v3440, 1.442695
        %v3442 = vpow.pop %v3441
        %v3443 = vsub.f32 %v3408, %v3424
        %v3444 = vmul.f32 %v3443, 1.442695
        %v3445 = vpow.pop %v3444
        %v3446 = vsub.f32 %v3412, %v3424
        %v3447 = vmul.f32 %v3446, 1.442695
        %v3448 = vpow.pop %v3447
        %v3449 = vsub.f32 %v3416, %v3424
        %v3450 = vmul.f32 %v3449, 1.442695
        %v3451 = vpow.pop %v3450
        %v3452 = vadd.f32 %v3427, %v3430
        %v3453 = vadd.f32 %v3452, %v3433
        %v3454 = vadd.f32 %v3453, %v3436
        %v3455 = vadd.f32 %v3454, %v3439
        %v3456 = vadd.f32 %v3455, %v3442
        %v3457 = vadd.f32 %v3456, %v3445
        %v3458 = vadd.f32 %v3457, %v3448
        %v3459 = vadd.f32 %v3458, %v3451
        %v3460 = vrcp.pop %v3459
        %v3461 = vmul.f32 %v3459, %v3460
        %v3462 = vsub.f32 2.0, %v3461
        %v3463 = vmul.f32 %v3460, %v3462
        %v3464 = vmul.f32 %v3322, %v3427
        %v3465 = vmul.f32 %v3327, %v3430
        %v3466 = vadd.f32 %v3464, %v3465
        %v3467 = vmul.f32 %v3332, %v3433
        %v3468 = vadd.f32 %v3466, %v3467
        %v3469 = vmul.f32 %v3337, %v3436
        %v3470 = vadd.f32 %v3468, %v3469
        %v3471 = vmul.f32 %v3342, %v3439
        %v3472 = vadd.f32 %v3470, %v3471
        %v3473 = vmul.f32 %v3347, %v3442
        %v3474 = vadd.f32 %v3472, %v3473
        %v3475 = vmul.f32 %v3352, %v3445
        %v3476 = vadd.f32 %v3474, %v3475
        %v3477 = vmul.f32 %v3357, %v3448
        %v3478 = vadd.f32 %v3476, %v3477
        %v3479 = vmul.f32 %v3362, %v3451
        %v3480 = vadd.f32 %v3478, %v3479
        %v3481 = vmul.f32 %v3480, %v3463
        %s3482 = scalar_lea.vmem [#allocation3], 8
        %v3483 = vld [vmem:[%s3482] sm:$0xff]
        %v3484 = vmul.f32 %v3481, %v3483
        %v3485 = vrot.slane %v3484, 4
        %v3486 = vadd.f32 %v3484, %v3485
        %v3487 = vrot.slane %v3486, 2
        %v3488 = vadd.f32 %v3486, %v3487
        %v3489 = vrot.slane %v3488, 1
        %v3490 = vadd.f32 %v3488, %v3489
        %s3491 = scalar_lea.vmem %s607, 4 [#allocation5]
        %3492 = vst [vmem:[%s3491] sm:$0x1] %v3490
        %v3493 = vld [vmem:[%s3482 + $0x10] sm:$0xff]
        %v3494 = vmul.f32 %v3481, %v3493
        %v3495 = vrot.slane %v3494, 4
        %v3496 = vadd.f32 %v3494, %v3495
        %v3497 = vrot.slane %v3496, 2
        %v3498 = vadd.f32 %v3496, %v3497
        %v3499 = vrot.slane %v3498, 1
        %v3500 = vadd.f32 %v3498, %v3499
        %3501 = vst [vmem:[%s3491 + $0x1] sm:$0x1] %v3500
        %v3502 = vld [vmem:[%s3482 + $0x20] sm:$0xff]
        %v3503 = vmul.f32 %v3481, %v3502
        %v3504 = vrot.slane %v3503, 4
        %v3505 = vadd.f32 %v3503, %v3504
        %v3506 = vrot.slane %v3505, 2
        %v3507 = vadd.f32 %v3505, %v3506
        %v3508 = vrot.slane %v3507, 1
        %v3509 = vadd.f32 %v3507, %v3508
        %3510 = vst [vmem:[%s3491 + $0x2] sm:$0x1] %v3509
        %s3511 = sadd.s32 1, 18
        %s3512 = smul.addr %s3511, 4
        %s3513 = scalar_lea.vmem %s559, %s3512 [#allocation4]
        %v3514 = vld [vmem:[%s3513] sm:$0xf]
        %v3515 = vunpack.c.l.bf16 %v3514
        %s3516 = sadd.s32 %s3323, 18
        %s3517 = smul.addr %s3516, 4
        %s3518 = scalar_lea.vmem %s559, %s3517 [#allocation4]
        %v3519 = vld [vmem:[%s3518] sm:$0xf]
        %v3520 = vunpack.c.l.bf16 %v3519
        %s3521 = sadd.s32 %s3328, 18
        %s3522 = smul.addr %s3521, 4
        %s3523 = scalar_lea.vmem %s559, %s3522 [#allocation4]
        %v3524 = vld [vmem:[%s3523] sm:$0xf]
        %v3525 = vunpack.c.l.bf16 %v3524
        %s3526 = sadd.s32 %s3333, 18
        %s3527 = smul.addr %s3526, 4
        %s3528 = scalar_lea.vmem %s559, %s3527 [#allocation4]
        %v3529 = vld [vmem:[%s3528] sm:$0xf]
        %v3530 = vunpack.c.l.bf16 %v3529
        %s3531 = sadd.s32 %s3338, 18
        %s3532 = smul.addr %s3531, 4
        %s3533 = scalar_lea.vmem %s559, %s3532 [#allocation4]
        %v3534 = vld [vmem:[%s3533] sm:$0xf]
        %v3535 = vunpack.c.l.bf16 %v3534
        %s3536 = sadd.s32 %s3343, 18
        %s3537 = smul.addr %s3536, 4
        %s3538 = scalar_lea.vmem %s559, %s3537 [#allocation4]
        %v3539 = vld [vmem:[%s3538] sm:$0xf]
        %v3540 = vunpack.c.l.bf16 %v3539
        %s3541 = sadd.s32 %s3348, 18
        %s3542 = smul.addr %s3541, 4
        %s3543 = scalar_lea.vmem %s559, %s3542 [#allocation4]
        %v3544 = vld [vmem:[%s3543] sm:$0xf]
        %v3545 = vunpack.c.l.bf16 %v3544
        %s3546 = sadd.s32 %s3353, 18
        %s3547 = smul.addr %s3546, 4
        %s3548 = scalar_lea.vmem %s559, %s3547 [#allocation4]
        %v3549 = vld [vmem:[%s3548] sm:$0xf]
        %v3550 = vunpack.c.l.bf16 %v3549
        %s3551 = sadd.s32 %s3358, 18
        %s3552 = smul.addr %s3551, 4
        %s3553 = scalar_lea.vmem %s559, %s3552 [#allocation4]
        %v3554 = vld [vmem:[%s3553] sm:$0xf]
        %v3555 = vunpack.c.l.bf16 %v3554
        %v3556 = vmul.f32 %v3515, %v3283
        %v3557 = vmul.f32 %v3520, %v3286
        %v3558 = vadd.f32 %v3556, %v3557
        %v3559 = vmul.f32 %v3525, %v3289
        %v3560 = vadd.f32 %v3558, %v3559
        %v3561 = vmul.f32 %v3530, %v3292
        %v3562 = vadd.f32 %v3560, %v3561
        %v3563 = vmul.f32 %v3535, %v3295
        %v3564 = vadd.f32 %v3562, %v3563
        %v3565 = vmul.f32 %v3540, %v3298
        %v3566 = vadd.f32 %v3564, %v3565
        %v3567 = vmul.f32 %v3545, %v3301
        %v3568 = vadd.f32 %v3566, %v3567
        %v3569 = vmul.f32 %v3550, %v3304
        %v3570 = vadd.f32 %v3568, %v3569
        %v3571 = vmul.f32 %v3555, %v3307
        %v3572 = vadd.f32 %v3570, %v3571
        %v3573 = vmul.f32 %v3572, %v3319
        %v3574 = vsub.f32 %v3515, %v3573
        %v3575 = vmul.f32 %v3574, %v3574
        %v3576 = vmul.f32 %v2824, %v3575
        %v3577 = vadd.f32 %v3264, %v3576
        %v3578 = vsub.f32 %v3520, %v3573
        %v3579 = vmul.f32 %v3578, %v3578
        %v3580 = vmul.f32 %v2824, %v3579
        %v3581 = vadd.f32 %v3265, %v3580
        %v3582 = vsub.f32 %v3525, %v3573
        %v3583 = vmul.f32 %v3582, %v3582
        %v3584 = vmul.f32 %v2824, %v3583
        %v3585 = vadd.f32 %v3266, %v3584
        %v3586 = vsub.f32 %v3530, %v3573
        %v3587 = vmul.f32 %v3586, %v3586
        %v3588 = vmul.f32 %v2824, %v3587
        %v3589 = vadd.f32 %v3267, %v3588
        %v3590 = vsub.f32 %v3535, %v3573
        %v3591 = vmul.f32 %v3590, %v3590
        %v3592 = vmul.f32 %v2824, %v3591
        %v3593 = vadd.f32 %v3268, %v3592
        %v3594 = vsub.f32 %v3540, %v3573
        %v3595 = vmul.f32 %v3594, %v3594
        %v3596 = vmul.f32 %v2824, %v3595
        %v3597 = vadd.f32 %v3269, %v3596
        %v3598 = vsub.f32 %v3545, %v3573
        %v3599 = vmul.f32 %v3598, %v3598
        %v3600 = vmul.f32 %v2824, %v3599
        %v3601 = vadd.f32 %v3270, %v3600
        %v3602 = vsub.f32 %v3550, %v3573
        %v3603 = vmul.f32 %v3602, %v3602
        %v3604 = vmul.f32 %v2824, %v3603
        %v3605 = vadd.f32 %v3271, %v3604
        %v3606 = vsub.f32 %v3555, %v3573
        %v3607 = vmul.f32 %v3606, %v3606
        %v3608 = vmul.f32 %v2824, %v3607
        %v3609 = vadd.f32 %v3272, %v3608
        %v3610 = vmax.f32 %v3577, %v3581
        %v3611 = vmax.f32 %v3610, %v3585
        %v3612 = vmax.f32 %v3611, %v3589
        %v3613 = vmax.f32 %v3612, %v3593
        %v3614 = vmax.f32 %v3613, %v3597
        %v3615 = vmax.f32 %v3614, %v3601
        %v3616 = vmax.f32 %v3615, %v3605
        %v3617 = vmax.f32 %v3616, %v3609
        %v3618 = vsub.f32 %v3577, %v3617
        %v3619 = vmul.f32 %v3618, 1.442695
        %v3620 = vpow.pop %v3619
        %v3621 = vsub.f32 %v3581, %v3617
        %v3622 = vmul.f32 %v3621, 1.442695
        %v3623 = vpow.pop %v3622
        %v3624 = vsub.f32 %v3585, %v3617
        %v3625 = vmul.f32 %v3624, 1.442695
        %v3626 = vpow.pop %v3625
        %v3627 = vsub.f32 %v3589, %v3617
        %v3628 = vmul.f32 %v3627, 1.442695
        %v3629 = vpow.pop %v3628
        %v3630 = vsub.f32 %v3593, %v3617
        %v3631 = vmul.f32 %v3630, 1.442695
        %v3632 = vpow.pop %v3631
        %v3633 = vsub.f32 %v3597, %v3617
        %v3634 = vmul.f32 %v3633, 1.442695
        %v3635 = vpow.pop %v3634
        %v3636 = vsub.f32 %v3601, %v3617
        %v3637 = vmul.f32 %v3636, 1.442695
        %v3638 = vpow.pop %v3637
        %v3639 = vsub.f32 %v3605, %v3617
        %v3640 = vmul.f32 %v3639, 1.442695
        %v3641 = vpow.pop %v3640
        %v3642 = vsub.f32 %v3609, %v3617
        %v3643 = vmul.f32 %v3642, 1.442695
        %v3644 = vpow.pop %v3643
        %v3645 = vadd.f32 %v3620, %v3623
        %v3646 = vadd.f32 %v3645, %v3626
        %v3647 = vadd.f32 %v3646, %v3629
        %v3648 = vadd.f32 %v3647, %v3632
        %v3649 = vadd.f32 %v3648, %v3635
        %v3650 = vadd.f32 %v3649, %v3638
        %v3651 = vadd.f32 %v3650, %v3641
        %v3652 = vadd.f32 %v3651, %v3644
        %v3653 = vrcp.pop %v3652
        %v3654 = vmul.f32 %v3652, %v3653
        %v3655 = vsub.f32 2.0, %v3654
        %v3656 = vmul.f32 %v3653, %v3655
        %v3657 = vmul.f32 %v3515, %v3620
        %v3658 = vmul.f32 %v3520, %v3623
        %v3659 = vadd.f32 %v3657, %v3658
        %v3660 = vmul.f32 %v3525, %v3626
        %v3661 = vadd.f32 %v3659, %v3660
        %v3662 = vmul.f32 %v3530, %v3629
        %v3663 = vadd.f32 %v3661, %v3662
        %v3664 = vmul.f32 %v3535, %v3632
        %v3665 = vadd.f32 %v3663, %v3664
        %v3666 = vmul.f32 %v3540, %v3635
        %v3667 = vadd.f32 %v3665, %v3666
        %v3668 = vmul.f32 %v3545, %v3638
        %v3669 = vadd.f32 %v3667, %v3668
        %v3670 = vmul.f32 %v3550, %v3641
        %v3671 = vadd.f32 %v3669, %v3670
        %v3672 = vmul.f32 %v3555, %v3644
        %v3673 = vadd.f32 %v3671, %v3672
        %v3674 = vmul.f32 %v3673, %v3656
        %v3675 = vld [vmem:[%s3482] sm:$0xff]
        %v3676 = vmul.f32 %v3674, %v3675
        %v3677 = vrot.slane %v3676, 4
        %v3678 = vadd.f32 %v3676, %v3677
        %v3679 = vrot.slane %v3678, 2
        %v3680 = vadd.f32 %v3678, %v3679
        %v3681 = vrot.slane %v3680, 1
        %v3682 = vadd.f32 %v3680, %v3681
        %s3683 = smul.addr %s3323, 4
        %s3684 = scalar_lea.vmem %s607, %s3683 [#allocation5]
        %3685 = vst [vmem:[%s3684] sm:$0x1] %v3682
        %v3686 = vld [vmem:[%s3482 + $0x10] sm:$0xff]
        %v3687 = vmul.f32 %v3674, %v3686
        %v3688 = vrot.slane %v3687, 4
        %v3689 = vadd.f32 %v3687, %v3688
        %v3690 = vrot.slane %v3689, 2
        %v3691 = vadd.f32 %v3689, %v3690
        %v3692 = vrot.slane %v3691, 1
        %v3693 = vadd.f32 %v3691, %v3692
        %3694 = vst [vmem:[%s3684 + $0x1] sm:$0x1] %v3693
        %v3695 = vld [vmem:[%s3482 + $0x20] sm:$0xff]
        %v3696 = vmul.f32 %v3674, %v3695
        %v3697 = vrot.slane %v3696, 4
        %v3698 = vadd.f32 %v3696, %v3697
        %v3699 = vrot.slane %v3698, 2
        %v3700 = vadd.f32 %v3698, %v3699
        %v3701 = vrot.slane %v3700, 1
        %v3702 = vadd.f32 %v3700, %v3701
        %3703 = vst [vmem:[%s3684 + $0x2] sm:$0x1] %v3702
        %s3704 = sand.u32 %s359, 1
        %s3705 = sand.u32 %s359, 1
        %s3706 = smul.addr %s3705, 16
        %s3707 = scalar_lea.vmem [#allocation5], %s3706
        // Predicated region
        $region119: #{bi_upsampler_forward.1} parent=113 // pred_check
          %p3708 = pneg %p369
        $region120: #{bi_upsampler_forward.1} parent=113 // pred_check_branch
          %3710 = sbr.rel (%p3708) target = $region122
        $region121: #{bi_upsampler_forward.1} parent=113 // pred_region
          %s3711 = smul.u32 2, %s26
          %s3712 = smul.addr %s3711, 4
          %s3713 = scalar_lea.vmem %s15, %s3712
          // Predicated region
          $region123: #{bi_upsampler_forward.1} parent=121 // pred_check
            _
          $region124: #{bi_upsampler_forward.1} parent=121 // pred_check_branch
            %3715 = sbr.rel (0) target = $region126
          $region125: #{bi_upsampler_forward.1} parent=121 // pred_region
            // Predicated region
            $region127: #{bi_upsampler_forward.1} parent=125 // pred_check
              _
            $region128: #{bi_upsampler_forward.1} parent=125 // pred_check_branch
              %3717 = sbr.rel (0) target = $region130
            $region129: #{bi_upsampler_forward.1} parent=125 // pred_region
              // Predicated region
              $region142: #{bi_upsampler_forward.1} parent=129 // pred_check
                _
              $region143: #{bi_upsampler_forward.1} parent=129 // pred_check_branch
                %3734 = sbr.rel (0) target = $region145
              $region144: #{bi_upsampler_forward.1} parent=129 // pred_region
                loop: start=0, step=1, limit=1
                $region146: #{bi_upsampler_forward.1} parent=144 // loop_pre_header
                  _
                $region147: #{bi_upsampler_forward.1} parent=144 // loop_header
                  %s3736 = sphi 0, %s3740
                  %p3737 = scmp.ge.s32.totalorder %s3736, 1
                  %s3741 = sphi %s3707, %s3707
                  %s3742 = sphi %s3713, %s3713
                $region148: #{bi_upsampler_forward.1} parent=144 // loop_header_branch
                  %3739 = sbr.rel (%p3737) target = $region152
                $region149: #{bi_upsampler_forward.1} parent=144 // loop_body
                  %v3743 = vld [vmem:[%s3741] sm:$0xff]
                  %3744 = vst [vmem:[%s3742] sm:$0xff] %v3743
                  %v3745 = vld [vmem:[%s3741 + $0x8] sm:$0xff]
                  %3746 = vst [vmem:[%s3742 + $0x20] sm:$0xff] %v3745
                $region150: #{bi_upsampler_forward.1} parent=144 // loop_footer
                  %s3740 = sadd.s32 1, %s3736
                $region151: #{bi_upsampler_forward.1} parent=144 // loop_footer_branch
                  %3735 = sbr.rel target = $region147
                $region152: #{bi_upsampler_forward.1} parent=144 // loop_exit
                  _
              $region145: #{bi_upsampler_forward.1} parent=129 // pred_fallthru
                _
              // Predicated region
              $region153: #{bi_upsampler_forward.1} parent=129 // pred_check
                _
              $region154: #{bi_upsampler_forward.1} parent=129 // pred_check_branch
                %3748 = sbr.rel target = $region156
              $region155: #{bi_upsampler_forward.1} parent=129 // pred_region
                _
              $region156: #{bi_upsampler_forward.1} parent=129 // pred_fallthru
                _
            $region130: #{bi_upsampler_forward.1} parent=125 // pred_fallthru
              _
            // Predicated region
            $region131: #{bi_upsampler_forward.1} parent=125 // pred_check
              _
            $region132: #{bi_upsampler_forward.1} parent=125 // pred_check_branch
              %3719 = sbr.rel target = $region134
            $region133: #{bi_upsampler_forward.1} parent=125 // pred_region
              loop: start=0, step=1, limit=1
              $region135: #{bi_upsampler_forward.1} parent=133 // loop_pre_header
                _
              $region136: #{bi_upsampler_forward.1} parent=133 // loop_header
                %s3722 = sphi 0, %s3726
                %p3723 = scmp.ge.s32.totalorder %s3722, 1
                %s3727 = sphi %s3707, %s3707
                %s3728 = sphi %s3713, %s3713
              $region137: #{bi_upsampler_forward.1} parent=133 // loop_header_branch
                %3725 = sbr.rel (%p3723) target = $region141
              $region138: #{bi_upsampler_forward.1} parent=133 // loop_body
                %v3729 = vld [vmem:[%s3727] sm:$0xff]
                %3730 = vst [vmem:[%s3728] sm:$0xff] %v3729
                %v3731 = vld [vmem:[%s3727 + $0x8] sm:$0xff]
                %3732 = vst [vmem:[%s3728 + $0x20] sm:$0xff] %v3731
              $region139: #{bi_upsampler_forward.1} parent=133 // loop_footer
                %s3726 = sadd.s32 1, %s3722
              $region140: #{bi_upsampler_forward.1} parent=133 // loop_footer_branch
                %3721 = sbr.rel target = $region136
              $region141: #{bi_upsampler_forward.1} parent=133 // loop_exit
                _
            $region134: #{bi_upsampler_forward.1} parent=125 // pred_fallthru
              _
          $region126: #{bi_upsampler_forward.1} parent=121 // pred_fallthru
            _
          %3749 = vnop
        $region122: #{bi_upsampler_forward.1} parent=113 // pred_fallthru
          _
      $region114: #{bi_upsampler_forward.1} parent=5 // pred_fallthru
        _
      %p3750 = scmp.le.s32.totalorder 2, %s21
      // Predicated region
      $region157: #{bi_upsampler_forward.1} parent=5 // pred_check
        %p3751 = pneg %p3750
      $region158: #{bi_upsampler_forward.1} parent=5 // pred_check_branch
        %3753 = sbr.rel (%p3751) target = $region160
      $region159: #{bi_upsampler_forward.1} parent=5 // pred_region
        %s3754 = ssub.s32 %s21, 2
        // Predicated region
        $region161: #{bi_upsampler_forward.1} parent=159 // pred_check
          %p3755 = pneg %p375
        $region162: #{bi_upsampler_forward.1} parent=159 // pred_check_branch
          %3757 = sbr.rel (%p3755) target = $region164
        $region163: #{bi_upsampler_forward.1} parent=159 // pred_region
          %s3758 = sand.u32 %s360, 1
          %s3759 = sand.u32 %s360, 1
          %s3760 = smul.addr %s3759, 16
          %s3761 = scalar_lea.vmem [#allocation5], %s3760
        $region164: #{bi_upsampler_forward.1} parent=159 // pred_fallthru
          _
      $region160: #{bi_upsampler_forward.1} parent=5 // pred_fallthru
        _
    $region6: #{bi_upsampler_forward.1} parent=1 // loop_footer
      %s25 = sadd.s32 1, %s21
    $region7: #{bi_upsampler_forward.1} parent=1 // loop_footer_branch
      %20 = sbr.rel target = $region3
    $region8: #{bi_upsampler_forward.1} parent=1 // loop_exit
      _

</llo_original>
